<compile_context>
chip_gen: v7x
topology: tpu7x:2x2x1
jax: 0.10.0
libtpu: 0.0.40
codegen_flags: <defaults>
</compile_context>

<pallas_src>
import functools
from typing import NamedTuple

import jax
import jax.numpy as jnp
import numpy as np
from jax import lax
from jax.experimental import pallas as pl
from jax.experimental.pallas import tpu as pltpu

NEG_SLOPE = 0.01  # PyTorch nn.LeakyReLU default negative_slope


class _LayerDims(NamedTuple):
    cin: int
    cout: int
    ho: int   # output height of this layer
    wo: int   # output width of this layer
    hh: int   # phase-split (padded) height of this layer's input (strided layers only)
    ww: int   # phase-split (padded) width of this layer's input (strided layers only)


def _leaky(x):
    return jnp.where(x >= 0, x, x * NEG_SLOPE)


def _parity_select_mats(w, dtype):
    """S_even[i, j] = [i == 2j],  S_odd[i, j] = [i == 2j + 1]   (w even)."""
    half = w // 2
    i_idx = lax.broadcasted_iota(jnp.int32, (w, half), 0)
    j_idx = lax.broadcasted_iota(jnp.int32, (w, half), 1)
    s_even = (i_idx == 2 * j_idx).astype(dtype)
    s_odd = (i_idx == 2 * j_idx + 1).astype(dtype)
    return s_even, s_odd


# ------------------------------ fused kernel ------------------------------- #
def _down_block_kernel(*refs, dims):
    """Fused DownBlock: k x [conv3x3 s2 + LeakyReLU] then conv3x3 s1 (no bias).

    refs = (x_ref, w_0..w_k, out_ref, phase_1..phase_{k-1}, dense_fin, col_0..col_k)

    x_ref      (1, 4*Hh0, Cin0, Ww0)  phase-split (space-to-depth x2), zero-padded input
    w_l        (Cout_l, 9*Cin_l)      conv weights, columns ordered (kh, kw, ci)
    out_ref    (1, Cout_k, Hf*Wf)     flattened-spatial output (lanes = spatial)
    phase_l    (4*Hh_l, Cin_l, Ww_l)  VMEM: phase-split padded input of strided layer l
    dense_fin  (H+2, Cin, W+2)        VMEM: zero-padded dense input of the final layer
    col_l      (9*Cin_l, Ho_l*Wo_l)   VMEM: im2col matrix of layer l
    """
    n_layers = len(dims)
    k = n_layers - 1                      # number of strided layers
    x_ref = refs[0]
    w_refs = refs[1:1 + n_layers]
    out_ref = refs[1 + n_layers]
    scratch = refs[2 + n_layers:]
    phase_bufs = scratch[:k - 1]
    dense_buf = scratch[k - 1]
    col_bufs = scratch[k:]

    f32 = jnp.float32

    # ---------------- strided conv3x3 + LeakyReLU layers ----------------
    for l in range(k):
        d = dims[l]
        cin, ho_n, wo_n, hh = d.cin, d.ho, d.wo, d.hh
        a_ref = col_bufs[l]
        src = x_ref if l == 0 else phase_bufs[l - 1]

        # Fused im2col: 9 static shifted views of the phase-split padded input -> VMEM.
        # Padded row 2*ho + kh lives in phase p = (kh%2)*2 + (kw%2) at row ho + kh//2,
        # columns [kw//2 : kw//2 + Wo]  (all static contiguous slices).
        for kh in range(3):
            for kw in range(3):
                p = (kh % 2) * 2 + (kw % 2)
                r0 = (kh * 3 + kw) * cin
                c_lo = kw // 2
                for ho in range(ho_n):
                    row = p * hh + ho + kh // 2
                    if l == 0:
                        val = src[0, row, :, c_lo:c_lo + wo_n]
                    else:
                        val = src[row, :, c_lo:c_lo + wo_n]
                    a_ref[r0:r0 + cin, ho * wo_n:(ho + 1) * wo_n] = val

        # One matmul per layer: (Cout, 9*Cin) @ (9*Cin, Ho*Wo), f32 accumulate.
        o = jnp.dot(w_refs[l][...], a_ref[...], preferred_element_type=f32)
        o = _leaky(o)                                   # LeakyReLU on f32 accumulator

        if l < k - 1:
            # Next layer is also strided: repack rows into its zero-padded phase-split
            # input.  Even/odd column split via constant selection matmuls (MXU).
            nxt = phase_bufs[l]
            hh2 = dims[l + 1].hh
            half = wo_n // 2
            s_even, s_odd = _parity_select_mats(wo_n, f32)
            nxt[...] = jnp.zeros_like(nxt)
            for ho in range(ho_n):
                row = o[:, ho * wo_n:(ho + 1) * wo_n]
                ph = (ho + 1) % 2
                hp = (ho + 1) // 2
                nxt[(ph * 2 + 1) * hh2 + hp, :, 0:half] = jnp.dot(
                    row, s_even, preferred_element_type=f32)
                nxt[(ph * 2 + 0) * hh2 + hp, :, 1:half + 1] = jnp.dot(
                    row, s_odd, preferred_element_type=f32)
        else:
            # Next layer is the final stride-1 conv: write its dense zero-padded input.
            dense_buf[...] = jnp.zeros_like(dense_buf)
            for ho in range(ho_n):
                dense_buf[ho + 1, :, 1:1 + wo_n] = o[:, ho * wo_n:(ho + 1) * wo_n]

    # ---------------- final stride-1 conv3x3 (no activation) ----------------
    d = dims[k]
    cin, hn, wn = d.cin, d.ho, d.wo
    a_ref = col_bufs[k]
    for kh in range(3):
        for kw in range(3):
            r0 = (kh * 3 + kw) * cin
            for ho in range(hn):
                a_ref[r0:r0 + cin, ho * wn:(ho + 1) * wn] = \
                    dense_buf[ho + kh, :, kw:kw + wn]
    o = jnp.dot(w_refs[k][...], a_ref[...], preferred_element_type=f32)
    out_ref[0] = o.astype(out_ref.dtype)


# ------------------------------ wrapper (JAX) ------------------------------- #
def _down_block_pallas(x_nchw, params):
    """DownBlock forward.  x: (N, C, H, W) f32; params: list of OIHW 3x3 conv weights."""
    n, cin0, h, w = x_nchw.shape
    k = len(params) - 1                      # number of strided layers
    assert k >= 1 and h % (2 ** k) == 0 and w % (2 ** k) == 0

    # Static per-layer geometry.
    dims = []
    hi, wi = h, w
    for l in range(k):
        co, ci = params[l].shape[0], params[l].shape[1]
        dims.append(_LayerDims(cin=ci, cout=co, ho=hi // 2, wo=wi // 2,
                               hh=(hi + 2) // 2, ww=(wi + 2) // 2))
        hi, wi = hi // 2, wi // 2
    co, ci = params[-1].shape[0], params[-1].shape[1]
    dims.append(_LayerDims(cin=ci, cout=co, ho=hi, wo=wi, hh=0, ww=0))
    dims = tuple(dims)
    cout_f, hf, wf = co, hi, wi

    # Input: pad by 1, space-to-depth x2 -> (N, 4*Hh, C, Ww).  Phases ride the leading
    # axis so every stride-2 tap inside the kernel is a static contiguous slice.
    hh0, ww0 = dims[0].hh, dims[0].ww
    xp = jnp.pad(x_nchw, ((0, 0), (0, 0), (1, 1), (1, 1)))
    xp = xp.reshape(n, cin0, hh0, 2, ww0, 2)
    xp = jnp.transpose(xp, (0, 3, 5, 2, 1, 4)).reshape(n, 4 * hh0, cin0, ww0)

    # Weights as (Cout, 9*Cin) with columns ordered (kh, kw, ci) to match im2col rows.
    w_mats = [jnp.transpose(p, (0, 2, 3, 1)).reshape(p.shape[0], 9 * p.shape[1])
              .astype(jnp.float32) for p in params]

    # VMEM scratch: phase-split inputs of strided layers 1..k-1, dense padded input of
    # the final layer, and one im2col buffer per layer.  Everything stays on-chip.
    scratch = []
    for l in range(1, k):
        d = dims[l]
        scratch.append(pltpu.VMEM((4 * d.hh, d.cin, d.ww), jnp.float32))
    scratch.append(pltpu.VMEM((dims[k].ho + 2, dims[k].cin, dims[k].wo + 2),
                              jnp.float32))
    for d in dims:
        scratch.append(pltpu.VMEM((9 * d.cin, d.ho * d.wo), jnp.float32))

    in_specs = [pl.BlockSpec((1, 4 * hh0, cin0, ww0), lambda i: (i, 0, 0, 0))]
    for wm in w_mats:
        in_specs.append(pl.BlockSpec(wm.shape, lambda i: (0, 0)))  # resident weights

    out = pl.pallas_call(
        functools.partial(_down_block_kernel, dims=dims),
        out_shape=jax.ShapeDtypeStruct((n, cout_f, hf * wf), x_nchw.dtype),
        grid=(n,),
        in_specs=in_specs,
        out_specs=pl.BlockSpec((1, cout_f, hf * wf), lambda i: (i, 0, 0)),
        scratch_shapes=scratch,
        compiler_params=pltpu.CompilerParams(dimension_semantics=("parallel",)),
    )(xp, *w_mats)

    return out.reshape(n, cout_f, hf, wf)   # flattened spatial -> NCHW (pure reshape)


down_block_forward = jax.jit(_down_block_pallas)


# --------------------------- params / reference ----------------------------- #
def init_down_block_params(key, scale, nFeat, in_channels, out_channels):
    """Deterministic weights, shapes identical to the PyTorch module (OIHW, no bias)."""
    n_down = int(np.log2(scale))
    shapes = [(nFeat, in_channels)] + [(nFeat, nFeat)] * (n_down - 1) \
             + [(out_channels, nFeat)]
    params = []
    for co, ci in shapes:
        key, sub = jax.random.split(key)
        bound = 1.0 / np.sqrt(ci * 9)
        params.append(jax.random.uniform(sub, (co, ci, 3, 3), jnp.float32, -bound, bound))
    return params


def _ref_forward(x_nchw, params):
    def conv(x, w, s):
        return jax.lax.conv_general_dilated(
            x, w, (s, s), ((1, 1), (1, 1)),
            dimension_numbers=("NCHW", "OIHW", "NCHW"))
    x = x_nchw
    for w in params[:-1]:
        x = conv(x, w, 2)
        x = jnp.where(x >= 0, x, x * NEG_SLOPE)
    return conv(x, params[-1], 1)


if __name__ == "__main__":
    key = jax.random.PRNGKey(0)
    k_x, k_p = jax.random.split(key)

    scale, nFeat, in_channels, out_channels = 4, 8, 4, 4
    x = jax.random.normal(k_x, (2, in_channels, 16, 16), jnp.float32)  # NCHW

    params = init_down_block_params(k_p, scale, nFeat, in_channels, out_channels)

    out = jax.block_until_ready(down_block_forward(x, params))
    ref = jax.block_until_ready(_ref_forward(x, params))

    assert out.shape == ref.shape == (2, out_channels, 16 // scale, 16 // scale), out.shape
    np.testing.assert_allclose(np.asarray(out), np.asarray(ref), rtol=1e-4, atol=1e-4)

    print("KERNEL_OK")
</pallas_src>

<mosaic_0001>
module attributes {stable_mosaic.version = 11 : i64} {
  func.func @_down_block_kernel(%arg0: i32, %arg1: memref<1x36x4x9xf32, #tpu.memory_space<vmem>>, %arg2: memref<8x36xf32, #tpu.memory_space<vmem>>, %arg3: memref<8x72xf32, #tpu.memory_space<vmem>>, %arg4: memref<4x72xf32, #tpu.memory_space<vmem>>, %arg5: memref<1x4x16xf32, #tpu.memory_space<vmem>>, %arg6: memref<20x8x5xf32, #tpu.memory_space<vmem>>, %arg7: memref<6x8x6xf32, #tpu.memory_space<vmem>>, %arg8: memref<36x64xf32, #tpu.memory_space<vmem>>, %arg9: memref<72x16xf32, #tpu.memory_space<vmem>>, %arg10: memref<72x16xf32, #tpu.memory_space<vmem>>) attributes {dimension_semantics = [#tpu.dimension_semantics<parallel>], iteration_bounds = array<i64: 2>, scalar_prefetch = 0 : i64, scratch_operands = 5 : i64, tpu.core_type = #tpu.core_type<tc>, window_params = [{transform_indices = @transform_0, window_bounds = array<i64: 1, 36, 4, 9>}, {pipeline_mode = #tpu.pipeline_mode<synchronous>, transform_indices = @transform_1, window_bounds = array<i64: 8, 36>}, {pipeline_mode = #tpu.pipeline_mode<synchronous>, transform_indices = @transform_2, window_bounds = array<i64: 8, 72>}, {pipeline_mode = #tpu.pipeline_mode<synchronous>, transform_indices = @transform_3, window_bounds = array<i64: 4, 72>}, {transform_indices = @transform_4, window_bounds = array<i64: 1, 4, 16>}]} {
    %c0 = arith.constant 0 : index
    %c0_0 = arith.constant 0 : index
    %c0_1 = arith.constant 0 : index
    %c0_2 = arith.constant 0 : index
    %0 = vector.load %arg1[%c0, %c0_0, %c0_1, %c0_2] : memref<1x36x4x9xf32, #tpu.memory_space<vmem>>, vector<1x1x4x8xf32>
    %1 = vector.shape_cast %0 : vector<1x1x4x8xf32> to vector<4x8xf32>
    %c0_3 = arith.constant 0 : index
    %c0_4 = arith.constant 0 : index
    %2 = vector.load %arg8[%c0_3, %c0_4] : memref<36x64xf32, #tpu.memory_space<vmem>>, vector<4x8xf32>
    tpu.vector_store %arg8[%c0_3, %c0_4], %1 {strides = array<i32>} : memref<36x64xf32, #tpu.memory_space<vmem>>, vector<4x8xf32>,
    %c0_5 = arith.constant 0 : index
    %c1 = arith.constant 1 : index
    %c0_6 = arith.constant 0 : index
    %c0_7 = arith.constant 0 : index
    %3 = vector.load %arg1[%c0_5, %c1, %c0_6, %c0_7] : memref<1x36x4x9xf32, #tpu.memory_space<vmem>>, vector<1x1x4x8xf32>
    %4 = vector.shape_cast %3 : vector<1x1x4x8xf32> to vector<4x8xf32>
    %c0_8 = arith.constant 0 : index
    %c8 = arith.constant 8 : index
    %5 = vector.load %arg8[%c0_8, %c8] : memref<36x64xf32, #tpu.memory_space<vmem>>, vector<4x8xf32>
    tpu.vector_store %arg8[%c0_8, %c8], %4 {strides = array<i32>} : memref<36x64xf32, #tpu.memory_space<vmem>>, vector<4x8xf32>,
    %c0_9 = arith.constant 0 : index
    %c2 = arith.constant 2 : index
    %c0_10 = arith.constant 0 : index
    %c0_11 = arith.constant 0 : index
    %6 = vector.load %arg1[%c0_9, %c2, %c0_10, %c0_11] : memref<1x36x4x9xf32, #tpu.memory_space<vmem>>, vector<1x1x4x8xf32>
    %7 = vector.shape_cast %6 : vector<1x1x4x8xf32> to vector<4x8xf32>
    %c0_12 = arith.constant 0 : index
    %c16 = arith.constant 16 : index
    %8 = vector.load %arg8[%c0_12, %c16] : memref<36x64xf32, #tpu.memory_space<vmem>>, vector<4x8xf32>
    tpu.vector_store %arg8[%c0_12, %c16], %7 {strides = array<i32>} : memref<36x64xf32, #tpu.memory_space<vmem>>, vector<4x8xf32>,
    %c0_13 = arith.constant 0 : index
    %c3 = arith.constant 3 : index
    %c0_14 = arith.constant 0 : index
    %c0_15 = arith.constant 0 : index
    %9 = vector.load %arg1[%c0_13, %c3, %c0_14, %c0_15] : memref<1x36x4x9xf32, #tpu.memory_space<vmem>>, vector<1x1x4x8xf32>
    %10 = vector.shape_cast %9 : vector<1x1x4x8xf32> to vector<4x8xf32>
    %c0_16 = arith.constant 0 : index
    %c24 = arith.constant 24 : index
    %11 = vector.load %arg8[%c0_16, %c24] : memref<36x64xf32, #tpu.memory_space<vmem>>, vector<4x8xf32>
    tpu.vector_store %arg8[%c0_16, %c24], %10 {strides = array<i32>} : memref<36x64xf32, #tpu.memory_space<vmem>>, vector<4x8xf32>,
    %c0_17 = arith.constant 0 : index
    %c4 = arith.constant 4 : index
    %c0_18 = arith.constant 0 : index
    %c0_19 = arith.constant 0 : index
    %12 = vector.load %arg1[%c0_17, %c4, %c0_18, %c0_19] : memref<1x36x4x9xf32, #tpu.memory_space<vmem>>, vector<1x1x4x8xf32>
    %13 = vector.shape_cast %12 : vector<1x1x4x8xf32> to vector<4x8xf32>
    %c0_20 = arith.constant 0 : index
    %c32 = arith.constant 32 : index
    %14 = vector.load %arg8[%c0_20, %c32] : memref<36x64xf32, #tpu.memory_space<vmem>>, vector<4x8xf32>
    tpu.vector_store %arg8[%c0_20, %c32], %13 {strides = array<i32>} : memref<36x64xf32, #tpu.memory_space<vmem>>, vector<4x8xf32>,
    %c0_21 = arith.constant 0 : index
    %c5 = arith.constant 5 : index
    %c0_22 = arith.constant 0 : index
    %c0_23 = arith.constant 0 : index
    %15 = vector.load %arg1[%c0_21, %c5, %c0_22, %c0_23] : memref<1x36x4x9xf32, #tpu.memory_space<vmem>>, vector<1x1x4x8xf32>
    %16 = vector.shape_cast %15 : vector<1x1x4x8xf32> to vector<4x8xf32>
    %c0_24 = arith.constant 0 : index
    %c40 = arith.constant 40 : index
    %17 = vector.load %arg8[%c0_24, %c40] : memref<36x64xf32, #tpu.memory_space<vmem>>, vector<4x8xf32>
    tpu.vector_store %arg8[%c0_24, %c40], %16 {strides = array<i32>} : memref<36x64xf32, #tpu.memory_space<vmem>>, vector<4x8xf32>,
    %c0_25 = arith.constant 0 : index
    %c6 = arith.constant 6 : index
    %c0_26 = arith.constant 0 : index
    %c0_27 = arith.constant 0 : index
    %18 = vector.load %arg1[%c0_25, %c6, %c0_26, %c0_27] : memref<1x36x4x9xf32, #tpu.memory_space<vmem>>, vector<1x1x4x8xf32>
    %19 = vector.shape_cast %18 : vector<1x1x4x8xf32> to vector<4x8xf32>
    %c0_28 = arith.constant 0 : index
    %c48 = arith.constant 48 : index
    %20 = vector.load %arg8[%c0_28, %c48] : memref<36x64xf32, #tpu.memory_space<vmem>>, vector<4x8xf32>
    tpu.vector_store %arg8[%c0_28, %c48], %19 {strides = array<i32>} : memref<36x64xf32, #tpu.memory_space<vmem>>, vector<4x8xf32>,
    %c0_29 = arith.constant 0 : index
    %c7 = arith.constant 7 : index
    %c0_30 = arith.constant 0 : index
    %c0_31 = arith.constant 0 : index
    %21 = vector.load %arg1[%c0_29, %c7, %c0_30, %c0_31] : memref<1x36x4x9xf32, #tpu.memory_space<vmem>>, vector<1x1x4x8xf32>
    %22 = vector.shape_cast %21 : vector<1x1x4x8xf32> to vector<4x8xf32>
    %c0_32 = arith.constant 0 : index
    %c56 = arith.constant 56 : index
    %23 = vector.load %arg8[%c0_32, %c56] : memref<36x64xf32, #tpu.memory_space<vmem>>, vector<4x8xf32>
    tpu.vector_store %arg8[%c0_32, %c56], %22 {strides = array<i32>} : memref<36x64xf32, #tpu.memory_space<vmem>>, vector<4x8xf32>,
    %c0_33 = arith.constant 0 : index
    %c9 = arith.constant 9 : index
    %c0_34 = arith.constant 0 : index
    %c0_35 = arith.constant 0 : index
    %24 = vector.load %arg1[%c0_33, %c9, %c0_34, %c0_35] : memref<1x36x4x9xf32, #tpu.memory_space<vmem>>, vector<1x1x4x8xf32>
    %25 = vector.shape_cast %24 : vector<1x1x4x8xf32> to vector<4x8xf32>
    %c4_36 = arith.constant 4 : index
    %c0_37 = arith.constant 0 : index
    %26 = vector.load %arg8[%c4_36, %c0_37] : memref<36x64xf32, #tpu.memory_space<vmem>>, vector<4x8xf32>
    tpu.vector_store %arg8[%c4_36, %c0_37], %25 {strides = array<i32>} : memref<36x64xf32, #tpu.memory_space<vmem>>, vector<4x8xf32>,
    %c0_38 = arith.constant 0 : index
    %c10 = arith.constant 10 : index
    %c0_39 = arith.constant 0 : index
    %c0_40 = arith.constant 0 : index
    %27 = vector.load %arg1[%c0_38, %c10, %c0_39, %c0_40] : memref<1x36x4x9xf32, #tpu.memory_space<vmem>>, vector<1x1x4x8xf32>
    %28 = vector.shape_cast %27 : vector<1x1x4x8xf32> to vector<4x8xf32>
    %c4_41 = arith.constant 4 : index
    %c8_42 = arith.constant 8 : index
    %29 = vector.load %arg8[%c4_41, %c8_42] : memref<36x64xf32, #tpu.memory_space<vmem>>, vector<4x8xf32>
    tpu.vector_store %arg8[%c4_41, %c8_42], %28 {strides = array<i32>} : memref<36x64xf32, #tpu.memory_space<vmem>>, vector<4x8xf32>,
    %c0_43 = arith.constant 0 : index
    %c11 = arith.constant 11 : index
    %c0_44 = arith.constant 0 : index
    %c0_45 = arith.constant 0 : index
    %30 = vector.load %arg1[%c0_43, %c11, %c0_44, %c0_45] : memref<1x36x4x9xf32, #tpu.memory_space<vmem>>, vector<1x1x4x8xf32>
    %31 = vector.shape_cast %30 : vector<1x1x4x8xf32> to vector<4x8xf32>
    %c4_46 = arith.constant 4 : index
    %c16_47 = arith.constant 16 : index
    %32 = vector.load %arg8[%c4_46, %c16_47] : memref<36x64xf32, #tpu.memory_space<vmem>>, vector<4x8xf32>
    tpu.vector_store %arg8[%c4_46, %c16_47], %31 {strides = array<i32>} : memref<36x64xf32, #tpu.memory_space<vmem>>, vector<4x8xf32>,
    %c0_48 = arith.constant 0 : index
    %c12 = arith.constant 12 : index
    %c0_49 = arith.constant 0 : index
    %c0_50 = arith.constant 0 : index
    %33 = vector.load %arg1[%c0_48, %c12, %c0_49, %c0_50] : memref<1x36x4x9xf32, #tpu.memory_space<vmem>>, vector<1x1x4x8xf32>
    %34 = vector.shape_cast %33 : vector<1x1x4x8xf32> to vector<4x8xf32>
    %c4_51 = arith.constant 4 : index
    %c24_52 = arith.constant 24 : index
    %35 = vector.load %arg8[%c4_51, %c24_52] : memref<36x64xf32, #tpu.memory_space<vmem>>, vector<4x8xf32>
    tpu.vector_store %arg8[%c4_51, %c24_52], %34 {strides = array<i32>} : memref<36x64xf32, #tpu.memory_space<vmem>>, vector<4x8xf32>,
    %c0_53 = arith.constant 0 : index
    %c13 = arith.constant 13 : index
    %c0_54 = arith.constant 0 : index
    %c0_55 = arith.constant 0 : index
    %36 = vector.load %arg1[%c0_53, %c13, %c0_54, %c0_55] : memref<1x36x4x9xf32, #tpu.memory_space<vmem>>, vector<1x1x4x8xf32>
    %37 = vector.shape_cast %36 : vector<1x1x4x8xf32> to vector<4x8xf32>
    %c4_56 = arith.constant 4 : index
    %c32_57 = arith.constant 32 : index
    %38 = vector.load %arg8[%c4_56, %c32_57] : memref<36x64xf32, #tpu.memory_space<vmem>>, vector<4x8xf32>
    tpu.vector_store %arg8[%c4_56, %c32_57], %37 {strides = array<i32>} : memref<36x64xf32, #tpu.memory_space<vmem>>, vector<4x8xf32>,
    %c0_58 = arith.constant 0 : index
    %c14 = arith.constant 14 : index
    %c0_59 = arith.constant 0 : index
    %c0_60 = arith.constant 0 : index
    %39 = vector.load %arg1[%c0_58, %c14, %c0_59, %c0_60] : memref<1x36x4x9xf32, #tpu.memory_space<vmem>>, vector<1x1x4x8xf32>
    %40 = vector.shape_cast %39 : vector<1x1x4x8xf32> to vector<4x8xf32>
    %c4_61 = arith.constant 4 : index
    %c40_62 = arith.constant 40 : index
    %41 = vector.load %arg8[%c4_61, %c40_62] : memref<36x64xf32, #tpu.memory_space<vmem>>, vector<4x8xf32>
    tpu.vector_store %arg8[%c4_61, %c40_62], %40 {strides = array<i32>} : memref<36x64xf32, #tpu.memory_space<vmem>>, vector<4x8xf32>,
    %c0_63 = arith.constant 0 : index
    %c15 = arith.constant 15 : index
    %c0_64 = arith.constant 0 : index
    %c0_65 = arith.constant 0 : index
    %42 = vector.load %arg1[%c0_63, %c15, %c0_64, %c0_65] : memref<1x36x4x9xf32, #tpu.memory_space<vmem>>, vector<1x1x4x8xf32>
    %43 = vector.shape_cast %42 : vector<1x1x4x8xf32> to vector<4x8xf32>
    %c4_66 = arith.constant 4 : index
    %c48_67 = arith.constant 48 : index
    %44 = vector.load %arg8[%c4_66, %c48_67] : memref<36x64xf32, #tpu.memory_space<vmem>>, vector<4x8xf32>
    tpu.vector_store %arg8[%c4_66, %c48_67], %43 {strides = array<i32>} : memref<36x64xf32, #tpu.memory_space<vmem>>, vector<4x8xf32>,
    %c0_68 = arith.constant 0 : index
    %c16_69 = arith.constant 16 : index
    %c0_70 = arith.constant 0 : index
    %c0_71 = arith.constant 0 : index
    %45 = vector.load %arg1[%c0_68, %c16_69, %c0_70, %c0_71] : memref<1x36x4x9xf32, #tpu.memory_space<vmem>>, vector<1x1x4x8xf32>
    %46 = vector.shape_cast %45 : vector<1x1x4x8xf32> to vector<4x8xf32>
    %c4_72 = arith.constant 4 : index
    %c56_73 = arith.constant 56 : index
    %47 = vector.load %arg8[%c4_72, %c56_73] : memref<36x64xf32, #tpu.memory_space<vmem>>, vector<4x8xf32>
    tpu.vector_store %arg8[%c4_72, %c56_73], %46 {strides = array<i32>} : memref<36x64xf32, #tpu.memory_space<vmem>>, vector<4x8xf32>,
    %c0_74 = arith.constant 0 : index
    %c0_75 = arith.constant 0 : index
    %c0_76 = arith.constant 0 : index
    %c1_77 = arith.constant 1 : index
    %48 = vector.load %arg1[%c0_74, %c0_75, %c0_76, %c1_77] : memref<1x36x4x9xf32, #tpu.memory_space<vmem>>, vector<1x1x4x8xf32>
    %49 = vector.shape_cast %48 : vector<1x1x4x8xf32> to vector<4x8xf32>
    %c8_78 = arith.constant 8 : index
    %c0_79 = arith.constant 0 : index
    %50 = vector.load %arg8[%c8_78, %c0_79] : memref<36x64xf32, #tpu.memory_space<vmem>>, vector<4x8xf32>
    tpu.vector_store %arg8[%c8_78, %c0_79], %49 {strides = array<i32>} : memref<36x64xf32, #tpu.memory_space<vmem>>, vector<4x8xf32>,
    %c0_80 = arith.constant 0 : index
    %c1_81 = arith.constant 1 : index
    %c0_82 = arith.constant 0 : index
    %c1_83 = arith.constant 1 : index
    %51 = vector.load %arg1[%c0_80, %c1_81, %c0_82, %c1_83] : memref<1x36x4x9xf32, #tpu.memory_space<vmem>>, vector<1x1x4x8xf32>
    %52 = vector.shape_cast %51 : vector<1x1x4x8xf32> to vector<4x8xf32>
    %c8_84 = arith.constant 8 : index
    %c8_85 = arith.constant 8 : index
    %53 = vector.load %arg8[%c8_84, %c8_85] : memref<36x64xf32, #tpu.memory_space<vmem>>, vector<4x8xf32>
    tpu.vector_store %arg8[%c8_84, %c8_85], %52 {strides = array<i32>} : memref<36x64xf32, #tpu.memory_space<vmem>>, vector<4x8xf32>,
    %c0_86 = arith.constant 0 : index
    %c2_87 = arith.constant 2 : index
    %c0_88 = arith.constant 0 : index
    %c1_89 = arith.constant 1 : index
    %54 = vector.load %arg1[%c0_86, %c2_87, %c0_88, %c1_89] : memref<1x36x4x9xf32, #tpu.memory_space<vmem>>, vector<1x1x4x8xf32>
    %55 = vector.shape_cast %54 : vector<1x1x4x8xf32> to vector<4x8xf32>
    %c8_90 = arith.constant 8 : index
    %c16_91 = arith.constant 16 : index
    %56 = vector.load %arg8[%c8_90, %c16_91] : memref<36x64xf32, #tpu.memory_space<vmem>>, vector<4x8xf32>
    tpu.vector_store %arg8[%c8_90, %c16_91], %55 {strides = array<i32>} : memref<36x64xf32, #tpu.memory_space<vmem>>, vector<4x8xf32>,
    %c0_92 = arith.constant 0 : index
    %c3_93 = arith.constant 3 : index
    %c0_94 = arith.constant 0 : index
    %c1_95 = arith.constant 1 : index
    %57 = vector.load %arg1[%c0_92, %c3_93, %c0_94, %c1_95] : memref<1x36x4x9xf32, #tpu.memory_space<vmem>>, vector<1x1x4x8xf32>
    %58 = vector.shape_cast %57 : vector<1x1x4x8xf32> to vector<4x8xf32>
    %c8_96 = arith.constant 8 : index
    %c24_97 = arith.constant 24 : index
    %59 = vector.load %arg8[%c8_96, %c24_97] : memref<36x64xf32, #tpu.memory_space<vmem>>, vector<4x8xf32>
    tpu.vector_store %arg8[%c8_96, %c24_97], %58 {strides = array<i32>} : memref<36x64xf32, #tpu.memory_space<vmem>>, vector<4x8xf32>,
    %c0_98 = arith.constant 0 : index
    %c4_99 = arith.constant 4 : index
    %c0_100 = arith.constant 0 : index
    %c1_101 = arith.constant 1 : index
    %60 = vector.load %arg1[%c0_98, %c4_99, %c0_100, %c1_101] : memref<1x36x4x9xf32, #tpu.memory_space<vmem>>, vector<1x1x4x8xf32>
    %61 = vector.shape_cast %60 : vector<1x1x4x8xf32> to vector<4x8xf32>
    %c8_102 = arith.constant 8 : index
    %c32_103 = arith.constant 32 : index
    %62 = vector.load %arg8[%c8_102, %c32_103] : memref<36x64xf32, #tpu.memory_space<vmem>>, vector<4x8xf32>
    tpu.vector_store %arg8[%c8_102, %c32_103], %61 {strides = array<i32>} : memref<36x64xf32, #tpu.memory_space<vmem>>, vector<4x8xf32>,
    %c0_104 = arith.constant 0 : index
    %c5_105 = arith.constant 5 : index
    %c0_106 = arith.constant 0 : index
    %c1_107 = arith.constant 1 : index
    %63 = vector.load %arg1[%c0_104, %c5_105, %c0_106, %c1_107] : memref<1x36x4x9xf32, #tpu.memory_space<vmem>>, vector<1x1x4x8xf32>
    %64 = vector.shape_cast %63 : vector<1x1x4x8xf32> to vector<4x8xf32>
    %c8_108 = arith.constant 8 : index
    %c40_109 = arith.constant 40 : index
    %65 = vector.load %arg8[%c8_108, %c40_109] : memref<36x64xf32, #tpu.memory_space<vmem>>, vector<4x8xf32>
    tpu.vector_store %arg8[%c8_108, %c40_109], %64 {strides = array<i32>} : memref<36x64xf32, #tpu.memory_space<vmem>>, vector<4x8xf32>,
    %c0_110 = arith.constant 0 : index
    %c6_111 = arith.constant 6 : index
    %c0_112 = arith.constant 0 : index
    %c1_113 = arith.constant 1 : index
    %66 = vector.load %arg1[%c0_110, %c6_111, %c0_112, %c1_113] : memref<1x36x4x9xf32, #tpu.memory_space<vmem>>, vector<1x1x4x8xf32>
    %67 = vector.shape_cast %66 : vector<1x1x4x8xf32> to vector<4x8xf32>
    %c8_114 = arith.constant 8 : index
    %c48_115 = arith.constant 48 : index
    %68 = vector.load %arg8[%c8_114, %c48_115] : memref<36x64xf32, #tpu.memory_space<vmem>>, vector<4x8xf32>
    tpu.vector_store %arg8[%c8_114, %c48_115], %67 {strides = array<i32>} : memref<36x64xf32, #tpu.memory_space<vmem>>, vector<4x8xf32>,
    %c0_116 = arith.constant 0 : index
    %c7_117 = arith.constant 7 : index
    %c0_118 = arith.constant 0 : index
    %c1_119 = arith.constant 1 : index
    %69 = vector.load %arg1[%c0_116, %c7_117, %c0_118, %c1_119] : memref<1x36x4x9xf32, #tpu.memory_space<vmem>>, vector<1x1x4x8xf32>
    %70 = vector.shape_cast %69 : vector<1x1x4x8xf32> to vector<4x8xf32>
    %c8_120 = arith.constant 8 : index
    %c56_121 = arith.constant 56 : index
    %71 = vector.load %arg8[%c8_120, %c56_121] : memref<36x64xf32, #tpu.memory_space<vmem>>, vector<4x8xf32>
    tpu.vector_store %arg8[%c8_120, %c56_121], %70 {strides = array<i32>} : memref<36x64xf32, #tpu.memory_space<vmem>>, vector<4x8xf32>,
    %c0_122 = arith.constant 0 : index
    %c18 = arith.constant 18 : index
    %c0_123 = arith.constant 0 : index
    %c0_124 = arith.constant 0 : index
    %72 = vector.load %arg1[%c0_122, %c18, %c0_123, %c0_124] : memref<1x36x4x9xf32, #tpu.memory_space<vmem>>, vector<1x1x4x8xf32>
    %73 = vector.shape_cast %72 : vector<1x1x4x8xf32> to vector<4x8xf32>
    %c12_125 = arith.constant 12 : index
    %c0_126 = arith.constant 0 : index
    %74 = vector.load %arg8[%c12_125, %c0_126] : memref<36x64xf32, #tpu.memory_space<vmem>>, vector<4x8xf32>
    tpu.vector_store %arg8[%c12_125, %c0_126], %73 {strides = array<i32>} : memref<36x64xf32, #tpu.memory_space<vmem>>, vector<4x8xf32>,
    %c0_127 = arith.constant 0 : index
    %c19 = arith.constant 19 : index
    %c0_128 = arith.constant 0 : index
    %c0_129 = arith.constant 0 : index
    %75 = vector.load %arg1[%c0_127, %c19, %c0_128, %c0_129] : memref<1x36x4x9xf32, #tpu.memory_space<vmem>>, vector<1x1x4x8xf32>
    %76 = vector.shape_cast %75 : vector<1x1x4x8xf32> to vector<4x8xf32>
    %c12_130 = arith.constant 12 : index
    %c8_131 = arith.constant 8 : index
    %77 = vector.load %arg8[%c12_130, %c8_131] : memref<36x64xf32, #tpu.memory_space<vmem>>, vector<4x8xf32>
    tpu.vector_store %arg8[%c12_130, %c8_131], %76 {strides = array<i32>} : memref<36x64xf32, #tpu.memory_space<vmem>>, vector<4x8xf32>,
    %c0_132 = arith.constant 0 : index
    %c20 = arith.constant 20 : index
    %c0_133 = arith.constant 0 : index
    %c0_134 = arith.constant 0 : index
    %78 = vector.load %arg1[%c0_132, %c20, %c0_133, %c0_134] : memref<1x36x4x9xf32, #tpu.memory_space<vmem>>, vector<1x1x4x8xf32>
    %79 = vector.shape_cast %78 : vector<1x1x4x8xf32> to vector<4x8xf32>
    %c12_135 = arith.constant 12 : index
    %c16_136 = arith.constant 16 : index
    %80 = vector.load %arg8[%c12_135, %c16_136] : memref<36x64xf32, #tpu.memory_space<vmem>>, vector<4x8xf32>
    tpu.vector_store %arg8[%c12_135, %c16_136], %79 {strides = array<i32>} : memref<36x64xf32, #tpu.memory_space<vmem>>, vector<4x8xf32>,
    %c0_137 = arith.constant 0 : index
    %c21 = arith.constant 21 : index
    %c0_138 = arith.constant 0 : index
    %c0_139 = arith.constant 0 : index
    %81 = vector.load %arg1[%c0_137, %c21, %c0_138, %c0_139] : memref<1x36x4x9xf32, #tpu.memory_space<vmem>>, vector<1x1x4x8xf32>
    %82 = vector.shape_cast %81 : vector<1x1x4x8xf32> to vector<4x8xf32>
    %c12_140 = arith.constant 12 : index
    %c24_141 = arith.constant 24 : index
    %83 = vector.load %arg8[%c12_140, %c24_141] : memref<36x64xf32, #tpu.memory_space<vmem>>, vector<4x8xf32>
    tpu.vector_store %arg8[%c12_140, %c24_141], %82 {strides = array<i32>} : memref<36x64xf32, #tpu.memory_space<vmem>>, vector<4x8xf32>,
    %c0_142 = arith.constant 0 : index
    %c22 = arith.constant 22 : index
    %c0_143 = arith.constant 0 : index
    %c0_144 = arith.constant 0 : index
    %84 = vector.load %arg1[%c0_142, %c22, %c0_143, %c0_144] : memref<1x36x4x9xf32, #tpu.memory_space<vmem>>, vector<1x1x4x8xf32>
    %85 = vector.shape_cast %84 : vector<1x1x4x8xf32> to vector<4x8xf32>
    %c12_145 = arith.constant 12 : index
    %c32_146 = arith.constant 32 : index
    %86 = vector.load %arg8[%c12_145, %c32_146] : memref<36x64xf32, #tpu.memory_space<vmem>>, vector<4x8xf32>
    tpu.vector_store %arg8[%c12_145, %c32_146], %85 {strides = array<i32>} : memref<36x64xf32, #tpu.memory_space<vmem>>, vector<4x8xf32>,
    %c0_147 = arith.constant 0 : index
    %c23 = arith.constant 23 : index
    %c0_148 = arith.constant 0 : index
    %c0_149 = arith.constant 0 : index
    %87 = vector.load %arg1[%c0_147, %c23, %c0_148, %c0_149] : memref<1x36x4x9xf32, #tpu.memory_space<vmem>>, vector<1x1x4x8xf32>
    %88 = vector.shape_cast %87 : vector<1x1x4x8xf32> to vector<4x8xf32>
    %c12_150 = arith.constant 12 : index
    %c40_151 = arith.constant 40 : index
    %89 = vector.load %arg8[%c12_150, %c40_151] : memref<36x64xf32, #tpu.memory_space<vmem>>, vector<4x8xf32>
    tpu.vector_store %arg8[%c12_150, %c40_151], %88 {strides = array<i32>} : memref<36x64xf32, #tpu.memory_space<vmem>>, vector<4x8xf32>,
    %c0_152 = arith.constant 0 : index
    %c24_153 = arith.constant 24 : index
    %c0_154 = arith.constant 0 : index
    %c0_155 = arith.constant 0 : index
    %90 = vector.load %arg1[%c0_152, %c24_153, %c0_154, %c0_155] : memref<1x36x4x9xf32, #tpu.memory_space<vmem>>, vector<1x1x4x8xf32>
    %91 = vector.shape_cast %90 : vector<1x1x4x8xf32> to vector<4x8xf32>
    %c12_156 = arith.constant 12 : index
    %c48_157 = arith.constant 48 : index
    %92 = vector.load %arg8[%c12_156, %c48_157] : memref<36x64xf32, #tpu.memory_space<vmem>>, vector<4x8xf32>
    tpu.vector_store %arg8[%c12_156, %c48_157], %91 {strides = array<i32>} : memref<36x64xf32, #tpu.memory_space<vmem>>, vector<4x8xf32>,
    %c0_158 = arith.constant 0 : index
    %c25 = arith.constant 25 : index
    %c0_159 = arith.constant 0 : index
    %c0_160 = arith.constant 0 : index
    %93 = vector.load %arg1[%c0_158, %c25, %c0_159, %c0_160] : memref<1x36x4x9xf32, #tpu.memory_space<vmem>>, vector<1x1x4x8xf32>
    %94 = vector.shape_cast %93 : vector<1x1x4x8xf32> to vector<4x8xf32>
    %c12_161 = arith.constant 12 : index
    %c56_162 = arith.constant 56 : index
    %95 = vector.load %arg8[%c12_161, %c56_162] : memref<36x64xf32, #tpu.memory_space<vmem>>, vector<4x8xf32>
    tpu.vector_store %arg8[%c12_161, %c56_162], %94 {strides = array<i32>} : memref<36x64xf32, #tpu.memory_space<vmem>>, vector<4x8xf32>,
    %c0_163 = arith.constant 0 : index
    %c27 = arith.constant 27 : index
    %c0_164 = arith.constant 0 : index
    %c0_165 = arith.constant 0 : index
    %96 = vector.load %arg1[%c0_163, %c27, %c0_164, %c0_165] : memref<1x36x4x9xf32, #tpu.memory_space<vmem>>, vector<1x1x4x8xf32>
    %97 = vector.shape_cast %96 : vector<1x1x4x8xf32> to vector<4x8xf32>
    %c16_166 = arith.constant 16 : index
    %c0_167 = arith.constant 0 : index
    %98 = vector.load %arg8[%c16_166, %c0_167] : memref<36x64xf32, #tpu.memory_space<vmem>>, vector<4x8xf32>
    tpu.vector_store %arg8[%c16_166, %c0_167], %97 {strides = array<i32>} : memref<36x64xf32, #tpu.memory_space<vmem>>, vector<4x8xf32>,
    %c0_168 = arith.constant 0 : index
    %c28 = arith.constant 28 : index
    %c0_169 = arith.constant 0 : index
    %c0_170 = arith.constant 0 : index
    %99 = vector.load %arg1[%c0_168, %c28, %c0_169, %c0_170] : memref<1x36x4x9xf32, #tpu.memory_space<vmem>>, vector<1x1x4x8xf32>
    %100 = vector.shape_cast %99 : vector<1x1x4x8xf32> to vector<4x8xf32>
    %c16_171 = arith.constant 16 : index
    %c8_172 = arith.constant 8 : index
    %101 = vector.load %arg8[%c16_171, %c8_172] : memref<36x64xf32, #tpu.memory_space<vmem>>, vector<4x8xf32>
    tpu.vector_store %arg8[%c16_171, %c8_172], %100 {strides = array<i32>} : memref<36x64xf32, #tpu.memory_space<vmem>>, vector<4x8xf32>,
    %c0_173 = arith.constant 0 : index
    %c29 = arith.constant 29 : index
    %c0_174 = arith.constant 0 : index
    %c0_175 = arith.constant 0 : index
    %102 = vector.load %arg1[%c0_173, %c29, %c0_174, %c0_175] : memref<1x36x4x9xf32, #tpu.memory_space<vmem>>, vector<1x1x4x8xf32>
    %103 = vector.shape_cast %102 : vector<1x1x4x8xf32> to vector<4x8xf32>
    %c16_176 = arith.constant 16 : index
    %c16_177 = arith.constant 16 : index
    %104 = vector.load %arg8[%c16_176, %c16_177] : memref<36x64xf32, #tpu.memory_space<vmem>>, vector<4x8xf32>
    tpu.vector_store %arg8[%c16_176, %c16_177], %103 {strides = array<i32>} : memref<36x64xf32, #tpu.memory_space<vmem>>, vector<4x8xf32>,
    %c0_178 = arith.constant 0 : index
    %c30 = arith.constant 30 : index
    %c0_179 = arith.constant 0 : index
    %c0_180 = arith.constant 0 : index
    %105 = vector.load %arg1[%c0_178, %c30, %c0_179, %c0_180] : memref<1x36x4x9xf32, #tpu.memory_space<vmem>>, vector<1x1x4x8xf32>
    %106 = vector.shape_cast %105 : vector<1x1x4x8xf32> to vector<4x8xf32>
    %c16_181 = arith.constant 16 : index
    %c24_182 = arith.constant 24 : index
    %107 = vector.load %arg8[%c16_181, %c24_182] : memref<36x64xf32, #tpu.memory_space<vmem>>, vector<4x8xf32>
    tpu.vector_store %arg8[%c16_181, %c24_182], %106 {strides = array<i32>} : memref<36x64xf32, #tpu.memory_space<vmem>>, vector<4x8xf32>,
    %c0_183 = arith.constant 0 : index
    %c31 = arith.constant 31 : index
    %c0_184 = arith.constant 0 : index
    %c0_185 = arith.constant 0 : index
    %108 = vector.load %arg1[%c0_183, %c31, %c0_184, %c0_185] : memref<1x36x4x9xf32, #tpu.memory_space<vmem>>, vector<1x1x4x8xf32>
    %109 = vector.shape_cast %108 : vector<1x1x4x8xf32> to vector<4x8xf32>
    %c16_186 = arith.constant 16 : index
    %c32_187 = arith.constant 32 : index
    %110 = vector.load %arg8[%c16_186, %c32_187] : memref<36x64xf32, #tpu.memory_space<vmem>>, vector<4x8xf32>
    tpu.vector_store %arg8[%c16_186, %c32_187], %109 {strides = array<i32>} : memref<36x64xf32, #tpu.memory_space<vmem>>, vector<4x8xf32>,
    %c0_188 = arith.constant 0 : index
    %c32_189 = arith.constant 32 : index
    %c0_190 = arith.constant 0 : index
    %c0_191 = arith.constant 0 : index
    %111 = vector.load %arg1[%c0_188, %c32_189, %c0_190, %c0_191] : memref<1x36x4x9xf32, #tpu.memory_space<vmem>>, vector<1x1x4x8xf32>
    %112 = vector.shape_cast %111 : vector<1x1x4x8xf32> to vector<4x8xf32>
    %c16_192 = arith.constant 16 : index
    %c40_193 = arith.constant 40 : index
    %113 = vector.load %arg8[%c16_192, %c40_193] : memref<36x64xf32, #tpu.memory_space<vmem>>, vector<4x8xf32>
    tpu.vector_store %arg8[%c16_192, %c40_193], %112 {strides = array<i32>} : memref<36x64xf32, #tpu.memory_space<vmem>>, vector<4x8xf32>,
    %c0_194 = arith.constant 0 : index
    %c33 = arith.constant 33 : index
    %c0_195 = arith.constant 0 : index
    %c0_196 = arith.constant 0 : index
    %114 = vector.load %arg1[%c0_194, %c33, %c0_195, %c0_196] : memref<1x36x4x9xf32, #tpu.memory_space<vmem>>, vector<1x1x4x8xf32>
    %115 = vector.shape_cast %114 : vector<1x1x4x8xf32> to vector<4x8xf32>
    %c16_197 = arith.constant 16 : index
    %c48_198 = arith.constant 48 : index
    %116 = vector.load %arg8[%c16_197, %c48_198] : memref<36x64xf32, #tpu.memory_space<vmem>>, vector<4x8xf32>
    tpu.vector_store %arg8[%c16_197, %c48_198], %115 {strides = array<i32>} : memref<36x64xf32, #tpu.memory_space<vmem>>, vector<4x8xf32>,
    %c0_199 = arith.constant 0 : index
    %c34 = arith.constant 34 : index
    %c0_200 = arith.constant 0 : index
    %c0_201 = arith.constant 0 : index
    %117 = vector.load %arg1[%c0_199, %c34, %c0_200, %c0_201] : memref<1x36x4x9xf32, #tpu.memory_space<vmem>>, vector<1x1x4x8xf32>
    %118 = vector.shape_cast %117 : vector<1x1x4x8xf32> to vector<4x8xf32>
    %c16_202 = arith.constant 16 : index
    %c56_203 = arith.constant 56 : index
    %119 = vector.load %arg8[%c16_202, %c56_203] : memref<36x64xf32, #tpu.memory_space<vmem>>, vector<4x8xf32>
    tpu.vector_store %arg8[%c16_202, %c56_203], %118 {strides = array<i32>} : memref<36x64xf32, #tpu.memory_space<vmem>>, vector<4x8xf32>,
    %c0_204 = arith.constant 0 : index
    %c18_205 = arith.constant 18 : index
    %c0_206 = arith.constant 0 : index
    %c1_207 = arith.constant 1 : index
    %120 = vector.load %arg1[%c0_204, %c18_205, %c0_206, %c1_207] : memref<1x36x4x9xf32, #tpu.memory_space<vmem>>, vector<1x1x4x8xf32>
    %121 = vector.shape_cast %120 : vector<1x1x4x8xf32> to vector<4x8xf32>
    %c20_208 = arith.constant 20 : index
    %c0_209 = arith.constant 0 : index
    %122 = vector.load %arg8[%c20_208, %c0_209] : memref<36x64xf32, #tpu.memory_space<vmem>>, vector<4x8xf32>
    tpu.vector_store %arg8[%c20_208, %c0_209], %121 {strides = array<i32>} : memref<36x64xf32, #tpu.memory_space<vmem>>, vector<4x8xf32>,
    %c0_210 = arith.constant 0 : index
    %c19_211 = arith.constant 19 : index
    %c0_212 = arith.constant 0 : index
    %c1_213 = arith.constant 1 : index
    %123 = vector.load %arg1[%c0_210, %c19_211, %c0_212, %c1_213] : memref<1x36x4x9xf32, #tpu.memory_space<vmem>>, vector<1x1x4x8xf32>
    %124 = vector.shape_cast %123 : vector<1x1x4x8xf32> to vector<4x8xf32>
    %c20_214 = arith.constant 20 : index
    %c8_215 = arith.constant 8 : index
    %125 = vector.load %arg8[%c20_214, %c8_215] : memref<36x64xf32, #tpu.memory_space<vmem>>, vector<4x8xf32>
    tpu.vector_store %arg8[%c20_214, %c8_215], %124 {strides = array<i32>} : memref<36x64xf32, #tpu.memory_space<vmem>>, vector<4x8xf32>,
    %c0_216 = arith.constant 0 : index
    %c20_217 = arith.constant 20 : index
    %c0_218 = arith.constant 0 : index
    %c1_219 = arith.constant 1 : index
    %126 = vector.load %arg1[%c0_216, %c20_217, %c0_218, %c1_219] : memref<1x36x4x9xf32, #tpu.memory_space<vmem>>, vector<1x1x4x8xf32>
    %127 = vector.shape_cast %126 : vector<1x1x4x8xf32> to vector<4x8xf32>
    %c20_220 = arith.constant 20 : index
    %c16_221 = arith.constant 16 : index
    %128 = vector.load %arg8[%c20_220, %c16_221] : memref<36x64xf32, #tpu.memory_space<vmem>>, vector<4x8xf32>
    tpu.vector_store %arg8[%c20_220, %c16_221], %127 {strides = array<i32>} : memref<36x64xf32, #tpu.memory_space<vmem>>, vector<4x8xf32>,
    %c0_222 = arith.constant 0 : index
    %c21_223 = arith.constant 21 : index
    %c0_224 = arith.constant 0 : index
    %c1_225 = arith.constant 1 : index
    %129 = vector.load %arg1[%c0_222, %c21_223, %c0_224, %c1_225] : memref<1x36x4x9xf32, #tpu.memory_space<vmem>>, vector<1x1x4x8xf32>
    %130 = vector.shape_cast %129 : vector<1x1x4x8xf32> to vector<4x8xf32>
    %c20_226 = arith.constant 20 : index
    %c24_227 = arith.constant 24 : index
    %131 = vector.load %arg8[%c20_226, %c24_227] : memref<36x64xf32, #tpu.memory_space<vmem>>, vector<4x8xf32>
    tpu.vector_store %arg8[%c20_226, %c24_227], %130 {strides = array<i32>} : memref<36x64xf32, #tpu.memory_space<vmem>>, vector<4x8xf32>,
    %c0_228 = arith.constant 0 : index
    %c22_229 = arith.constant 22 : index
    %c0_230 = arith.constant 0 : index
    %c1_231 = arith.constant 1 : index
    %132 = vector.load %arg1[%c0_228, %c22_229, %c0_230, %c1_231] : memref<1x36x4x9xf32, #tpu.memory_space<vmem>>, vector<1x1x4x8xf32>
    %133 = vector.shape_cast %132 : vector<1x1x4x8xf32> to vector<4x8xf32>
    %c20_232 = arith.constant 20 : index
    %c32_233 = arith.constant 32 : index
    %134 = vector.load %arg8[%c20_232, %c32_233] : memref<36x64xf32, #tpu.memory_space<vmem>>, vector<4x8xf32>
    tpu.vector_store %arg8[%c20_232, %c32_233], %133 {strides = array<i32>} : memref<36x64xf32, #tpu.memory_space<vmem>>, vector<4x8xf32>,
    %c0_234 = arith.constant 0 : index
    %c23_235 = arith.constant 23 : index
    %c0_236 = arith.constant 0 : index
    %c1_237 = arith.constant 1 : index
    %135 = vector.load %arg1[%c0_234, %c23_235, %c0_236, %c1_237] : memref<1x36x4x9xf32, #tpu.memory_space<vmem>>, vector<1x1x4x8xf32>
    %136 = vector.shape_cast %135 : vector<1x1x4x8xf32> to vector<4x8xf32>
    %c20_238 = arith.constant 20 : index
    %c40_239 = arith.constant 40 : index
    %137 = vector.load %arg8[%c20_238, %c40_239] : memref<36x64xf32, #tpu.memory_space<vmem>>, vector<4x8xf32>
    tpu.vector_store %arg8[%c20_238, %c40_239], %136 {strides = array<i32>} : memref<36x64xf32, #tpu.memory_space<vmem>>, vector<4x8xf32>,
    %c0_240 = arith.constant 0 : index
    %c24_241 = arith.constant 24 : index
    %c0_242 = arith.constant 0 : index
    %c1_243 = arith.constant 1 : index
    %138 = vector.load %arg1[%c0_240, %c24_241, %c0_242, %c1_243] : memref<1x36x4x9xf32, #tpu.memory_space<vmem>>, vector<1x1x4x8xf32>
    %139 = vector.shape_cast %138 : vector<1x1x4x8xf32> to vector<4x8xf32>
    %c20_244 = arith.constant 20 : index
    %c48_245 = arith.constant 48 : index
    %140 = vector.load %arg8[%c20_244, %c48_245] : memref<36x64xf32, #tpu.memory_space<vmem>>, vector<4x8xf32>
    tpu.vector_store %arg8[%c20_244, %c48_245], %139 {strides = array<i32>} : memref<36x64xf32, #tpu.memory_space<vmem>>, vector<4x8xf32>,
    %c0_246 = arith.constant 0 : index
    %c25_247 = arith.constant 25 : index
    %c0_248 = arith.constant 0 : index
    %c1_249 = arith.constant 1 : index
    %141 = vector.load %arg1[%c0_246, %c25_247, %c0_248, %c1_249] : memref<1x36x4x9xf32, #tpu.memory_space<vmem>>, vector<1x1x4x8xf32>
    %142 = vector.shape_cast %141 : vector<1x1x4x8xf32> to vector<4x8xf32>
    %c20_250 = arith.constant 20 : index
    %c56_251 = arith.constant 56 : index
    %143 = vector.load %arg8[%c20_250, %c56_251] : memref<36x64xf32, #tpu.memory_space<vmem>>, vector<4x8xf32>
    tpu.vector_store %arg8[%c20_250, %c56_251], %142 {strides = array<i32>} : memref<36x64xf32, #tpu.memory_space<vmem>>, vector<4x8xf32>,
    %c0_252 = arith.constant 0 : index
    %c1_253 = arith.constant 1 : index
    %c0_254 = arith.constant 0 : index
    %c0_255 = arith.constant 0 : index
    %144 = vector.load %arg1[%c0_252, %c1_253, %c0_254, %c0_255] : memref<1x36x4x9xf32, #tpu.memory_space<vmem>>, vector<1x1x4x8xf32>
    %145 = vector.shape_cast %144 : vector<1x1x4x8xf32> to vector<4x8xf32>
    %c24_256 = arith.constant 24 : index
    %c0_257 = arith.constant 0 : index
    %146 = vector.load %arg8[%c24_256, %c0_257] : memref<36x64xf32, #tpu.memory_space<vmem>>, vector<4x8xf32>
    tpu.vector_store %arg8[%c24_256, %c0_257], %145 {strides = array<i32>} : memref<36x64xf32, #tpu.memory_space<vmem>>, vector<4x8xf32>,
    %c0_258 = arith.constant 0 : index
    %c2_259 = arith.constant 2 : index
    %c0_260 = arith.constant 0 : index
    %c0_261 = arith.constant 0 : index
    %147 = vector.load %arg1[%c0_258, %c2_259, %c0_260, %c0_261] : memref<1x36x4x9xf32, #tpu.memory_space<vmem>>, vector<1x1x4x8xf32>
    %148 = vector.shape_cast %147 : vector<1x1x4x8xf32> to vector<4x8xf32>
    %c24_262 = arith.constant 24 : index
    %c8_263 = arith.constant 8 : index
    %149 = vector.load %arg8[%c24_262, %c8_263] : memref<36x64xf32, #tpu.memory_space<vmem>>, vector<4x8xf32>
    tpu.vector_store %arg8[%c24_262, %c8_263], %148 {strides = array<i32>} : memref<36x64xf32, #tpu.memory_space<vmem>>, vector<4x8xf32>,
    %c0_264 = arith.constant 0 : index
    %c3_265 = arith.constant 3 : index
    %c0_266 = arith.constant 0 : index
    %c0_267 = arith.constant 0 : index
    %150 = vector.load %arg1[%c0_264, %c3_265, %c0_266, %c0_267] : memref<1x36x4x9xf32, #tpu.memory_space<vmem>>, vector<1x1x4x8xf32>
    %151 = vector.shape_cast %150 : vector<1x1x4x8xf32> to vector<4x8xf32>
    %c24_268 = arith.constant 24 : index
    %c16_269 = arith.constant 16 : index
    %152 = vector.load %arg8[%c24_268, %c16_269] : memref<36x64xf32, #tpu.memory_space<vmem>>, vector<4x8xf32>
    tpu.vector_store %arg8[%c24_268, %c16_269], %151 {strides = array<i32>} : memref<36x64xf32, #tpu.memory_space<vmem>>, vector<4x8xf32>,
    %c0_270 = arith.constant 0 : index
    %c4_271 = arith.constant 4 : index
    %c0_272 = arith.constant 0 : index
    %c0_273 = arith.constant 0 : index
    %153 = vector.load %arg1[%c0_270, %c4_271, %c0_272, %c0_273] : memref<1x36x4x9xf32, #tpu.memory_space<vmem>>, vector<1x1x4x8xf32>
    %154 = vector.shape_cast %153 : vector<1x1x4x8xf32> to vector<4x8xf32>
    %c24_274 = arith.constant 24 : index
    %c24_275 = arith.constant 24 : index
    %155 = vector.load %arg8[%c24_274, %c24_275] : memref<36x64xf32, #tpu.memory_space<vmem>>, vector<4x8xf32>
    tpu.vector_store %arg8[%c24_274, %c24_275], %154 {strides = array<i32>} : memref<36x64xf32, #tpu.memory_space<vmem>>, vector<4x8xf32>,
    %c0_276 = arith.constant 0 : index
    %c5_277 = arith.constant 5 : index
    %c0_278 = arith.constant 0 : index
    %c0_279 = arith.constant 0 : index
    %156 = vector.load %arg1[%c0_276, %c5_277, %c0_278, %c0_279] : memref<1x36x4x9xf32, #tpu.memory_space<vmem>>, vector<1x1x4x8xf32>
    %157 = vector.shape_cast %156 : vector<1x1x4x8xf32> to vector<4x8xf32>
    %c24_280 = arith.constant 24 : index
    %c32_281 = arith.constant 32 : index
    %158 = vector.load %arg8[%c24_280, %c32_281] : memref<36x64xf32, #tpu.memory_space<vmem>>, vector<4x8xf32>
    tpu.vector_store %arg8[%c24_280, %c32_281], %157 {strides = array<i32>} : memref<36x64xf32, #tpu.memory_space<vmem>>, vector<4x8xf32>,
    %c0_282 = arith.constant 0 : index
    %c6_283 = arith.constant 6 : index
    %c0_284 = arith.constant 0 : index
    %c0_285 = arith.constant 0 : index
    %159 = vector.load %arg1[%c0_282, %c6_283, %c0_284, %c0_285] : memref<1x36x4x9xf32, #tpu.memory_space<vmem>>, vector<1x1x4x8xf32>
    %160 = vector.shape_cast %159 : vector<1x1x4x8xf32> to vector<4x8xf32>
    %c24_286 = arith.constant 24 : index
    %c40_287 = arith.constant 40 : index
    %161 = vector.load %arg8[%c24_286, %c40_287] : memref<36x64xf32, #tpu.memory_space<vmem>>, vector<4x8xf32>
    tpu.vector_store %arg8[%c24_286, %c40_287], %160 {strides = array<i32>} : memref<36x64xf32, #tpu.memory_space<vmem>>, vector<4x8xf32>,
    %c0_288 = arith.constant 0 : index
    %c7_289 = arith.constant 7 : index
    %c0_290 = arith.constant 0 : index
    %c0_291 = arith.constant 0 : index
    %162 = vector.load %arg1[%c0_288, %c7_289, %c0_290, %c0_291] : memref<1x36x4x9xf32, #tpu.memory_space<vmem>>, vector<1x1x4x8xf32>
    %163 = vector.shape_cast %162 : vector<1x1x4x8xf32> to vector<4x8xf32>
    %c24_292 = arith.constant 24 : index
    %c48_293 = arith.constant 48 : index
    %164 = vector.load %arg8[%c24_292, %c48_293] : memref<36x64xf32, #tpu.memory_space<vmem>>, vector<4x8xf32>
    tpu.vector_store %arg8[%c24_292, %c48_293], %163 {strides = array<i32>} : memref<36x64xf32, #tpu.memory_space<vmem>>, vector<4x8xf32>,
    %c0_294 = arith.constant 0 : index
    %c8_295 = arith.constant 8 : index
    %c0_296 = arith.constant 0 : index
    %c0_297 = arith.constant 0 : index
    %165 = vector.load %arg1[%c0_294, %c8_295, %c0_296, %c0_297] : memref<1x36x4x9xf32, #tpu.memory_space<vmem>>, vector<1x1x4x8xf32>
    %166 = vector.shape_cast %165 : vector<1x1x4x8xf32> to vector<4x8xf32>
    %c24_298 = arith.constant 24 : index
    %c56_299 = arith.constant 56 : index
    %167 = vector.load %arg8[%c24_298, %c56_299] : memref<36x64xf32, #tpu.memory_space<vmem>>, vector<4x8xf32>
    tpu.vector_store %arg8[%c24_298, %c56_299], %166 {strides = array<i32>} : memref<36x64xf32, #tpu.memory_space<vmem>>, vector<4x8xf32>,
    %c0_300 = arith.constant 0 : index
    %c10_301 = arith.constant 10 : index
    %c0_302 = arith.constant 0 : index
    %c0_303 = arith.constant 0 : index
    %168 = vector.load %arg1[%c0_300, %c10_301, %c0_302, %c0_303] : memref<1x36x4x9xf32, #tpu.memory_space<vmem>>, vector<1x1x4x8xf32>
    %169 = vector.shape_cast %168 : vector<1x1x4x8xf32> to vector<4x8xf32>
    %c28_304 = arith.constant 28 : index
    %c0_305 = arith.constant 0 : index
    %170 = vector.load %arg8[%c28_304, %c0_305] : memref<36x64xf32, #tpu.memory_space<vmem>>, vector<4x8xf32>
    tpu.vector_store %arg8[%c28_304, %c0_305], %169 {strides = array<i32>} : memref<36x64xf32, #tpu.memory_space<vmem>>, vector<4x8xf32>,
    %c0_306 = arith.constant 0 : index
    %c11_307 = arith.constant 11 : index
    %c0_308 = arith.constant 0 : index
    %c0_309 = arith.constant 0 : index
    %171 = vector.load %arg1[%c0_306, %c11_307, %c0_308, %c0_309] : memref<1x36x4x9xf32, #tpu.memory_space<vmem>>, vector<1x1x4x8xf32>
    %172 = vector.shape_cast %171 : vector<1x1x4x8xf32> to vector<4x8xf32>
    %c28_310 = arith.constant 28 : index
    %c8_311 = arith.constant 8 : index
    %173 = vector.load %arg8[%c28_310, %c8_311] : memref<36x64xf32, #tpu.memory_space<vmem>>, vector<4x8xf32>
    tpu.vector_store %arg8[%c28_310, %c8_311], %172 {strides = array<i32>} : memref<36x64xf32, #tpu.memory_space<vmem>>, vector<4x8xf32>,
    %c0_312 = arith.constant 0 : index
    %c12_313 = arith.constant 12 : index
    %c0_314 = arith.constant 0 : index
    %c0_315 = arith.constant 0 : index
    %174 = vector.load %arg1[%c0_312, %c12_313, %c0_314, %c0_315] : memref<1x36x4x9xf32, #tpu.memory_space<vmem>>, vector<1x1x4x8xf32>
    %175 = vector.shape_cast %174 : vector<1x1x4x8xf32> to vector<4x8xf32>
    %c28_316 = arith.constant 28 : index
    %c16_317 = arith.constant 16 : index
    %176 = vector.load %arg8[%c28_316, %c16_317] : memref<36x64xf32, #tpu.memory_space<vmem>>, vector<4x8xf32>
    tpu.vector_store %arg8[%c28_316, %c16_317], %175 {strides = array<i32>} : memref<36x64xf32, #tpu.memory_space<vmem>>, vector<4x8xf32>,
    %c0_318 = arith.constant 0 : index
    %c13_319 = arith.constant 13 : index
    %c0_320 = arith.constant 0 : index
    %c0_321 = arith.constant 0 : index
    %177 = vector.load %arg1[%c0_318, %c13_319, %c0_320, %c0_321] : memref<1x36x4x9xf32, #tpu.memory_space<vmem>>, vector<1x1x4x8xf32>
    %178 = vector.shape_cast %177 : vector<1x1x4x8xf32> to vector<4x8xf32>
    %c28_322 = arith.constant 28 : index
    %c24_323 = arith.constant 24 : index
    %179 = vector.load %arg8[%c28_322, %c24_323] : memref<36x64xf32, #tpu.memory_space<vmem>>, vector<4x8xf32>
    tpu.vector_store %arg8[%c28_322, %c24_323], %178 {strides = array<i32>} : memref<36x64xf32, #tpu.memory_space<vmem>>, vector<4x8xf32>,
    %c0_324 = arith.constant 0 : index
    %c14_325 = arith.constant 14 : index
    %c0_326 = arith.constant 0 : index
    %c0_327 = arith.constant 0 : index
    %180 = vector.load %arg1[%c0_324, %c14_325, %c0_326, %c0_327] : memref<1x36x4x9xf32, #tpu.memory_space<vmem>>, vector<1x1x4x8xf32>
    %181 = vector.shape_cast %180 : vector<1x1x4x8xf32> to vector<4x8xf32>
    %c28_328 = arith.constant 28 : index
    %c32_329 = arith.constant 32 : index
    %182 = vector.load %arg8[%c28_328, %c32_329] : memref<36x64xf32, #tpu.memory_space<vmem>>, vector<4x8xf32>
    tpu.vector_store %arg8[%c28_328, %c32_329], %181 {strides = array<i32>} : memref<36x64xf32, #tpu.memory_space<vmem>>, vector<4x8xf32>,
    %c0_330 = arith.constant 0 : index
    %c15_331 = arith.constant 15 : index
    %c0_332 = arith.constant 0 : index
    %c0_333 = arith.constant 0 : index
    %183 = vector.load %arg1[%c0_330, %c15_331, %c0_332, %c0_333] : memref<1x36x4x9xf32, #tpu.memory_space<vmem>>, vector<1x1x4x8xf32>
    %184 = vector.shape_cast %183 : vector<1x1x4x8xf32> to vector<4x8xf32>
    %c28_334 = arith.constant 28 : index
    %c40_335 = arith.constant 40 : index
    %185 = vector.load %arg8[%c28_334, %c40_335] : memref<36x64xf32, #tpu.memory_space<vmem>>, vector<4x8xf32>
    tpu.vector_store %arg8[%c28_334, %c40_335], %184 {strides = array<i32>} : memref<36x64xf32, #tpu.memory_space<vmem>>, vector<4x8xf32>,
    %c0_336 = arith.constant 0 : index
    %c16_337 = arith.constant 16 : index
    %c0_338 = arith.constant 0 : index
    %c0_339 = arith.constant 0 : index
    %186 = vector.load %arg1[%c0_336, %c16_337, %c0_338, %c0_339] : memref<1x36x4x9xf32, #tpu.memory_space<vmem>>, vector<1x1x4x8xf32>
    %187 = vector.shape_cast %186 : vector<1x1x4x8xf32> to vector<4x8xf32>
    %c28_340 = arith.constant 28 : index
    %c48_341 = arith.constant 48 : index
    %188 = vector.load %arg8[%c28_340, %c48_341] : memref<36x64xf32, #tpu.memory_space<vmem>>, vector<4x8xf32>
    tpu.vector_store %arg8[%c28_340, %c48_341], %187 {strides = array<i32>} : memref<36x64xf32, #tpu.memory_space<vmem>>, vector<4x8xf32>,
    %c0_342 = arith.constant 0 : index
    %c17 = arith.constant 17 : index
    %c0_343 = arith.constant 0 : index
    %c0_344 = arith.constant 0 : index
    %189 = vector.load %arg1[%c0_342, %c17, %c0_343, %c0_344] : memref<1x36x4x9xf32, #tpu.memory_space<vmem>>, vector<1x1x4x8xf32>
    %190 = vector.shape_cast %189 : vector<1x1x4x8xf32> to vector<4x8xf32>
    %c28_345 = arith.constant 28 : index
    %c56_346 = arith.constant 56 : index
    %191 = vector.load %arg8[%c28_345, %c56_346] : memref<36x64xf32, #tpu.memory_space<vmem>>, vector<4x8xf32>
    tpu.vector_store %arg8[%c28_345, %c56_346], %190 {strides = array<i32>} : memref<36x64xf32, #tpu.memory_space<vmem>>, vector<4x8xf32>,
    %c0_347 = arith.constant 0 : index
    %c1_348 = arith.constant 1 : index
    %c0_349 = arith.constant 0 : index
    %c1_350 = arith.constant 1 : index
    %192 = vector.load %arg1[%c0_347, %c1_348, %c0_349, %c1_350] : memref<1x36x4x9xf32, #tpu.memory_space<vmem>>, vector<1x1x4x8xf32>
    %193 = vector.shape_cast %192 : vector<1x1x4x8xf32> to vector<4x8xf32>
    %c32_351 = arith.constant 32 : index
    %c0_352 = arith.constant 0 : index
    %194 = vector.load %arg8[%c32_351, %c0_352] : memref<36x64xf32, #tpu.memory_space<vmem>>, vector<4x8xf32>
    tpu.vector_store %arg8[%c32_351, %c0_352], %193 {strides = array<i32>} : memref<36x64xf32, #tpu.memory_space<vmem>>, vector<4x8xf32>,
    %c0_353 = arith.constant 0 : index
    %c2_354 = arith.constant 2 : index
    %c0_355 = arith.constant 0 : index
    %c1_356 = arith.constant 1 : index
    %195 = vector.load %arg1[%c0_353, %c2_354, %c0_355, %c1_356] : memref<1x36x4x9xf32, #tpu.memory_space<vmem>>, vector<1x1x4x8xf32>
    %196 = vector.shape_cast %195 : vector<1x1x4x8xf32> to vector<4x8xf32>
    %c32_357 = arith.constant 32 : index
    %c8_358 = arith.constant 8 : index
    %197 = vector.load %arg8[%c32_357, %c8_358] : memref<36x64xf32, #tpu.memory_space<vmem>>, vector<4x8xf32>
    tpu.vector_store %arg8[%c32_357, %c8_358], %196 {strides = array<i32>} : memref<36x64xf32, #tpu.memory_space<vmem>>, vector<4x8xf32>,
    %c0_359 = arith.constant 0 : index
    %c3_360 = arith.constant 3 : index
    %c0_361 = arith.constant 0 : index
    %c1_362 = arith.constant 1 : index
    %198 = vector.load %arg1[%c0_359, %c3_360, %c0_361, %c1_362] : memref<1x36x4x9xf32, #tpu.memory_space<vmem>>, vector<1x1x4x8xf32>
    %199 = vector.shape_cast %198 : vector<1x1x4x8xf32> to vector<4x8xf32>
    %c32_363 = arith.constant 32 : index
    %c16_364 = arith.constant 16 : index
    %200 = vector.load %arg8[%c32_363, %c16_364] : memref<36x64xf32, #tpu.memory_space<vmem>>, vector<4x8xf32>
    tpu.vector_store %arg8[%c32_363, %c16_364], %199 {strides = array<i32>} : memref<36x64xf32, #tpu.memory_space<vmem>>, vector<4x8xf32>,
    %c0_365 = arith.constant 0 : index
    %c4_366 = arith.constant 4 : index
    %c0_367 = arith.constant 0 : index
    %c1_368 = arith.constant 1 : index
    %201 = vector.load %arg1[%c0_365, %c4_366, %c0_367, %c1_368] : memref<1x36x4x9xf32, #tpu.memory_space<vmem>>, vector<1x1x4x8xf32>
    %202 = vector.shape_cast %201 : vector<1x1x4x8xf32> to vector<4x8xf32>
    %c32_369 = arith.constant 32 : index
    %c24_370 = arith.constant 24 : index
    %203 = vector.load %arg8[%c32_369, %c24_370] : memref<36x64xf32, #tpu.memory_space<vmem>>, vector<4x8xf32>
    tpu.vector_store %arg8[%c32_369, %c24_370], %202 {strides = array<i32>} : memref<36x64xf32, #tpu.memory_space<vmem>>, vector<4x8xf32>,
    %c0_371 = arith.constant 0 : index
    %c5_372 = arith.constant 5 : index
    %c0_373 = arith.constant 0 : index
    %c1_374 = arith.constant 1 : index
    %204 = vector.load %arg1[%c0_371, %c5_372, %c0_373, %c1_374] : memref<1x36x4x9xf32, #tpu.memory_space<vmem>>, vector<1x1x4x8xf32>
    %205 = vector.shape_cast %204 : vector<1x1x4x8xf32> to vector<4x8xf32>
    %c32_375 = arith.constant 32 : index
    %c32_376 = arith.constant 32 : index
    %206 = vector.load %arg8[%c32_375, %c32_376] : memref<36x64xf32, #tpu.memory_space<vmem>>, vector<4x8xf32>
    tpu.vector_store %arg8[%c32_375, %c32_376], %205 {strides = array<i32>} : memref<36x64xf32, #tpu.memory_space<vmem>>, vector<4x8xf32>,
    %c0_377 = arith.constant 0 : index
    %c6_378 = arith.constant 6 : index
    %c0_379 = arith.constant 0 : index
    %c1_380 = arith.constant 1 : index
    %207 = vector.load %arg1[%c0_377, %c6_378, %c0_379, %c1_380] : memref<1x36x4x9xf32, #tpu.memory_space<vmem>>, vector<1x1x4x8xf32>
    %208 = vector.shape_cast %207 : vector<1x1x4x8xf32> to vector<4x8xf32>
    %c32_381 = arith.constant 32 : index
    %c40_382 = arith.constant 40 : index
    %209 = vector.load %arg8[%c32_381, %c40_382] : memref<36x64xf32, #tpu.memory_space<vmem>>, vector<4x8xf32>
    tpu.vector_store %arg8[%c32_381, %c40_382], %208 {strides = array<i32>} : memref<36x64xf32, #tpu.memory_space<vmem>>, vector<4x8xf32>,
    %c0_383 = arith.constant 0 : index
    %c7_384 = arith.constant 7 : index
    %c0_385 = arith.constant 0 : index
    %c1_386 = arith.constant 1 : index
    %210 = vector.load %arg1[%c0_383, %c7_384, %c0_385, %c1_386] : memref<1x36x4x9xf32, #tpu.memory_space<vmem>>, vector<1x1x4x8xf32>
    %211 = vector.shape_cast %210 : vector<1x1x4x8xf32> to vector<4x8xf32>
    %c32_387 = arith.constant 32 : index
    %c48_388 = arith.constant 48 : index
    %212 = vector.load %arg8[%c32_387, %c48_388] : memref<36x64xf32, #tpu.memory_space<vmem>>, vector<4x8xf32>
    tpu.vector_store %arg8[%c32_387, %c48_388], %211 {strides = array<i32>} : memref<36x64xf32, #tpu.memory_space<vmem>>, vector<4x8xf32>,
    %c0_389 = arith.constant 0 : index
    %c8_390 = arith.constant 8 : index
    %c0_391 = arith.constant 0 : index
    %c1_392 = arith.constant 1 : index
    %213 = vector.load %arg1[%c0_389, %c8_390, %c0_391, %c1_392] : memref<1x36x4x9xf32, #tpu.memory_space<vmem>>, vector<1x1x4x8xf32>
    %214 = vector.shape_cast %213 : vector<1x1x4x8xf32> to vector<4x8xf32>
    %c32_393 = arith.constant 32 : index
    %c56_394 = arith.constant 56 : index
    %215 = vector.load %arg8[%c32_393, %c56_394] : memref<36x64xf32, #tpu.memory_space<vmem>>, vector<4x8xf32>
    tpu.vector_store %arg8[%c32_393, %c56_394], %214 {strides = array<i32>} : memref<36x64xf32, #tpu.memory_space<vmem>>, vector<4x8xf32>,
    %c0_395 = arith.constant 0 : index
    %c0_396 = arith.constant 0 : index
    %216 = vector.load %arg2[%c0_395, %c0_396] : memref<8x36xf32, #tpu.memory_space<vmem>>, vector<8x36xf32>
    %c0_397 = arith.constant 0 : index
    %c0_398 = arith.constant 0 : index
    %217 = vector.load %arg8[%c0_397, %c0_398] : memref<36x64xf32, #tpu.memory_space<vmem>>, vector<36x64xf32>
    %cst = arith.constant dense<0.000000e+00> : vector<8x64xf32>
    %218 = tpu.matmul %216, %217, %cst {dimension_numbers = #tpu.dot_dimension_numbers<[1], [0], [0], [1], [0, 0, 1, 1], [], []>} : vector<8x36xf32>, vector<36x64xf32>, vector<8x64xf32> -> vector<8x64xf32>
    %cst_399 = arith.constant 0.000000e+00 : f32
    %219 = vector.broadcast %cst_399 : f32 to vector<8x64xf32>
    %220 = arith.cmpf oge, %218, %219 : vector<8x64xf32>
    %cst_400 = arith.constant 0.00999999977 : f32
    %221 = vector.broadcast %cst_400 : f32 to vector<8x64xf32>
    %222 = arith.mulf %218, %221 : vector<8x64xf32>
    %223 = arith.select %220, %218, %222 : vector<8x64xi1>, vector<8x64xf32>
    %224 = tpu.iota {dimensions = array<i32: 0>} : vector<8x4xi32>
    %225 = tpu.iota {dimensions = array<i32: 1>} : vector<8x4xi32>
    %c2_i32 = arith.constant 2 : i32
    %226 = vector.broadcast %c2_i32 : i32 to vector<8x4xi32>
    %227 = arith.muli %226, %225 : vector<8x4xi32>
    %228 = arith.cmpi eq, %224, %227 : vector<8x4xi32>
    %229 = arith.extui %228 : vector<8x4xi1> to vector<8x4xi32>
    %230 = arith.sitofp %229 : vector<8x4xi32> to vector<8x4xf32>
    %c2_i32_401 = arith.constant 2 : i32
    %231 = vector.broadcast %c2_i32_401 : i32 to vector<8x4xi32>
    %232 = arith.muli %231, %225 : vector<8x4xi32>
    %c1_i32 = arith.constant 1 : i32
    %233 = vector.broadcast %c1_i32 : i32 to vector<8x4xi32>
    %234 = arith.addi %232, %233 : vector<8x4xi32>
    %235 = arith.cmpi eq, %224, %234 : vector<8x4xi32>
    %236 = arith.extui %235 : vector<8x4xi1> to vector<8x4xi32>
    %237 = arith.sitofp %236 : vector<8x4xi32> to vector<8x4xf32>
    %cst_402 = arith.constant 0.000000e+00 : f32
    %238 = vector.broadcast %cst_402 : f32 to vector<20x8x5xf32>
    %c0_403 = arith.constant 0 : index
    %c0_404 = arith.constant 0 : index
    %c0_405 = arith.constant 0 : index
    %239 = vector.load %arg6[%c0_403, %c0_404, %c0_405] : memref<20x8x5xf32, #tpu.memory_space<vmem>>, vector<20x8x5xf32>
    tpu.vector_store %arg6[%c0_403, %c0_404, %c0_405], %238 {strides = array<i32>} : memref<20x8x5xf32, #tpu.memory_space<vmem>>, vector<20x8x5xf32>,
    %240 = vector.extract_strided_slice %223 {offsets = [0, 0], sizes = [8, 8], strides = [1, 1]} : vector<8x64xf32> to vector<8x8xf32>
    %cst_406 = arith.constant dense<0.000000e+00> : vector<8x4xf32>
    %241 = tpu.matmul %240, %230, %cst_406 {dimension_numbers = #tpu.dot_dimension_numbers<[1], [0], [0], [1], [0, 0, 1, 1], [], []>} : vector<8x8xf32>, vector<8x4xf32>, vector<8x4xf32> -> vector<8x4xf32>
    %c15_407 = arith.constant 15 : index
    %c0_408 = arith.constant 0 : index
    %c0_409 = arith.constant 0 : index
    %242 = vector.load %arg6[%c15_407, %c0_408, %c0_409] : memref<20x8x5xf32, #tpu.memory_space<vmem>>, vector<1x8x4xf32>
    %243 = vector.shape_cast %242 : vector<1x8x4xf32> to vector<8x4xf32>
    %244 = vector.shape_cast %241 : vector<8x4xf32> to vector<1x8x4xf32>
    tpu.vector_store %arg6[%c15_407, %c0_408, %c0_409], %244 {strides = array<i32>} : memref<20x8x5xf32, #tpu.memory_space<vmem>>, vector<1x8x4xf32>,
    %cst_410 = arith.constant dense<0.000000e+00> : vector<8x4xf32>
    %245 = tpu.matmul %240, %237, %cst_410 {dimension_numbers = #tpu.dot_dimension_numbers<[1], [0], [0], [1], [0, 0, 1, 1], [], []>} : vector<8x8xf32>, vector<8x4xf32>, vector<8x4xf32> -> vector<8x4xf32>
    %c10_411 = arith.constant 10 : index
    %c0_412 = arith.constant 0 : index
    %c1_413 = arith.constant 1 : index
    %246 = vector.load %arg6[%c10_411, %c0_412, %c1_413] : memref<20x8x5xf32, #tpu.memory_space<vmem>>, vector<1x8x4xf32>
    %247 = vector.shape_cast %246 : vector<1x8x4xf32> to vector<8x4xf32>
    %248 = vector.shape_cast %245 : vector<8x4xf32> to vector<1x8x4xf32>
    tpu.vector_store %arg6[%c10_411, %c0_412, %c1_413], %248 {strides = array<i32>} : memref<20x8x5xf32, #tpu.memory_space<vmem>>, vector<1x8x4xf32>,
    %249 = vector.extract_strided_slice %223 {offsets = [0, 8], sizes = [8, 8], strides = [1, 1]} : vector<8x64xf32> to vector<8x8xf32>
    %cst_414 = arith.constant dense<0.000000e+00> : vector<8x4xf32>
    %250 = tpu.matmul %249, %230, %cst_414 {dimension_numbers = #tpu.dot_dimension_numbers<[1], [0], [0], [1], [0, 0, 1, 1], [], []>} : vector<8x8xf32>, vector<8x4xf32>, vector<8x4xf32> -> vector<8x4xf32>
    %c6_415 = arith.constant 6 : index
    %c0_416 = arith.constant 0 : index
    %c0_417 = arith.constant 0 : index
    %251 = vector.load %arg6[%c6_415, %c0_416, %c0_417] : memref<20x8x5xf32, #tpu.memory_space<vmem>>, vector<1x8x4xf32>
    %252 = vector.shape_cast %251 : vector<1x8x4xf32> to vector<8x4xf32>
    %253 = vector.shape_cast %250 : vector<8x4xf32> to vector<1x8x4xf32>
    tpu.vector_store %arg6[%c6_415, %c0_416, %c0_417], %253 {strides = array<i32>} : memref<20x8x5xf32, #tpu.memory_space<vmem>>, vector<1x8x4xf32>,
    %cst_418 = arith.constant dense<0.000000e+00> : vector<8x4xf32>
    %254 = tpu.matmul %249, %237, %cst_418 {dimension_numbers = #tpu.dot_dimension_numbers<[1], [0], [0], [1], [0, 0, 1, 1], [], []>} : vector<8x8xf32>, vector<8x4xf32>, vector<8x4xf32> -> vector<8x4xf32>
    %c1_419 = arith.constant 1 : index
    %c0_420 = arith.constant 0 : index
    %c1_421 = arith.constant 1 : index
    %255 = vector.load %arg6[%c1_419, %c0_420, %c1_421] : memref<20x8x5xf32, #tpu.memory_space<vmem>>, vector<1x8x4xf32>
    %256 = vector.shape_cast %255 : vector<1x8x4xf32> to vector<8x4xf32>
    %257 = vector.shape_cast %254 : vector<8x4xf32> to vector<1x8x4xf32>
    tpu.vector_store %arg6[%c1_419, %c0_420, %c1_421], %257 {strides = array<i32>} : memref<20x8x5xf32, #tpu.memory_space<vmem>>, vector<1x8x4xf32>,
    %258 = vector.extract_strided_slice %223 {offsets = [0, 16], sizes = [8, 8], strides = [1, 1]} : vector<8x64xf32> to vector<8x8xf32>
    %cst_422 = arith.constant dense<0.000000e+00> : vector<8x4xf32>
    %259 = tpu.matmul %258, %230, %cst_422 {dimension_numbers = #tpu.dot_dimension_numbers<[1], [0], [0], [1], [0, 0, 1, 1], [], []>} : vector<8x8xf32>, vector<8x4xf32>, vector<8x4xf32> -> vector<8x4xf32>
    %c16_423 = arith.constant 16 : index
    %c0_424 = arith.constant 0 : index
    %c0_425 = arith.constant 0 : index
    %260 = vector.load %arg6[%c16_423, %c0_424, %c0_425] : memref<20x8x5xf32, #tpu.memory_space<vmem>>, vector<1x8x4xf32>
    %261 = vector.shape_cast %260 : vector<1x8x4xf32> to vector<8x4xf32>
    %262 = vector.shape_cast %259 : vector<8x4xf32> to vector<1x8x4xf32>
    tpu.vector_store %arg6[%c16_423, %c0_424, %c0_425], %262 {strides = array<i32>} : memref<20x8x5xf32, #tpu.memory_space<vmem>>, vector<1x8x4xf32>,
    %cst_426 = arith.constant dense<0.000000e+00> : vector<8x4xf32>
    %263 = tpu.matmul %258, %237, %cst_426 {dimension_numbers = #tpu.dot_dimension_numbers<[1], [0], [0], [1], [0, 0, 1, 1], [], []>} : vector<8x8xf32>, vector<8x4xf32>, vector<8x4xf32> -> vector<8x4xf32>
    %c11_427 = arith.constant 11 : index
    %c0_428 = arith.constant 0 : index
    %c1_429 = arith.constant 1 : index
    %264 = vector.load %arg6[%c11_427, %c0_428, %c1_429] : memref<20x8x5xf32, #tpu.memory_space<vmem>>, vector<1x8x4xf32>
    %265 = vector.shape_cast %264 : vector<1x8x4xf32> to vector<8x4xf32>
    %266 = vector.shape_cast %263 : vector<8x4xf32> to vector<1x8x4xf32>
    tpu.vector_store %arg6[%c11_427, %c0_428, %c1_429], %266 {strides = array<i32>} : memref<20x8x5xf32, #tpu.memory_space<vmem>>, vector<1x8x4xf32>,
    %267 = vector.extract_strided_slice %223 {offsets = [0, 24], sizes = [8, 8], strides = [1, 1]} : vector<8x64xf32> to vector<8x8xf32>
    %cst_430 = arith.constant dense<0.000000e+00> : vector<8x4xf32>
    %268 = tpu.matmul %267, %230, %cst_430 {dimension_numbers = #tpu.dot_dimension_numbers<[1], [0], [0], [1], [0, 0, 1, 1], [], []>} : vector<8x8xf32>, vector<8x4xf32>, vector<8x4xf32> -> vector<8x4xf32>
    %c7_431 = arith.constant 7 : index
    %c0_432 = arith.constant 0 : index
    %c0_433 = arith.constant 0 : index
    %269 = vector.load %arg6[%c7_431, %c0_432, %c0_433] : memref<20x8x5xf32, #tpu.memory_space<vmem>>, vector<1x8x4xf32>
    %270 = vector.shape_cast %269 : vector<1x8x4xf32> to vector<8x4xf32>
    %271 = vector.shape_cast %268 : vector<8x4xf32> to vector<1x8x4xf32>
    tpu.vector_store %arg6[%c7_431, %c0_432, %c0_433], %271 {strides = array<i32>} : memref<20x8x5xf32, #tpu.memory_space<vmem>>, vector<1x8x4xf32>,
    %cst_434 = arith.constant dense<0.000000e+00> : vector<8x4xf32>
    %272 = tpu.matmul %267, %237, %cst_434 {dimension_numbers = #tpu.dot_dimension_numbers<[1], [0], [0], [1], [0, 0, 1, 1], [], []>} : vector<8x8xf32>, vector<8x4xf32>, vector<8x4xf32> -> vector<8x4xf32>
    %c2_435 = arith.constant 2 : index
    %c0_436 = arith.constant 0 : index
    %c1_437 = arith.constant 1 : index
    %273 = vector.load %arg6[%c2_435, %c0_436, %c1_437] : memref<20x8x5xf32, #tpu.memory_space<vmem>>, vector<1x8x4xf32>
    %274 = vector.shape_cast %273 : vector<1x8x4xf32> to vector<8x4xf32>
    %275 = vector.shape_cast %272 : vector<8x4xf32> to vector<1x8x4xf32>
    tpu.vector_store %arg6[%c2_435, %c0_436, %c1_437], %275 {strides = array<i32>} : memref<20x8x5xf32, #tpu.memory_space<vmem>>, vector<1x8x4xf32>,
    %276 = vector.extract_strided_slice %223 {offsets = [0, 32], sizes = [8, 8], strides = [1, 1]} : vector<8x64xf32> to vector<8x8xf32>
    %cst_438 = arith.constant dense<0.000000e+00> : vector<8x4xf32>
    %277 = tpu.matmul %276, %230, %cst_438 {dimension_numbers = #tpu.dot_dimension_numbers<[1], [0], [0], [1], [0, 0, 1, 1], [], []>} : vector<8x8xf32>, vector<8x4xf32>, vector<8x4xf32> -> vector<8x4xf32>
    %c17_439 = arith.constant 17 : index
    %c0_440 = arith.constant 0 : index
    %c0_441 = arith.constant 0 : index
    %278 = vector.load %arg6[%c17_439, %c0_440, %c0_441] : memref<20x8x5xf32, #tpu.memory_space<vmem>>, vector<1x8x4xf32>
    %279 = vector.shape_cast %278 : vector<1x8x4xf32> to vector<8x4xf32>
    %280 = vector.shape_cast %277 : vector<8x4xf32> to vector<1x8x4xf32>
    tpu.vector_store %arg6[%c17_439, %c0_440, %c0_441], %280 {strides = array<i32>} : memref<20x8x5xf32, #tpu.memory_space<vmem>>, vector<1x8x4xf32>,
    %cst_442 = arith.constant dense<0.000000e+00> : vector<8x4xf32>
    %281 = tpu.matmul %276, %237, %cst_442 {dimension_numbers = #tpu.dot_dimension_numbers<[1], [0], [0], [1], [0, 0, 1, 1], [], []>} : vector<8x8xf32>, vector<8x4xf32>, vector<8x4xf32> -> vector<8x4xf32>
    %c12_443 = arith.constant 12 : index
    %c0_444 = arith.constant 0 : index
    %c1_445 = arith.constant 1 : index
    %282 = vector.load %arg6[%c12_443, %c0_444, %c1_445] : memref<20x8x5xf32, #tpu.memory_space<vmem>>, vector<1x8x4xf32>
    %283 = vector.shape_cast %282 : vector<1x8x4xf32> to vector<8x4xf32>
    %284 = vector.shape_cast %281 : vector<8x4xf32> to vector<1x8x4xf32>
    tpu.vector_store %arg6[%c12_443, %c0_444, %c1_445], %284 {strides = array<i32>} : memref<20x8x5xf32, #tpu.memory_space<vmem>>, vector<1x8x4xf32>,
    %285 = vector.extract_strided_slice %223 {offsets = [0, 40], sizes = [8, 8], strides = [1, 1]} : vector<8x64xf32> to vector<8x8xf32>
    %cst_446 = arith.constant dense<0.000000e+00> : vector<8x4xf32>
    %286 = tpu.matmul %285, %230, %cst_446 {dimension_numbers = #tpu.dot_dimension_numbers<[1], [0], [0], [1], [0, 0, 1, 1], [], []>} : vector<8x8xf32>, vector<8x4xf32>, vector<8x4xf32> -> vector<8x4xf32>
    %c8_447 = arith.constant 8 : index
    %c0_448 = arith.constant 0 : index
    %c0_449 = arith.constant 0 : index
    %287 = vector.load %arg6[%c8_447, %c0_448, %c0_449] : memref<20x8x5xf32, #tpu.memory_space<vmem>>, vector<1x8x4xf32>
    %288 = vector.shape_cast %287 : vector<1x8x4xf32> to vector<8x4xf32>
    %289 = vector.shape_cast %286 : vector<8x4xf32> to vector<1x8x4xf32>
    tpu.vector_store %arg6[%c8_447, %c0_448, %c0_449], %289 {strides = array<i32>} : memref<20x8x5xf32, #tpu.memory_space<vmem>>, vector<1x8x4xf32>,
    %cst_450 = arith.constant dense<0.000000e+00> : vector<8x4xf32>
    %290 = tpu.matmul %285, %237, %cst_450 {dimension_numbers = #tpu.dot_dimension_numbers<[1], [0], [0], [1], [0, 0, 1, 1], [], []>} : vector<8x8xf32>, vector<8x4xf32>, vector<8x4xf32> -> vector<8x4xf32>
    %c3_451 = arith.constant 3 : index
    %c0_452 = arith.constant 0 : index
    %c1_453 = arith.constant 1 : index
    %291 = vector.load %arg6[%c3_451, %c0_452, %c1_453] : memref<20x8x5xf32, #tpu.memory_space<vmem>>, vector<1x8x4xf32>
    %292 = vector.shape_cast %291 : vector<1x8x4xf32> to vector<8x4xf32>
    %293 = vector.shape_cast %290 : vector<8x4xf32> to vector<1x8x4xf32>
    tpu.vector_store %arg6[%c3_451, %c0_452, %c1_453], %293 {strides = array<i32>} : memref<20x8x5xf32, #tpu.memory_space<vmem>>, vector<1x8x4xf32>,
    %294 = vector.extract_strided_slice %223 {offsets = [0, 48], sizes = [8, 8], strides = [1, 1]} : vector<8x64xf32> to vector<8x8xf32>
    %cst_454 = arith.constant dense<0.000000e+00> : vector<8x4xf32>
    %295 = tpu.matmul %294, %230, %cst_454 {dimension_numbers = #tpu.dot_dimension_numbers<[1], [0], [0], [1], [0, 0, 1, 1], [], []>} : vector<8x8xf32>, vector<8x4xf32>, vector<8x4xf32> -> vector<8x4xf32>
    %c18_455 = arith.constant 18 : index
    %c0_456 = arith.constant 0 : index
    %c0_457 = arith.constant 0 : index
    %296 = vector.load %arg6[%c18_455, %c0_456, %c0_457] : memref<20x8x5xf32, #tpu.memory_space<vmem>>, vector<1x8x4xf32>
    %297 = vector.shape_cast %296 : vector<1x8x4xf32> to vector<8x4xf32>
    %298 = vector.shape_cast %295 : vector<8x4xf32> to vector<1x8x4xf32>
    tpu.vector_store %arg6[%c18_455, %c0_456, %c0_457], %298 {strides = array<i32>} : memref<20x8x5xf32, #tpu.memory_space<vmem>>, vector<1x8x4xf32>,
    %cst_458 = arith.constant dense<0.000000e+00> : vector<8x4xf32>
    %299 = tpu.matmul %294, %237, %cst_458 {dimension_numbers = #tpu.dot_dimension_numbers<[1], [0], [0], [1], [0, 0, 1, 1], [], []>} : vector<8x8xf32>, vector<8x4xf32>, vector<8x4xf32> -> vector<8x4xf32>
    %c13_459 = arith.constant 13 : index
    %c0_460 = arith.constant 0 : index
    %c1_461 = arith.constant 1 : index
    %300 = vector.load %arg6[%c13_459, %c0_460, %c1_461] : memref<20x8x5xf32, #tpu.memory_space<vmem>>, vector<1x8x4xf32>
    %301 = vector.shape_cast %300 : vector<1x8x4xf32> to vector<8x4xf32>
    %302 = vector.shape_cast %299 : vector<8x4xf32> to vector<1x8x4xf32>
    tpu.vector_store %arg6[%c13_459, %c0_460, %c1_461], %302 {strides = array<i32>} : memref<20x8x5xf32, #tpu.memory_space<vmem>>, vector<1x8x4xf32>,
    %303 = vector.extract_strided_slice %223 {offsets = [0, 56], sizes = [8, 8], strides = [1, 1]} : vector<8x64xf32> to vector<8x8xf32>
    %cst_462 = arith.constant dense<0.000000e+00> : vector<8x4xf32>
    %304 = tpu.matmul %303, %230, %cst_462 {dimension_numbers = #tpu.dot_dimension_numbers<[1], [0], [0], [1], [0, 0, 1, 1], [], []>} : vector<8x8xf32>, vector<8x4xf32>, vector<8x4xf32> -> vector<8x4xf32>
    %c9_463 = arith.constant 9 : index
    %c0_464 = arith.constant 0 : index
    %c0_465 = arith.constant 0 : index
    %305 = vector.load %arg6[%c9_463, %c0_464, %c0_465] : memref<20x8x5xf32, #tpu.memory_space<vmem>>, vector<1x8x4xf32>
    %306 = vector.shape_cast %305 : vector<1x8x4xf32> to vector<8x4xf32>
    %307 = vector.shape_cast %304 : vector<8x4xf32> to vector<1x8x4xf32>
    tpu.vector_store %arg6[%c9_463, %c0_464, %c0_465], %307 {strides = array<i32>} : memref<20x8x5xf32, #tpu.memory_space<vmem>>, vector<1x8x4xf32>,
    %cst_466 = arith.constant dense<0.000000e+00> : vector<8x4xf32>
    %308 = tpu.matmul %303, %237, %cst_466 {dimension_numbers = #tpu.dot_dimension_numbers<[1], [0], [0], [1], [0, 0, 1, 1], [], []>} : vector<8x8xf32>, vector<8x4xf32>, vector<8x4xf32> -> vector<8x4xf32>
    %c4_467 = arith.constant 4 : index
    %c0_468 = arith.constant 0 : index
    %c1_469 = arith.constant 1 : index
    %309 = vector.load %arg6[%c4_467, %c0_468, %c1_469] : memref<20x8x5xf32, #tpu.memory_space<vmem>>, vector<1x8x4xf32>
    %310 = vector.shape_cast %309 : vector<1x8x4xf32> to vector<8x4xf32>
    %311 = vector.shape_cast %308 : vector<8x4xf32> to vector<1x8x4xf32>
    tpu.vector_store %arg6[%c4_467, %c0_468, %c1_469], %311 {strides = array<i32>} : memref<20x8x5xf32, #tpu.memory_space<vmem>>, vector<1x8x4xf32>,
    %c0_470 = arith.constant 0 : index
    %c0_471 = arith.constant 0 : index
    %c0_472 = arith.constant 0 : index
    %312 = vector.load %arg6[%c0_470, %c0_471, %c0_472] : memref<20x8x5xf32, #tpu.memory_space<vmem>>, vector<1x8x4xf32>
    %313 = vector.shape_cast %312 : vector<1x8x4xf32> to vector<8x4xf32>
    %c0_473 = arith.constant 0 : index
    %c0_474 = arith.constant 0 : index
    %314 = vector.load %arg9[%c0_473, %c0_474] : memref<72x16xf32, #tpu.memory_space<vmem>>, vector<8x4xf32>
    tpu.vector_store %arg9[%c0_473, %c0_474], %313 {strides = array<i32>} : memref<72x16xf32, #tpu.memory_space<vmem>>, vector<8x4xf32>,
    %c1_475 = arith.constant 1 : index
    %c0_476 = arith.constant 0 : index
    %c0_477 = arith.constant 0 : index
    %315 = vector.load %arg6[%c1_475, %c0_476, %c0_477] : memref<20x8x5xf32, #tpu.memory_space<vmem>>, vector<1x8x4xf32>
    %316 = vector.shape_cast %315 : vector<1x8x4xf32> to vector<8x4xf32>
    %c0_478 = arith.constant 0 : index
    %c4_479 = arith.constant 4 : index
    %317 = vector.load %arg9[%c0_478, %c4_479] : memref<72x16xf32, #tpu.memory_space<vmem>>, vector<8x4xf32>
    tpu.vector_store %arg9[%c0_478, %c4_479], %316 {strides = array<i32>} : memref<72x16xf32, #tpu.memory_space<vmem>>, vector<8x4xf32>,
    %c2_480 = arith.constant 2 : index
    %c0_481 = arith.constant 0 : index
    %c0_482 = arith.constant 0 : index
    %318 = vector.load %arg6[%c2_480, %c0_481, %c0_482] : memref<20x8x5xf32, #tpu.memory_space<vmem>>, vector<1x8x4xf32>
    %319 = vector.shape_cast %318 : vector<1x8x4xf32> to vector<8x4xf32>
    %c0_483 = arith.constant 0 : index
    %c8_484 = arith.constant 8 : index
    %320 = vector.load %arg9[%c0_483, %c8_484] : memref<72x16xf32, #tpu.memory_space<vmem>>, vector<8x4xf32>
    tpu.vector_store %arg9[%c0_483, %c8_484], %319 {strides = array<i32>} : memref<72x16xf32, #tpu.memory_space<vmem>>, vector<8x4xf32>,
    %c3_485 = arith.constant 3 : index
    %c0_486 = arith.constant 0 : index
    %c0_487 = arith.constant 0 : index
    %321 = vector.load %arg6[%c3_485, %c0_486, %c0_487] : memref<20x8x5xf32, #tpu.memory_space<vmem>>, vector<1x8x4xf32>
    %322 = vector.shape_cast %321 : vector<1x8x4xf32> to vector<8x4xf32>
    %c0_488 = arith.constant 0 : index
    %c12_489 = arith.constant 12 : index
    %323 = vector.load %arg9[%c0_488, %c12_489] : memref<72x16xf32, #tpu.memory_space<vmem>>, vector<8x4xf32>
    tpu.vector_store %arg9[%c0_488, %c12_489], %322 {strides = array<i32>} : memref<72x16xf32, #tpu.memory_space<vmem>>, vector<8x4xf32>,
    %c5_490 = arith.constant 5 : index
    %c0_491 = arith.constant 0 : index
    %c0_492 = arith.constant 0 : index
    %324 = vector.load %arg6[%c5_490, %c0_491, %c0_492] : memref<20x8x5xf32, #tpu.memory_space<vmem>>, vector<1x8x4xf32>
    %325 = vector.shape_cast %324 : vector<1x8x4xf32> to vector<8x4xf32>
    %c8_493 = arith.constant 8 : index
    %c0_494 = arith.constant 0 : index
    %326 = vector.load %arg9[%c8_493, %c0_494] : memref<72x16xf32, #tpu.memory_space<vmem>>, vector<8x4xf32>
    tpu.vector_store %arg9[%c8_493, %c0_494], %325 {strides = array<i32>} : memref<72x16xf32, #tpu.memory_space<vmem>>, vector<8x4xf32>,
    %c6_495 = arith.constant 6 : index
    %c0_496 = arith.constant 0 : index
    %c0_497 = arith.constant 0 : index
    %327 = vector.load %arg6[%c6_495, %c0_496, %c0_497] : memref<20x8x5xf32, #tpu.memory_space<vmem>>, vector<1x8x4xf32>
    %328 = vector.shape_cast %327 : vector<1x8x4xf32> to vector<8x4xf32>
    %c8_498 = arith.constant 8 : index
    %c4_499 = arith.constant 4 : index
    %329 = vector.load %arg9[%c8_498, %c4_499] : memref<72x16xf32, #tpu.memory_space<vmem>>, vector<8x4xf32>
    tpu.vector_store %arg9[%c8_498, %c4_499], %328 {strides = array<i32>} : memref<72x16xf32, #tpu.memory_space<vmem>>, vector<8x4xf32>,
    %c7_500 = arith.constant 7 : index
    %c0_501 = arith.constant 0 : index
    %c0_502 = arith.constant 0 : index
    %330 = vector.load %arg6[%c7_500, %c0_501, %c0_502] : memref<20x8x5xf32, #tpu.memory_space<vmem>>, vector<1x8x4xf32>
    %331 = vector.shape_cast %330 : vector<1x8x4xf32> to vector<8x4xf32>
    %c8_503 = arith.constant 8 : index
    %c8_504 = arith.constant 8 : index
    %332 = vector.load %arg9[%c8_503, %c8_504] : memref<72x16xf32, #tpu.memory_space<vmem>>, vector<8x4xf32>
    tpu.vector_store %arg9[%c8_503, %c8_504], %331 {strides = array<i32>} : memref<72x16xf32, #tpu.memory_space<vmem>>, vector<8x4xf32>,
    %c8_505 = arith.constant 8 : index
    %c0_506 = arith.constant 0 : index
    %c0_507 = arith.constant 0 : index
    %333 = vector.load %arg6[%c8_505, %c0_506, %c0_507] : memref<20x8x5xf32, #tpu.memory_space<vmem>>, vector<1x8x4xf32>
    %334 = vector.shape_cast %333 : vector<1x8x4xf32> to vector<8x4xf32>
    %c8_508 = arith.constant 8 : index
    %c12_509 = arith.constant 12 : index
    %335 = vector.load %arg9[%c8_508, %c12_509] : memref<72x16xf32, #tpu.memory_space<vmem>>, vector<8x4xf32>
    tpu.vector_store %arg9[%c8_508, %c12_509], %334 {strides = array<i32>} : memref<72x16xf32, #tpu.memory_space<vmem>>, vector<8x4xf32>,
    %c0_510 = arith.constant 0 : index
    %c0_511 = arith.constant 0 : index
    %c1_512 = arith.constant 1 : index
    %336 = vector.load %arg6[%c0_510, %c0_511, %c1_512] : memref<20x8x5xf32, #tpu.memory_space<vmem>>, vector<1x8x4xf32>
    %337 = vector.shape_cast %336 : vector<1x8x4xf32> to vector<8x4xf32>
    %c16_513 = arith.constant 16 : index
    %c0_514 = arith.constant 0 : index
    %338 = vector.load %arg9[%c16_513, %c0_514] : memref<72x16xf32, #tpu.memory_space<vmem>>, vector<8x4xf32>
    tpu.vector_store %arg9[%c16_513, %c0_514], %337 {strides = array<i32>} : memref<72x16xf32, #tpu.memory_space<vmem>>, vector<8x4xf32>,
    %c1_515 = arith.constant 1 : index
    %c0_516 = arith.constant 0 : index
    %c1_517 = arith.constant 1 : index
    %339 = vector.load %arg6[%c1_515, %c0_516, %c1_517] : memref<20x8x5xf32, #tpu.memory_space<vmem>>, vector<1x8x4xf32>
    %340 = vector.shape_cast %339 : vector<1x8x4xf32> to vector<8x4xf32>
    %c16_518 = arith.constant 16 : index
    %c4_519 = arith.constant 4 : index
    %341 = vector.load %arg9[%c16_518, %c4_519] : memref<72x16xf32, #tpu.memory_space<vmem>>, vector<8x4xf32>
    tpu.vector_store %arg9[%c16_518, %c4_519], %340 {strides = array<i32>} : memref<72x16xf32, #tpu.memory_space<vmem>>, vector<8x4xf32>,
    %c2_520 = arith.constant 2 : index
    %c0_521 = arith.constant 0 : index
    %c1_522 = arith.constant 1 : index
    %342 = vector.load %arg6[%c2_520, %c0_521, %c1_522] : memref<20x8x5xf32, #tpu.memory_space<vmem>>, vector<1x8x4xf32>
    %343 = vector.shape_cast %342 : vector<1x8x4xf32> to vector<8x4xf32>
    %c16_523 = arith.constant 16 : index
    %c8_524 = arith.constant 8 : index
    %344 = vector.load %arg9[%c16_523, %c8_524] : memref<72x16xf32, #tpu.memory_space<vmem>>, vector<8x4xf32>
    tpu.vector_store %arg9[%c16_523, %c8_524], %343 {strides = array<i32>} : memref<72x16xf32, #tpu.memory_space<vmem>>, vector<8x4xf32>,
    %c3_525 = arith.constant 3 : index
    %c0_526 = arith.constant 0 : index
    %c1_527 = arith.constant 1 : index
    %345 = vector.load %arg6[%c3_525, %c0_526, %c1_527] : memref<20x8x5xf32, #tpu.memory_space<vmem>>, vector<1x8x4xf32>
    %346 = vector.shape_cast %345 : vector<1x8x4xf32> to vector<8x4xf32>
    %c16_528 = arith.constant 16 : index
    %c12_529 = arith.constant 12 : index
    %347 = vector.load %arg9[%c16_528, %c12_529] : memref<72x16xf32, #tpu.memory_space<vmem>>, vector<8x4xf32>
    tpu.vector_store %arg9[%c16_528, %c12_529], %346 {strides = array<i32>} : memref<72x16xf32, #tpu.memory_space<vmem>>, vector<8x4xf32>,
    %c10_530 = arith.constant 10 : index
    %c0_531 = arith.constant 0 : index
    %c0_532 = arith.constant 0 : index
    %348 = vector.load %arg6[%c10_530, %c0_531, %c0_532] : memref<20x8x5xf32, #tpu.memory_space<vmem>>, vector<1x8x4xf32>
    %349 = vector.shape_cast %348 : vector<1x8x4xf32> to vector<8x4xf32>
    %c24_533 = arith.constant 24 : index
    %c0_534 = arith.constant 0 : index
    %350 = vector.load %arg9[%c24_533, %c0_534] : memref<72x16xf32, #tpu.memory_space<vmem>>, vector<8x4xf32>
    tpu.vector_store %arg9[%c24_533, %c0_534], %349 {strides = array<i32>} : memref<72x16xf32, #tpu.memory_space<vmem>>, vector<8x4xf32>,
    %c11_535 = arith.constant 11 : index
    %c0_536 = arith.constant 0 : index
    %c0_537 = arith.constant 0 : index
    %351 = vector.load %arg6[%c11_535, %c0_536, %c0_537] : memref<20x8x5xf32, #tpu.memory_space<vmem>>, vector<1x8x4xf32>
    %352 = vector.shape_cast %351 : vector<1x8x4xf32> to vector<8x4xf32>
    %c24_538 = arith.constant 24 : index
    %c4_539 = arith.constant 4 : index
    %353 = vector.load %arg9[%c24_538, %c4_539] : memref<72x16xf32, #tpu.memory_space<vmem>>, vector<8x4xf32>
    tpu.vector_store %arg9[%c24_538, %c4_539], %352 {strides = array<i32>} : memref<72x16xf32, #tpu.memory_space<vmem>>, vector<8x4xf32>,
    %c12_540 = arith.constant 12 : index
    %c0_541 = arith.constant 0 : index
    %c0_542 = arith.constant 0 : index
    %354 = vector.load %arg6[%c12_540, %c0_541, %c0_542] : memref<20x8x5xf32, #tpu.memory_space<vmem>>, vector<1x8x4xf32>
    %355 = vector.shape_cast %354 : vector<1x8x4xf32> to vector<8x4xf32>
    %c24_543 = arith.constant 24 : index
    %c8_544 = arith.constant 8 : index
    %356 = vector.load %arg9[%c24_543, %c8_544] : memref<72x16xf32, #tpu.memory_space<vmem>>, vector<8x4xf32>
    tpu.vector_store %arg9[%c24_543, %c8_544], %355 {strides = array<i32>} : memref<72x16xf32, #tpu.memory_space<vmem>>, vector<8x4xf32>,
    %c13_545 = arith.constant 13 : index
    %c0_546 = arith.constant 0 : index
    %c0_547 = arith.constant 0 : index
    %357 = vector.load %arg6[%c13_545, %c0_546, %c0_547] : memref<20x8x5xf32, #tpu.memory_space<vmem>>, vector<1x8x4xf32>
    %358 = vector.shape_cast %357 : vector<1x8x4xf32> to vector<8x4xf32>
    %c24_548 = arith.constant 24 : index
    %c12_549 = arith.constant 12 : index
    %359 = vector.load %arg9[%c24_548, %c12_549] : memref<72x16xf32, #tpu.memory_space<vmem>>, vector<8x4xf32>
    tpu.vector_store %arg9[%c24_548, %c12_549], %358 {strides = array<i32>} : memref<72x16xf32, #tpu.memory_space<vmem>>, vector<8x4xf32>,
    %c15_550 = arith.constant 15 : index
    %c0_551 = arith.constant 0 : index
    %c0_552 = arith.constant 0 : index
    %360 = vector.load %arg6[%c15_550, %c0_551, %c0_552] : memref<20x8x5xf32, #tpu.memory_space<vmem>>, vector<1x8x4xf32>
    %361 = vector.shape_cast %360 : vector<1x8x4xf32> to vector<8x4xf32>
    %c32_553 = arith.constant 32 : index
    %c0_554 = arith.constant 0 : index
    %362 = vector.load %arg9[%c32_553, %c0_554] : memref<72x16xf32, #tpu.memory_space<vmem>>, vector<8x4xf32>
    tpu.vector_store %arg9[%c32_553, %c0_554], %361 {strides = array<i32>} : memref<72x16xf32, #tpu.memory_space<vmem>>, vector<8x4xf32>,
    %c16_555 = arith.constant 16 : index
    %c0_556 = arith.constant 0 : index
    %c0_557 = arith.constant 0 : index
    %363 = vector.load %arg6[%c16_555, %c0_556, %c0_557] : memref<20x8x5xf32, #tpu.memory_space<vmem>>, vector<1x8x4xf32>
    %364 = vector.shape_cast %363 : vector<1x8x4xf32> to vector<8x4xf32>
    %c32_558 = arith.constant 32 : index
    %c4_559 = arith.constant 4 : index
    %365 = vector.load %arg9[%c32_558, %c4_559] : memref<72x16xf32, #tpu.memory_space<vmem>>, vector<8x4xf32>
    tpu.vector_store %arg9[%c32_558, %c4_559], %364 {strides = array<i32>} : memref<72x16xf32, #tpu.memory_space<vmem>>, vector<8x4xf32>,
    %c17_560 = arith.constant 17 : index
    %c0_561 = arith.constant 0 : index
    %c0_562 = arith.constant 0 : index
    %366 = vector.load %arg6[%c17_560, %c0_561, %c0_562] : memref<20x8x5xf32, #tpu.memory_space<vmem>>, vector<1x8x4xf32>
    %367 = vector.shape_cast %366 : vector<1x8x4xf32> to vector<8x4xf32>
    %c32_563 = arith.constant 32 : index
    %c8_564 = arith.constant 8 : index
    %368 = vector.load %arg9[%c32_563, %c8_564] : memref<72x16xf32, #tpu.memory_space<vmem>>, vector<8x4xf32>
    tpu.vector_store %arg9[%c32_563, %c8_564], %367 {strides = array<i32>} : memref<72x16xf32, #tpu.memory_space<vmem>>, vector<8x4xf32>,
    %c18_565 = arith.constant 18 : index
    %c0_566 = arith.constant 0 : index
    %c0_567 = arith.constant 0 : index
    %369 = vector.load %arg6[%c18_565, %c0_566, %c0_567] : memref<20x8x5xf32, #tpu.memory_space<vmem>>, vector<1x8x4xf32>
    %370 = vector.shape_cast %369 : vector<1x8x4xf32> to vector<8x4xf32>
    %c32_568 = arith.constant 32 : index
    %c12_569 = arith.constant 12 : index
    %371 = vector.load %arg9[%c32_568, %c12_569] : memref<72x16xf32, #tpu.memory_space<vmem>>, vector<8x4xf32>
    tpu.vector_store %arg9[%c32_568, %c12_569], %370 {strides = array<i32>} : memref<72x16xf32, #tpu.memory_space<vmem>>, vector<8x4xf32>,
    %c10_570 = arith.constant 10 : index
    %c0_571 = arith.constant 0 : index
    %c1_572 = arith.constant 1 : index
    %372 = vector.load %arg6[%c10_570, %c0_571, %c1_572] : memref<20x8x5xf32, #tpu.memory_space<vmem>>, vector<1x8x4xf32>
    %373 = vector.shape_cast %372 : vector<1x8x4xf32> to vector<8x4xf32>
    %c40_573 = arith.constant 40 : index
    %c0_574 = arith.constant 0 : index
    %374 = vector.load %arg9[%c40_573, %c0_574] : memref<72x16xf32, #tpu.memory_space<vmem>>, vector<8x4xf32>
    tpu.vector_store %arg9[%c40_573, %c0_574], %373 {strides = array<i32>} : memref<72x16xf32, #tpu.memory_space<vmem>>, vector<8x4xf32>,
    %c11_575 = arith.constant 11 : index
    %c0_576 = arith.constant 0 : index
    %c1_577 = arith.constant 1 : index
    %375 = vector.load %arg6[%c11_575, %c0_576, %c1_577] : memref<20x8x5xf32, #tpu.memory_space<vmem>>, vector<1x8x4xf32>
    %376 = vector.shape_cast %375 : vector<1x8x4xf32> to vector<8x4xf32>
    %c40_578 = arith.constant 40 : index
    %c4_579 = arith.constant 4 : index
    %377 = vector.load %arg9[%c40_578, %c4_579] : memref<72x16xf32, #tpu.memory_space<vmem>>, vector<8x4xf32>
    tpu.vector_store %arg9[%c40_578, %c4_579], %376 {strides = array<i32>} : memref<72x16xf32, #tpu.memory_space<vmem>>, vector<8x4xf32>,
    %c12_580 = arith.constant 12 : index
    %c0_581 = arith.constant 0 : index
    %c1_582 = arith.constant 1 : index
    %378 = vector.load %arg6[%c12_580, %c0_581, %c1_582] : memref<20x8x5xf32, #tpu.memory_space<vmem>>, vector<1x8x4xf32>
    %379 = vector.shape_cast %378 : vector<1x8x4xf32> to vector<8x4xf32>
    %c40_583 = arith.constant 40 : index
    %c8_584 = arith.constant 8 : index
    %380 = vector.load %arg9[%c40_583, %c8_584] : memref<72x16xf32, #tpu.memory_space<vmem>>, vector<8x4xf32>
    tpu.vector_store %arg9[%c40_583, %c8_584], %379 {strides = array<i32>} : memref<72x16xf32, #tpu.memory_space<vmem>>, vector<8x4xf32>,
    %c13_585 = arith.constant 13 : index
    %c0_586 = arith.constant 0 : index
    %c1_587 = arith.constant 1 : index
    %381 = vector.load %arg6[%c13_585, %c0_586, %c1_587] : memref<20x8x5xf32, #tpu.memory_space<vmem>>, vector<1x8x4xf32>
    %382 = vector.shape_cast %381 : vector<1x8x4xf32> to vector<8x4xf32>
    %c40_588 = arith.constant 40 : index
    %c12_589 = arith.constant 12 : index
    %383 = vector.load %arg9[%c40_588, %c12_589] : memref<72x16xf32, #tpu.memory_space<vmem>>, vector<8x4xf32>
    tpu.vector_store %arg9[%c40_588, %c12_589], %382 {strides = array<i32>} : memref<72x16xf32, #tpu.memory_space<vmem>>, vector<8x4xf32>,
    %c1_590 = arith.constant 1 : index
    %c0_591 = arith.constant 0 : index
    %c0_592 = arith.constant 0 : index
    %384 = vector.load %arg6[%c1_590, %c0_591, %c0_592] : memref<20x8x5xf32, #tpu.memory_space<vmem>>, vector<1x8x4xf32>
    %385 = vector.shape_cast %384 : vector<1x8x4xf32> to vector<8x4xf32>
    %c48_593 = arith.constant 48 : index
    %c0_594 = arith.constant 0 : index
    %386 = vector.load %arg9[%c48_593, %c0_594] : memref<72x16xf32, #tpu.memory_space<vmem>>, vector<8x4xf32>
    tpu.vector_store %arg9[%c48_593, %c0_594], %385 {strides = array<i32>} : memref<72x16xf32, #tpu.memory_space<vmem>>, vector<8x4xf32>,
    %c2_595 = arith.constant 2 : index
    %c0_596 = arith.constant 0 : index
    %c0_597 = arith.constant 0 : index
    %387 = vector.load %arg6[%c2_595, %c0_596, %c0_597] : memref<20x8x5xf32, #tpu.memory_space<vmem>>, vector<1x8x4xf32>
    %388 = vector.shape_cast %387 : vector<1x8x4xf32> to vector<8x4xf32>
    %c48_598 = arith.constant 48 : index
    %c4_599 = arith.constant 4 : index
    %389 = vector.load %arg9[%c48_598, %c4_599] : memref<72x16xf32, #tpu.memory_space<vmem>>, vector<8x4xf32>
    tpu.vector_store %arg9[%c48_598, %c4_599], %388 {strides = array<i32>} : memref<72x16xf32, #tpu.memory_space<vmem>>, vector<8x4xf32>,
    %c3_600 = arith.constant 3 : index
    %c0_601 = arith.constant 0 : index
    %c0_602 = arith.constant 0 : index
    %390 = vector.load %arg6[%c3_600, %c0_601, %c0_602] : memref<20x8x5xf32, #tpu.memory_space<vmem>>, vector<1x8x4xf32>
    %391 = vector.shape_cast %390 : vector<1x8x4xf32> to vector<8x4xf32>
    %c48_603 = arith.constant 48 : index
    %c8_604 = arith.constant 8 : index
    %392 = vector.load %arg9[%c48_603, %c8_604] : memref<72x16xf32, #tpu.memory_space<vmem>>, vector<8x4xf32>
    tpu.vector_store %arg9[%c48_603, %c8_604], %391 {strides = array<i32>} : memref<72x16xf32, #tpu.memory_space<vmem>>, vector<8x4xf32>,
    %c4_605 = arith.constant 4 : index
    %c0_606 = arith.constant 0 : index
    %c0_607 = arith.constant 0 : index
    %393 = vector.load %arg6[%c4_605, %c0_606, %c0_607] : memref<20x8x5xf32, #tpu.memory_space<vmem>>, vector<1x8x4xf32>
    %394 = vector.shape_cast %393 : vector<1x8x4xf32> to vector<8x4xf32>
    %c48_608 = arith.constant 48 : index
    %c12_609 = arith.constant 12 : index
    %395 = vector.load %arg9[%c48_608, %c12_609] : memref<72x16xf32, #tpu.memory_space<vmem>>, vector<8x4xf32>
    tpu.vector_store %arg9[%c48_608, %c12_609], %394 {strides = array<i32>} : memref<72x16xf32, #tpu.memory_space<vmem>>, vector<8x4xf32>,
    %c6_610 = arith.constant 6 : index
    %c0_611 = arith.constant 0 : index
    %c0_612 = arith.constant 0 : index
    %396 = vector.load %arg6[%c6_610, %c0_611, %c0_612] : memref<20x8x5xf32, #tpu.memory_space<vmem>>, vector<1x8x4xf32>
    %397 = vector.shape_cast %396 : vector<1x8x4xf32> to vector<8x4xf32>
    %c56_613 = arith.constant 56 : index
    %c0_614 = arith.constant 0 : index
    %398 = vector.load %arg9[%c56_613, %c0_614] : memref<72x16xf32, #tpu.memory_space<vmem>>, vector<8x4xf32>
    tpu.vector_store %arg9[%c56_613, %c0_614], %397 {strides = array<i32>} : memref<72x16xf32, #tpu.memory_space<vmem>>, vector<8x4xf32>,
    %c7_615 = arith.constant 7 : index
    %c0_616 = arith.constant 0 : index
    %c0_617 = arith.constant 0 : index
    %399 = vector.load %arg6[%c7_615, %c0_616, %c0_617] : memref<20x8x5xf32, #tpu.memory_space<vmem>>, vector<1x8x4xf32>
    %400 = vector.shape_cast %399 : vector<1x8x4xf32> to vector<8x4xf32>
    %c56_618 = arith.constant 56 : index
    %c4_619 = arith.constant 4 : index
    %401 = vector.load %arg9[%c56_618, %c4_619] : memref<72x16xf32, #tpu.memory_space<vmem>>, vector<8x4xf32>
    tpu.vector_store %arg9[%c56_618, %c4_619], %400 {strides = array<i32>} : memref<72x16xf32, #tpu.memory_space<vmem>>, vector<8x4xf32>,
    %c8_620 = arith.constant 8 : index
    %c0_621 = arith.constant 0 : index
    %c0_622 = arith.constant 0 : index
    %402 = vector.load %arg6[%c8_620, %c0_621, %c0_622] : memref<20x8x5xf32, #tpu.memory_space<vmem>>, vector<1x8x4xf32>
    %403 = vector.shape_cast %402 : vector<1x8x4xf32> to vector<8x4xf32>
    %c56_623 = arith.constant 56 : index
    %c8_624 = arith.constant 8 : index
    %404 = vector.load %arg9[%c56_623, %c8_624] : memref<72x16xf32, #tpu.memory_space<vmem>>, vector<8x4xf32>
    tpu.vector_store %arg9[%c56_623, %c8_624], %403 {strides = array<i32>} : memref<72x16xf32, #tpu.memory_space<vmem>>, vector<8x4xf32>,
    %c9_625 = arith.constant 9 : index
    %c0_626 = arith.constant 0 : index
    %c0_627 = arith.constant 0 : index
    %405 = vector.load %arg6[%c9_625, %c0_626, %c0_627] : memref<20x8x5xf32, #tpu.memory_space<vmem>>, vector<1x8x4xf32>
    %406 = vector.shape_cast %405 : vector<1x8x4xf32> to vector<8x4xf32>
    %c56_628 = arith.constant 56 : index
    %c12_629 = arith.constant 12 : index
    %407 = vector.load %arg9[%c56_628, %c12_629] : memref<72x16xf32, #tpu.memory_space<vmem>>, vector<8x4xf32>
    tpu.vector_store %arg9[%c56_628, %c12_629], %406 {strides = array<i32>} : memref<72x16xf32, #tpu.memory_space<vmem>>, vector<8x4xf32>,
    %c1_630 = arith.constant 1 : index
    %c0_631 = arith.constant 0 : index
    %c1_632 = arith.constant 1 : index
    %408 = vector.load %arg6[%c1_630, %c0_631, %c1_632] : memref<20x8x5xf32, #tpu.memory_space<vmem>>, vector<1x8x4xf32>
    %409 = vector.shape_cast %408 : vector<1x8x4xf32> to vector<8x4xf32>
    %c64 = arith.constant 64 : index
    %c0_633 = arith.constant 0 : index
    %410 = vector.load %arg9[%c64, %c0_633] : memref<72x16xf32, #tpu.memory_space<vmem>>, vector<8x4xf32>
    tpu.vector_store %arg9[%c64, %c0_633], %409 {strides = array<i32>} : memref<72x16xf32, #tpu.memory_space<vmem>>, vector<8x4xf32>,
    %c2_634 = arith.constant 2 : index
    %c0_635 = arith.constant 0 : index
    %c1_636 = arith.constant 1 : index
    %411 = vector.load %arg6[%c2_634, %c0_635, %c1_636] : memref<20x8x5xf32, #tpu.memory_space<vmem>>, vector<1x8x4xf32>
    %412 = vector.shape_cast %411 : vector<1x8x4xf32> to vector<8x4xf32>
    %c64_637 = arith.constant 64 : index
    %c4_638 = arith.constant 4 : index
    %413 = vector.load %arg9[%c64_637, %c4_638] : memref<72x16xf32, #tpu.memory_space<vmem>>, vector<8x4xf32>
    tpu.vector_store %arg9[%c64_637, %c4_638], %412 {strides = array<i32>} : memref<72x16xf32, #tpu.memory_space<vmem>>, vector<8x4xf32>,
    %c3_639 = arith.constant 3 : index
    %c0_640 = arith.constant 0 : index
    %c1_641 = arith.constant 1 : index
    %414 = vector.load %arg6[%c3_639, %c0_640, %c1_641] : memref<20x8x5xf32, #tpu.memory_space<vmem>>, vector<1x8x4xf32>
    %415 = vector.shape_cast %414 : vector<1x8x4xf32> to vector<8x4xf32>
    %c64_642 = arith.constant 64 : index
    %c8_643 = arith.constant 8 : index
    %416 = vector.load %arg9[%c64_642, %c8_643] : memref<72x16xf32, #tpu.memory_space<vmem>>, vector<8x4xf32>
    tpu.vector_store %arg9[%c64_642, %c8_643], %415 {strides = array<i32>} : memref<72x16xf32, #tpu.memory_space<vmem>>, vector<8x4xf32>,
    %c4_644 = arith.constant 4 : index
    %c0_645 = arith.constant 0 : index
    %c1_646 = arith.constant 1 : index
    %417 = vector.load %arg6[%c4_644, %c0_645, %c1_646] : memref<20x8x5xf32, #tpu.memory_space<vmem>>, vector<1x8x4xf32>
    %418 = vector.shape_cast %417 : vector<1x8x4xf32> to vector<8x4xf32>
    %c64_647 = arith.constant 64 : index
    %c12_648 = arith.constant 12 : index
    %419 = vector.load %arg9[%c64_647, %c12_648] : memref<72x16xf32, #tpu.memory_space<vmem>>, vector<8x4xf32>
    tpu.vector_store %arg9[%c64_647, %c12_648], %418 {strides = array<i32>} : memref<72x16xf32, #tpu.memory_space<vmem>>, vector<8x4xf32>,
    %c0_649 = arith.constant 0 : index
    %c0_650 = arith.constant 0 : index
    %420 = vector.load %arg3[%c0_649, %c0_650] : memref<8x72xf32, #tpu.memory_space<vmem>>, vector<8x72xf32>
    %c0_651 = arith.constant 0 : index
    %c0_652 = arith.constant 0 : index
    %421 = vector.load %arg9[%c0_651, %c0_652] : memref<72x16xf32, #tpu.memory_space<vmem>>, vector<72x16xf32>
    %cst_653 = arith.constant dense<0.000000e+00> : vector<8x16xf32>
    %422 = tpu.matmul %420, %421, %cst_653 {dimension_numbers = #tpu.dot_dimension_numbers<[1], [0], [0], [1], [0, 0, 1, 1], [], []>} : vector<8x72xf32>, vector<72x16xf32>, vector<8x16xf32> -> vector<8x16xf32>
    %cst_654 = arith.constant 0.000000e+00 : f32
    %423 = vector.broadcast %cst_654 : f32 to vector<8x16xf32>
    %424 = arith.cmpf oge, %422, %423 : vector<8x16xf32>
    %cst_655 = arith.constant 0.00999999977 : f32
    %425 = vector.broadcast %cst_655 : f32 to vector<8x16xf32>
    %426 = arith.mulf %422, %425 : vector<8x16xf32>
    %427 = arith.select %424, %422, %426 : vector<8x16xi1>, vector<8x16xf32>
    %cst_656 = arith.constant 0.000000e+00 : f32
    %428 = vector.broadcast %cst_656 : f32 to vector<6x8x6xf32>
    %c0_657 = arith.constant 0 : index
    %c0_658 = arith.constant 0 : index
    %c0_659 = arith.constant 0 : index
    %429 = vector.load %arg7[%c0_657, %c0_658, %c0_659] : memref<6x8x6xf32, #tpu.memory_space<vmem>>, vector<6x8x6xf32>
    tpu.vector_store %arg7[%c0_657, %c0_658, %c0_659], %428 {strides = array<i32>} : memref<6x8x6xf32, #tpu.memory_space<vmem>>, vector<6x8x6xf32>,
    %430 = vector.extract_strided_slice %427 {offsets = [0, 0], sizes = [8, 4], strides = [1, 1]} : vector<8x16xf32> to vector<8x4xf32>
    %c1_660 = arith.constant 1 : index
    %c0_661 = arith.constant 0 : index
    %c1_662 = arith.constant 1 : index
    %431 = vector.load %arg7[%c1_660, %c0_661, %c1_662] : memref<6x8x6xf32, #tpu.memory_space<vmem>>, vector<1x8x4xf32>
    %432 = vector.shape_cast %431 : vector<1x8x4xf32> to vector<8x4xf32>
    %433 = vector.shape_cast %430 : vector<8x4xf32> to vector<1x8x4xf32>
    tpu.vector_store %arg7[%c1_660, %c0_661, %c1_662], %433 {strides = array<i32>} : memref<6x8x6xf32, #tpu.memory_space<vmem>>, vector<1x8x4xf32>,
    %434 = vector.extract_strided_slice %427 {offsets = [0, 4], sizes = [8, 4], strides = [1, 1]} : vector<8x16xf32> to vector<8x4xf32>
    %c2_663 = arith.constant 2 : index
    %c0_664 = arith.constant 0 : index
    %c1_665 = arith.constant 1 : index
    %435 = vector.load %arg7[%c2_663, %c0_664, %c1_665] : memref<6x8x6xf32, #tpu.memory_space<vmem>>, vector<1x8x4xf32>
    %436 = vector.shape_cast %435 : vector<1x8x4xf32> to vector<8x4xf32>
    %437 = vector.shape_cast %434 : vector<8x4xf32> to vector<1x8x4xf32>
    tpu.vector_store %arg7[%c2_663, %c0_664, %c1_665], %437 {strides = array<i32>} : memref<6x8x6xf32, #tpu.memory_space<vmem>>, vector<1x8x4xf32>,
    %438 = vector.extract_strided_slice %427 {offsets = [0, 8], sizes = [8, 4], strides = [1, 1]} : vector<8x16xf32> to vector<8x4xf32>
    %c3_666 = arith.constant 3 : index
    %c0_667 = arith.constant 0 : index
    %c1_668 = arith.constant 1 : index
    %439 = vector.load %arg7[%c3_666, %c0_667, %c1_668] : memref<6x8x6xf32, #tpu.memory_space<vmem>>, vector<1x8x4xf32>
    %440 = vector.shape_cast %439 : vector<1x8x4xf32> to vector<8x4xf32>
    %441 = vector.shape_cast %438 : vector<8x4xf32> to vector<1x8x4xf32>
    tpu.vector_store %arg7[%c3_666, %c0_667, %c1_668], %441 {strides = array<i32>} : memref<6x8x6xf32, #tpu.memory_space<vmem>>, vector<1x8x4xf32>,
    %442 = vector.extract_strided_slice %427 {offsets = [0, 12], sizes = [8, 4], strides = [1, 1]} : vector<8x16xf32> to vector<8x4xf32>
    %c4_669 = arith.constant 4 : index
    %c0_670 = arith.constant 0 : index
    %c1_671 = arith.constant 1 : index
    %443 = vector.load %arg7[%c4_669, %c0_670, %c1_671] : memref<6x8x6xf32, #tpu.memory_space<vmem>>, vector<1x8x4xf32>
    %444 = vector.shape_cast %443 : vector<1x8x4xf32> to vector<8x4xf32>
    %445 = vector.shape_cast %442 : vector<8x4xf32> to vector<1x8x4xf32>
    tpu.vector_store %arg7[%c4_669, %c0_670, %c1_671], %445 {strides = array<i32>} : memref<6x8x6xf32, #tpu.memory_space<vmem>>, vector<1x8x4xf32>,
    %c0_672 = arith.constant 0 : index
    %c0_673 = arith.constant 0 : index
    %c0_674 = arith.constant 0 : index
    %446 = vector.load %arg7[%c0_672, %c0_673, %c0_674] : memref<6x8x6xf32, #tpu.memory_space<vmem>>, vector<1x8x4xf32>
    %447 = vector.shape_cast %446 : vector<1x8x4xf32> to vector<8x4xf32>
    %c0_675 = arith.constant 0 : index
    %c0_676 = arith.constant 0 : index
    %448 = vector.load %arg10[%c0_675, %c0_676] : memref<72x16xf32, #tpu.memory_space<vmem>>, vector<8x4xf32>
    tpu.vector_store %arg10[%c0_675, %c0_676], %447 {strides = array<i32>} : memref<72x16xf32, #tpu.memory_space<vmem>>, vector<8x4xf32>,
    %c1_677 = arith.constant 1 : index
    %c0_678 = arith.constant 0 : index
    %c0_679 = arith.constant 0 : index
    %449 = vector.load %arg7[%c1_677, %c0_678, %c0_679] : memref<6x8x6xf32, #tpu.memory_space<vmem>>, vector<1x8x4xf32>
    %450 = vector.shape_cast %449 : vector<1x8x4xf32> to vector<8x4xf32>
    %c0_680 = arith.constant 0 : index
    %c4_681 = arith.constant 4 : index
    %451 = vector.load %arg10[%c0_680, %c4_681] : memref<72x16xf32, #tpu.memory_space<vmem>>, vector<8x4xf32>
    tpu.vector_store %arg10[%c0_680, %c4_681], %450 {strides = array<i32>} : memref<72x16xf32, #tpu.memory_space<vmem>>, vector<8x4xf32>,
    %c2_682 = arith.constant 2 : index
    %c0_683 = arith.constant 0 : index
    %c0_684 = arith.constant 0 : index
    %452 = vector.load %arg7[%c2_682, %c0_683, %c0_684] : memref<6x8x6xf32, #tpu.memory_space<vmem>>, vector<1x8x4xf32>
    %453 = vector.shape_cast %452 : vector<1x8x4xf32> to vector<8x4xf32>
    %c0_685 = arith.constant 0 : index
    %c8_686 = arith.constant 8 : index
    %454 = vector.load %arg10[%c0_685, %c8_686] : memref<72x16xf32, #tpu.memory_space<vmem>>, vector<8x4xf32>
    tpu.vector_store %arg10[%c0_685, %c8_686], %453 {strides = array<i32>} : memref<72x16xf32, #tpu.memory_space<vmem>>, vector<8x4xf32>,
    %c3_687 = arith.constant 3 : index
    %c0_688 = arith.constant 0 : index
    %c0_689 = arith.constant 0 : index
    %455 = vector.load %arg7[%c3_687, %c0_688, %c0_689] : memref<6x8x6xf32, #tpu.memory_space<vmem>>, vector<1x8x4xf32>
    %456 = vector.shape_cast %455 : vector<1x8x4xf32> to vector<8x4xf32>
    %c0_690 = arith.constant 0 : index
    %c12_691 = arith.constant 12 : index
    %457 = vector.load %arg10[%c0_690, %c12_691] : memref<72x16xf32, #tpu.memory_space<vmem>>, vector<8x4xf32>
    tpu.vector_store %arg10[%c0_690, %c12_691], %456 {strides = array<i32>} : memref<72x16xf32, #tpu.memory_space<vmem>>, vector<8x4xf32>,
    %c0_692 = arith.constant 0 : index
    %c0_693 = arith.constant 0 : index
    %c1_694 = arith.constant 1 : index
    %458 = vector.load %arg7[%c0_692, %c0_693, %c1_694] : memref<6x8x6xf32, #tpu.memory_space<vmem>>, vector<1x8x4xf32>
    %459 = vector.shape_cast %458 : vector<1x8x4xf32> to vector<8x4xf32>
    %c8_695 = arith.constant 8 : index
    %c0_696 = arith.constant 0 : index
    %460 = vector.load %arg10[%c8_695, %c0_696] : memref<72x16xf32, #tpu.memory_space<vmem>>, vector<8x4xf32>
    tpu.vector_store %arg10[%c8_695, %c0_696], %459 {strides = array<i32>} : memref<72x16xf32, #tpu.memory_space<vmem>>, vector<8x4xf32>,
    %c1_697 = arith.constant 1 : index
    %c0_698 = arith.constant 0 : index
    %c1_699 = arith.constant 1 : index
    %461 = vector.load %arg7[%c1_697, %c0_698, %c1_699] : memref<6x8x6xf32, #tpu.memory_space<vmem>>, vector<1x8x4xf32>
    %462 = vector.shape_cast %461 : vector<1x8x4xf32> to vector<8x4xf32>
    %c8_700 = arith.constant 8 : index
    %c4_701 = arith.constant 4 : index
    %463 = vector.load %arg10[%c8_700, %c4_701] : memref<72x16xf32, #tpu.memory_space<vmem>>, vector<8x4xf32>
    tpu.vector_store %arg10[%c8_700, %c4_701], %462 {strides = array<i32>} : memref<72x16xf32, #tpu.memory_space<vmem>>, vector<8x4xf32>,
    %c2_702 = arith.constant 2 : index
    %c0_703 = arith.constant 0 : index
    %c1_704 = arith.constant 1 : index
    %464 = vector.load %arg7[%c2_702, %c0_703, %c1_704] : memref<6x8x6xf32, #tpu.memory_space<vmem>>, vector<1x8x4xf32>
    %465 = vector.shape_cast %464 : vector<1x8x4xf32> to vector<8x4xf32>
    %c8_705 = arith.constant 8 : index
    %c8_706 = arith.constant 8 : index
    %466 = vector.load %arg10[%c8_705, %c8_706] : memref<72x16xf32, #tpu.memory_space<vmem>>, vector<8x4xf32>
    tpu.vector_store %arg10[%c8_705, %c8_706], %465 {strides = array<i32>} : memref<72x16xf32, #tpu.memory_space<vmem>>, vector<8x4xf32>,
    %c3_707 = arith.constant 3 : index
    %c0_708 = arith.constant 0 : index
    %c1_709 = arith.constant 1 : index
    %467 = vector.load %arg7[%c3_707, %c0_708, %c1_709] : memref<6x8x6xf32, #tpu.memory_space<vmem>>, vector<1x8x4xf32>
    %468 = vector.shape_cast %467 : vector<1x8x4xf32> to vector<8x4xf32>
    %c8_710 = arith.constant 8 : index
    %c12_711 = arith.constant 12 : index
    %469 = vector.load %arg10[%c8_710, %c12_711] : memref<72x16xf32, #tpu.memory_space<vmem>>, vector<8x4xf32>
    tpu.vector_store %arg10[%c8_710, %c12_711], %468 {strides = array<i32>} : memref<72x16xf32, #tpu.memory_space<vmem>>, vector<8x4xf32>,
    %c0_712 = arith.constant 0 : index
    %c0_713 = arith.constant 0 : index
    %c2_714 = arith.constant 2 : index
    %470 = vector.load %arg7[%c0_712, %c0_713, %c2_714] : memref<6x8x6xf32, #tpu.memory_space<vmem>>, vector<1x8x4xf32>
    %471 = vector.shape_cast %470 : vector<1x8x4xf32> to vector<8x4xf32>
    %c16_715 = arith.constant 16 : index
    %c0_716 = arith.constant 0 : index
    %472 = vector.load %arg10[%c16_715, %c0_716] : memref<72x16xf32, #tpu.memory_space<vmem>>, vector<8x4xf32>
    tpu.vector_store %arg10[%c16_715, %c0_716], %471 {strides = array<i32>} : memref<72x16xf32, #tpu.memory_space<vmem>>, vector<8x4xf32>,
    %c1_717 = arith.constant 1 : index
    %c0_718 = arith.constant 0 : index
    %c2_719 = arith.constant 2 : index
    %473 = vector.load %arg7[%c1_717, %c0_718, %c2_719] : memref<6x8x6xf32, #tpu.memory_space<vmem>>, vector<1x8x4xf32>
    %474 = vector.shape_cast %473 : vector<1x8x4xf32> to vector<8x4xf32>
    %c16_720 = arith.constant 16 : index
    %c4_721 = arith.constant 4 : index
    %475 = vector.load %arg10[%c16_720, %c4_721] : memref<72x16xf32, #tpu.memory_space<vmem>>, vector<8x4xf32>
    tpu.vector_store %arg10[%c16_720, %c4_721], %474 {strides = array<i32>} : memref<72x16xf32, #tpu.memory_space<vmem>>, vector<8x4xf32>,
    %c2_722 = arith.constant 2 : index
    %c0_723 = arith.constant 0 : index
    %c2_724 = arith.constant 2 : index
    %476 = vector.load %arg7[%c2_722, %c0_723, %c2_724] : memref<6x8x6xf32, #tpu.memory_space<vmem>>, vector<1x8x4xf32>
    %477 = vector.shape_cast %476 : vector<1x8x4xf32> to vector<8x4xf32>
    %c16_725 = arith.constant 16 : index
    %c8_726 = arith.constant 8 : index
    %478 = vector.load %arg10[%c16_725, %c8_726] : memref<72x16xf32, #tpu.memory_space<vmem>>, vector<8x4xf32>
    tpu.vector_store %arg10[%c16_725, %c8_726], %477 {strides = array<i32>} : memref<72x16xf32, #tpu.memory_space<vmem>>, vector<8x4xf32>,
    %c3_727 = arith.constant 3 : index
    %c0_728 = arith.constant 0 : index
    %c2_729 = arith.constant 2 : index
    %479 = vector.load %arg7[%c3_727, %c0_728, %c2_729] : memref<6x8x6xf32, #tpu.memory_space<vmem>>, vector<1x8x4xf32>
    %480 = vector.shape_cast %479 : vector<1x8x4xf32> to vector<8x4xf32>
    %c16_730 = arith.constant 16 : index
    %c12_731 = arith.constant 12 : index
    %481 = vector.load %arg10[%c16_730, %c12_731] : memref<72x16xf32, #tpu.memory_space<vmem>>, vector<8x4xf32>
    tpu.vector_store %arg10[%c16_730, %c12_731], %480 {strides = array<i32>} : memref<72x16xf32, #tpu.memory_space<vmem>>, vector<8x4xf32>,
    %c1_732 = arith.constant 1 : index
    %c0_733 = arith.constant 0 : index
    %c0_734 = arith.constant 0 : index
    %482 = vector.load %arg7[%c1_732, %c0_733, %c0_734] : memref<6x8x6xf32, #tpu.memory_space<vmem>>, vector<1x8x4xf32>
    %483 = vector.shape_cast %482 : vector<1x8x4xf32> to vector<8x4xf32>
    %c24_735 = arith.constant 24 : index
    %c0_736 = arith.constant 0 : index
    %484 = vector.load %arg10[%c24_735, %c0_736] : memref<72x16xf32, #tpu.memory_space<vmem>>, vector<8x4xf32>
    tpu.vector_store %arg10[%c24_735, %c0_736], %483 {strides = array<i32>} : memref<72x16xf32, #tpu.memory_space<vmem>>, vector<8x4xf32>,
    %c2_737 = arith.constant 2 : index
    %c0_738 = arith.constant 0 : index
    %c0_739 = arith.constant 0 : index
    %485 = vector.load %arg7[%c2_737, %c0_738, %c0_739] : memref<6x8x6xf32, #tpu.memory_space<vmem>>, vector<1x8x4xf32>
    %486 = vector.shape_cast %485 : vector<1x8x4xf32> to vector<8x4xf32>
    %c24_740 = arith.constant 24 : index
    %c4_741 = arith.constant 4 : index
    %487 = vector.load %arg10[%c24_740, %c4_741] : memref<72x16xf32, #tpu.memory_space<vmem>>, vector<8x4xf32>
    tpu.vector_store %arg10[%c24_740, %c4_741], %486 {strides = array<i32>} : memref<72x16xf32, #tpu.memory_space<vmem>>, vector<8x4xf32>,
    %c3_742 = arith.constant 3 : index
    %c0_743 = arith.constant 0 : index
    %c0_744 = arith.constant 0 : index
    %488 = vector.load %arg7[%c3_742, %c0_743, %c0_744] : memref<6x8x6xf32, #tpu.memory_space<vmem>>, vector<1x8x4xf32>
    %489 = vector.shape_cast %488 : vector<1x8x4xf32> to vector<8x4xf32>
    %c24_745 = arith.constant 24 : index
    %c8_746 = arith.constant 8 : index
    %490 = vector.load %arg10[%c24_745, %c8_746] : memref<72x16xf32, #tpu.memory_space<vmem>>, vector<8x4xf32>
    tpu.vector_store %arg10[%c24_745, %c8_746], %489 {strides = array<i32>} : memref<72x16xf32, #tpu.memory_space<vmem>>, vector<8x4xf32>,
    %c4_747 = arith.constant 4 : index
    %c0_748 = arith.constant 0 : index
    %c0_749 = arith.constant 0 : index
    %491 = vector.load %arg7[%c4_747, %c0_748, %c0_749] : memref<6x8x6xf32, #tpu.memory_space<vmem>>, vector<1x8x4xf32>
    %492 = vector.shape_cast %491 : vector<1x8x4xf32> to vector<8x4xf32>
    %c24_750 = arith.constant 24 : index
    %c12_751 = arith.constant 12 : index
    %493 = vector.load %arg10[%c24_750, %c12_751] : memref<72x16xf32, #tpu.memory_space<vmem>>, vector<8x4xf32>
    tpu.vector_store %arg10[%c24_750, %c12_751], %492 {strides = array<i32>} : memref<72x16xf32, #tpu.memory_space<vmem>>, vector<8x4xf32>,
    %c1_752 = arith.constant 1 : index
    %c0_753 = arith.constant 0 : index
    %c1_754 = arith.constant 1 : index
    %494 = vector.load %arg7[%c1_752, %c0_753, %c1_754] : memref<6x8x6xf32, #tpu.memory_space<vmem>>, vector<1x8x4xf32>
    %495 = vector.shape_cast %494 : vector<1x8x4xf32> to vector<8x4xf32>
    %c32_755 = arith.constant 32 : index
    %c0_756 = arith.constant 0 : index
    %496 = vector.load %arg10[%c32_755, %c0_756] : memref<72x16xf32, #tpu.memory_space<vmem>>, vector<8x4xf32>
    tpu.vector_store %arg10[%c32_755, %c0_756], %495 {strides = array<i32>} : memref<72x16xf32, #tpu.memory_space<vmem>>, vector<8x4xf32>,
    %c2_757 = arith.constant 2 : index
    %c0_758 = arith.constant 0 : index
    %c1_759 = arith.constant 1 : index
    %497 = vector.load %arg7[%c2_757, %c0_758, %c1_759] : memref<6x8x6xf32, #tpu.memory_space<vmem>>, vector<1x8x4xf32>
    %498 = vector.shape_cast %497 : vector<1x8x4xf32> to vector<8x4xf32>
    %c32_760 = arith.constant 32 : index
    %c4_761 = arith.constant 4 : index
    %499 = vector.load %arg10[%c32_760, %c4_761] : memref<72x16xf32, #tpu.memory_space<vmem>>, vector<8x4xf32>
    tpu.vector_store %arg10[%c32_760, %c4_761], %498 {strides = array<i32>} : memref<72x16xf32, #tpu.memory_space<vmem>>, vector<8x4xf32>,
    %c3_762 = arith.constant 3 : index
    %c0_763 = arith.constant 0 : index
    %c1_764 = arith.constant 1 : index
    %500 = vector.load %arg7[%c3_762, %c0_763, %c1_764] : memref<6x8x6xf32, #tpu.memory_space<vmem>>, vector<1x8x4xf32>
    %501 = vector.shape_cast %500 : vector<1x8x4xf32> to vector<8x4xf32>
    %c32_765 = arith.constant 32 : index
    %c8_766 = arith.constant 8 : index
    %502 = vector.load %arg10[%c32_765, %c8_766] : memref<72x16xf32, #tpu.memory_space<vmem>>, vector<8x4xf32>
    tpu.vector_store %arg10[%c32_765, %c8_766], %501 {strides = array<i32>} : memref<72x16xf32, #tpu.memory_space<vmem>>, vector<8x4xf32>,
    %c4_767 = arith.constant 4 : index
    %c0_768 = arith.constant 0 : index
    %c1_769 = arith.constant 1 : index
    %503 = vector.load %arg7[%c4_767, %c0_768, %c1_769] : memref<6x8x6xf32, #tpu.memory_space<vmem>>, vector<1x8x4xf32>
    %504 = vector.shape_cast %503 : vector<1x8x4xf32> to vector<8x4xf32>
    %c32_770 = arith.constant 32 : index
    %c12_771 = arith.constant 12 : index
    %505 = vector.load %arg10[%c32_770, %c12_771] : memref<72x16xf32, #tpu.memory_space<vmem>>, vector<8x4xf32>
    tpu.vector_store %arg10[%c32_770, %c12_771], %504 {strides = array<i32>} : memref<72x16xf32, #tpu.memory_space<vmem>>, vector<8x4xf32>,
    %c1_772 = arith.constant 1 : index
    %c0_773 = arith.constant 0 : index
    %c2_774 = arith.constant 2 : index
    %506 = vector.load %arg7[%c1_772, %c0_773, %c2_774] : memref<6x8x6xf32, #tpu.memory_space<vmem>>, vector<1x8x4xf32>
    %507 = vector.shape_cast %506 : vector<1x8x4xf32> to vector<8x4xf32>
    %c40_775 = arith.constant 40 : index
    %c0_776 = arith.constant 0 : index
    %508 = vector.load %arg10[%c40_775, %c0_776] : memref<72x16xf32, #tpu.memory_space<vmem>>, vector<8x4xf32>
    tpu.vector_store %arg10[%c40_775, %c0_776], %507 {strides = array<i32>} : memref<72x16xf32, #tpu.memory_space<vmem>>, vector<8x4xf32>,
    %c2_777 = arith.constant 2 : index
    %c0_778 = arith.constant 0 : index
    %c2_779 = arith.constant 2 : index
    %509 = vector.load %arg7[%c2_777, %c0_778, %c2_779] : memref<6x8x6xf32, #tpu.memory_space<vmem>>, vector<1x8x4xf32>
    %510 = vector.shape_cast %509 : vector<1x8x4xf32> to vector<8x4xf32>
    %c40_780 = arith.constant 40 : index
    %c4_781 = arith.constant 4 : index
    %511 = vector.load %arg10[%c40_780, %c4_781] : memref<72x16xf32, #tpu.memory_space<vmem>>, vector<8x4xf32>
    tpu.vector_store %arg10[%c40_780, %c4_781], %510 {strides = array<i32>} : memref<72x16xf32, #tpu.memory_space<vmem>>, vector<8x4xf32>,
    %c3_782 = arith.constant 3 : index
    %c0_783 = arith.constant 0 : index
    %c2_784 = arith.constant 2 : index
    %512 = vector.load %arg7[%c3_782, %c0_783, %c2_784] : memref<6x8x6xf32, #tpu.memory_space<vmem>>, vector<1x8x4xf32>
    %513 = vector.shape_cast %512 : vector<1x8x4xf32> to vector<8x4xf32>
    %c40_785 = arith.constant 40 : index
    %c8_786 = arith.constant 8 : index
    %514 = vector.load %arg10[%c40_785, %c8_786] : memref<72x16xf32, #tpu.memory_space<vmem>>, vector<8x4xf32>
    tpu.vector_store %arg10[%c40_785, %c8_786], %513 {strides = array<i32>} : memref<72x16xf32, #tpu.memory_space<vmem>>, vector<8x4xf32>,
    %c4_787 = arith.constant 4 : index
    %c0_788 = arith.constant 0 : index
    %c2_789 = arith.constant 2 : index
    %515 = vector.load %arg7[%c4_787, %c0_788, %c2_789] : memref<6x8x6xf32, #tpu.memory_space<vmem>>, vector<1x8x4xf32>
    %516 = vector.shape_cast %515 : vector<1x8x4xf32> to vector<8x4xf32>
    %c40_790 = arith.constant 40 : index
    %c12_791 = arith.constant 12 : index
    %517 = vector.load %arg10[%c40_790, %c12_791] : memref<72x16xf32, #tpu.memory_space<vmem>>, vector<8x4xf32>
    tpu.vector_store %arg10[%c40_790, %c12_791], %516 {strides = array<i32>} : memref<72x16xf32, #tpu.memory_space<vmem>>, vector<8x4xf32>,
    %c2_792 = arith.constant 2 : index
    %c0_793 = arith.constant 0 : index
    %c0_794 = arith.constant 0 : index
    %518 = vector.load %arg7[%c2_792, %c0_793, %c0_794] : memref<6x8x6xf32, #tpu.memory_space<vmem>>, vector<1x8x4xf32>
    %519 = vector.shape_cast %518 : vector<1x8x4xf32> to vector<8x4xf32>
    %c48_795 = arith.constant 48 : index
    %c0_796 = arith.constant 0 : index
    %520 = vector.load %arg10[%c48_795, %c0_796] : memref<72x16xf32, #tpu.memory_space<vmem>>, vector<8x4xf32>
    tpu.vector_store %arg10[%c48_795, %c0_796], %519 {strides = array<i32>} : memref<72x16xf32, #tpu.memory_space<vmem>>, vector<8x4xf32>,
    %c3_797 = arith.constant 3 : index
    %c0_798 = arith.constant 0 : index
    %c0_799 = arith.constant 0 : index
    %521 = vector.load %arg7[%c3_797, %c0_798, %c0_799] : memref<6x8x6xf32, #tpu.memory_space<vmem>>, vector<1x8x4xf32>
    %522 = vector.shape_cast %521 : vector<1x8x4xf32> to vector<8x4xf32>
    %c48_800 = arith.constant 48 : index
    %c4_801 = arith.constant 4 : index
    %523 = vector.load %arg10[%c48_800, %c4_801] : memref<72x16xf32, #tpu.memory_space<vmem>>, vector<8x4xf32>
    tpu.vector_store %arg10[%c48_800, %c4_801], %522 {strides = array<i32>} : memref<72x16xf32, #tpu.memory_space<vmem>>, vector<8x4xf32>,
    %c4_802 = arith.constant 4 : index
    %c0_803 = arith.constant 0 : index
    %c0_804 = arith.constant 0 : index
    %524 = vector.load %arg7[%c4_802, %c0_803, %c0_804] : memref<6x8x6xf32, #tpu.memory_space<vmem>>, vector<1x8x4xf32>
    %525 = vector.shape_cast %524 : vector<1x8x4xf32> to vector<8x4xf32>
    %c48_805 = arith.constant 48 : index
    %c8_806 = arith.constant 8 : index
    %526 = vector.load %arg10[%c48_805, %c8_806] : memref<72x16xf32, #tpu.memory_space<vmem>>, vector<8x4xf32>
    tpu.vector_store %arg10[%c48_805, %c8_806], %525 {strides = array<i32>} : memref<72x16xf32, #tpu.memory_space<vmem>>, vector<8x4xf32>,
    %c5_807 = arith.constant 5 : index
    %c0_808 = arith.constant 0 : index
    %c0_809 = arith.constant 0 : index
    %527 = vector.load %arg7[%c5_807, %c0_808, %c0_809] : memref<6x8x6xf32, #tpu.memory_space<vmem>>, vector<1x8x4xf32>
    %528 = vector.shape_cast %527 : vector<1x8x4xf32> to vector<8x4xf32>
    %c48_810 = arith.constant 48 : index
    %c12_811 = arith.constant 12 : index
    %529 = vector.load %arg10[%c48_810, %c12_811] : memref<72x16xf32, #tpu.memory_space<vmem>>, vector<8x4xf32>
    tpu.vector_store %arg10[%c48_810, %c12_811], %528 {strides = array<i32>} : memref<72x16xf32, #tpu.memory_space<vmem>>, vector<8x4xf32>,
    %c2_812 = arith.constant 2 : index
    %c0_813 = arith.constant 0 : index
    %c1_814 = arith.constant 1 : index
    %530 = vector.load %arg7[%c2_812, %c0_813, %c1_814] : memref<6x8x6xf32, #tpu.memory_space<vmem>>, vector<1x8x4xf32>
    %531 = vector.shape_cast %530 : vector<1x8x4xf32> to vector<8x4xf32>
    %c56_815 = arith.constant 56 : index
    %c0_816 = arith.constant 0 : index
    %532 = vector.load %arg10[%c56_815, %c0_816] : memref<72x16xf32, #tpu.memory_space<vmem>>, vector<8x4xf32>
    tpu.vector_store %arg10[%c56_815, %c0_816], %531 {strides = array<i32>} : memref<72x16xf32, #tpu.memory_space<vmem>>, vector<8x4xf32>,
    %c3_817 = arith.constant 3 : index
    %c0_818 = arith.constant 0 : index
    %c1_819 = arith.constant 1 : index
    %533 = vector.load %arg7[%c3_817, %c0_818, %c1_819] : memref<6x8x6xf32, #tpu.memory_space<vmem>>, vector<1x8x4xf32>
    %534 = vector.shape_cast %533 : vector<1x8x4xf32> to vector<8x4xf32>
    %c56_820 = arith.constant 56 : index
    %c4_821 = arith.constant 4 : index
    %535 = vector.load %arg10[%c56_820, %c4_821] : memref<72x16xf32, #tpu.memory_space<vmem>>, vector<8x4xf32>
    tpu.vector_store %arg10[%c56_820, %c4_821], %534 {strides = array<i32>} : memref<72x16xf32, #tpu.memory_space<vmem>>, vector<8x4xf32>,
    %c4_822 = arith.constant 4 : index
    %c0_823 = arith.constant 0 : index
    %c1_824 = arith.constant 1 : index
    %536 = vector.load %arg7[%c4_822, %c0_823, %c1_824] : memref<6x8x6xf32, #tpu.memory_space<vmem>>, vector<1x8x4xf32>
    %537 = vector.shape_cast %536 : vector<1x8x4xf32> to vector<8x4xf32>
    %c56_825 = arith.constant 56 : index
    %c8_826 = arith.constant 8 : index
    %538 = vector.load %arg10[%c56_825, %c8_826] : memref<72x16xf32, #tpu.memory_space<vmem>>, vector<8x4xf32>
    tpu.vector_store %arg10[%c56_825, %c8_826], %537 {strides = array<i32>} : memref<72x16xf32, #tpu.memory_space<vmem>>, vector<8x4xf32>,
    %c5_827 = arith.constant 5 : index
    %c0_828 = arith.constant 0 : index
    %c1_829 = arith.constant 1 : index
    %539 = vector.load %arg7[%c5_827, %c0_828, %c1_829] : memref<6x8x6xf32, #tpu.memory_space<vmem>>, vector<1x8x4xf32>
    %540 = vector.shape_cast %539 : vector<1x8x4xf32> to vector<8x4xf32>
    %c56_830 = arith.constant 56 : index
    %c12_831 = arith.constant 12 : index
    %541 = vector.load %arg10[%c56_830, %c12_831] : memref<72x16xf32, #tpu.memory_space<vmem>>, vector<8x4xf32>
    tpu.vector_store %arg10[%c56_830, %c12_831], %540 {strides = array<i32>} : memref<72x16xf32, #tpu.memory_space<vmem>>, vector<8x4xf32>,
    %c2_832 = arith.constant 2 : index
    %c0_833 = arith.constant 0 : index
    %c2_834 = arith.constant 2 : index
    %542 = vector.load %arg7[%c2_832, %c0_833, %c2_834] : memref<6x8x6xf32, #tpu.memory_space<vmem>>, vector<1x8x4xf32>
    %543 = vector.shape_cast %542 : vector<1x8x4xf32> to vector<8x4xf32>
    %c64_835 = arith.constant 64 : index
    %c0_836 = arith.constant 0 : index
    %544 = vector.load %arg10[%c64_835, %c0_836] : memref<72x16xf32, #tpu.memory_space<vmem>>, vector<8x4xf32>
    tpu.vector_store %arg10[%c64_835, %c0_836], %543 {strides = array<i32>} : memref<72x16xf32, #tpu.memory_space<vmem>>, vector<8x4xf32>,
    %c3_837 = arith.constant 3 : index
    %c0_838 = arith.constant 0 : index
    %c2_839 = arith.constant 2 : index
    %545 = vector.load %arg7[%c3_837, %c0_838, %c2_839] : memref<6x8x6xf32, #tpu.memory_space<vmem>>, vector<1x8x4xf32>
    %546 = vector.shape_cast %545 : vector<1x8x4xf32> to vector<8x4xf32>
    %c64_840 = arith.constant 64 : index
    %c4_841 = arith.constant 4 : index
    %547 = vector.load %arg10[%c64_840, %c4_841] : memref<72x16xf32, #tpu.memory_space<vmem>>, vector<8x4xf32>
    tpu.vector_store %arg10[%c64_840, %c4_841], %546 {strides = array<i32>} : memref<72x16xf32, #tpu.memory_space<vmem>>, vector<8x4xf32>,
    %c4_842 = arith.constant 4 : index
    %c0_843 = arith.constant 0 : index
    %c2_844 = arith.constant 2 : index
    %548 = vector.load %arg7[%c4_842, %c0_843, %c2_844] : memref<6x8x6xf32, #tpu.memory_space<vmem>>, vector<1x8x4xf32>
    %549 = vector.shape_cast %548 : vector<1x8x4xf32> to vector<8x4xf32>
    %c64_845 = arith.constant 64 : index
    %c8_846 = arith.constant 8 : index
    %550 = vector.load %arg10[%c64_845, %c8_846] : memref<72x16xf32, #tpu.memory_space<vmem>>, vector<8x4xf32>
    tpu.vector_store %arg10[%c64_845, %c8_846], %549 {strides = array<i32>} : memref<72x16xf32, #tpu.memory_space<vmem>>, vector<8x4xf32>,
    %c5_847 = arith.constant 5 : index
    %c0_848 = arith.constant 0 : index
    %c2_849 = arith.constant 2 : index
    %551 = vector.load %arg7[%c5_847, %c0_848, %c2_849] : memref<6x8x6xf32, #tpu.memory_space<vmem>>, vector<1x8x4xf32>
    %552 = vector.shape_cast %551 : vector<1x8x4xf32> to vector<8x4xf32>
    %c64_850 = arith.constant 64 : index
    %c12_851 = arith.constant 12 : index
    %553 = vector.load %arg10[%c64_850, %c12_851] : memref<72x16xf32, #tpu.memory_space<vmem>>, vector<8x4xf32>
    tpu.vector_store %arg10[%c64_850, %c12_851], %552 {strides = array<i32>} : memref<72x16xf32, #tpu.memory_space<vmem>>, vector<8x4xf32>,
    %c0_852 = arith.constant 0 : index
    %c0_853 = arith.constant 0 : index
    %554 = vector.load %arg4[%c0_852, %c0_853] : memref<4x72xf32, #tpu.memory_space<vmem>>, vector<4x72xf32>
    %c0_854 = arith.constant 0 : index
    %c0_855 = arith.constant 0 : index
    %555 = vector.load %arg10[%c0_854, %c0_855] : memref<72x16xf32, #tpu.memory_space<vmem>>, vector<72x16xf32>
    %cst_856 = arith.constant dense<0.000000e+00> : vector<4x16xf32>
    %556 = tpu.matmul %554, %555, %cst_856 {dimension_numbers = #tpu.dot_dimension_numbers<[1], [0], [0], [1], [0, 0, 1, 1], [], []>} : vector<4x72xf32>, vector<72x16xf32>, vector<4x16xf32> -> vector<4x16xf32>
    %c0_857 = arith.constant 0 : index
    %c0_858 = arith.constant 0 : index
    %c0_859 = arith.constant 0 : index
    %557 = vector.load %arg5[%c0_857, %c0_858, %c0_859] : memref<1x4x16xf32, #tpu.memory_space<vmem>>, vector<1x4x16xf32>
    %558 = vector.shape_cast %557 : vector<1x4x16xf32> to vector<4x16xf32>
    %559 = vector.shape_cast %556 : vector<4x16xf32> to vector<1x4x16xf32>
    tpu.vector_store %arg5[%c0_857, %c0_858, %c0_859], %559 {strides = array<i32>} : memref<1x4x16xf32, #tpu.memory_space<vmem>>, vector<1x4x16xf32>,
    return
  }
  func.func @transform_0(%arg0: i32) -> (i32, i32, i32, i32) {
    %c0_i32 = arith.constant 0 : i32
    %c0_i32_0 = arith.constant 0 : i32
    %c0_i32_1 = arith.constant 0 : i32
    %c0_i32_2 = arith.constant 0 : i32
    return %arg0, %c0_i32, %c0_i32_0, %c0_i32_1 : i32, i32, i32, i32
  }
  func.func @transform_1(%arg0: i32) -> (i32, i32) {
    %c0_i32 = arith.constant 0 : i32
    %c0_i32_0 = arith.constant 0 : i32
    %c0_i32_1 = arith.constant 0 : i32
    return %c0_i32, %c0_i32_0 : i32, i32
  }
  func.func @transform_2(%arg0: i32) -> (i32, i32) {
    %c0_i32 = arith.constant 0 : i32
    %c0_i32_0 = arith.constant 0 : i32
    %c0_i32_1 = arith.constant 0 : i32
    return %c0_i32, %c0_i32_0 : i32, i32
  }
  func.func @transform_3(%arg0: i32) -> (i32, i32) {
    %c0_i32 = arith.constant 0 : i32
    %c0_i32_0 = arith.constant 0 : i32
    %c0_i32_1 = arith.constant 0 : i32
    return %c0_i32, %c0_i32_0 : i32, i32
  }
  func.func @transform_4(%arg0: i32) -> (i32, i32, i32) {
    %c0_i32 = arith.constant 0 : i32
    %c0_i32_0 = arith.constant 0 : i32
    %c0_i32_1 = arith.constant 0 : i32
    return %arg0, %c0_i32, %c0_i32_0 : i32, i32, i32
  }
}

</mosaic_0001>

<llo_original>
// kernel: _down_block_pallas.1
$region0: #{_down_block_pallas.1}
  #allocation0 [shape = 'u32[]', space=smem, size = 0x4, offset = 0x4, fixed_abs, tag = 'smem constant byte address 0x4 - core index']
  #allocation1 [shape = 'u32[144,128]{1,0:T(1,128)}', space=vmem, size = 0x12000, scoped, tag = 'internal scratch']
  #allocation2 [shape = 'f32[20,8,5]{2,1,0:T(8,128)}', space=vmem, size = 0x14000, scoped, tag = 'scratch operand']
  #allocation3 [shape = 'f32[6,8,6]{2,1,0:T(8,128)}', space=vmem, size = 0x6000, scoped, tag = 'scratch operand']
  #allocation4 [shape = 'f32[36,64]{1,0:T(8,128)}', space=vmem, size = 0x5000, scoped, tag = 'scratch operand']
  #allocation5 [shape = 'f32[72,16]{1,0:T(8,128)}', space=vmem, size = 0x9000, scoped, tag = 'scratch operand']
  #allocation6 [shape = 'f32[72,16]{1,0:T(8,128)}', space=vmem, size = 0x9000, scoped, tag = 'scratch operand']
  %s0 = inlined_call_operand.vmem [shape: f32[2,36,4,9], index: 0, kind: input, shape index: {}]
  %s1 = inlined_call_operand.vmem [shape: f32[8,36], index: 1, kind: input, shape index: {}]
  %s2 = inlined_call_operand.vmem [shape: f32[8,72], index: 2, kind: input, shape index: {}]
  %s3 = inlined_call_operand.vmem [shape: f32[4,72], index: 3, kind: input, shape index: {}]
  %s4 = inlined_call_operand.vmem [shape: f32[2,4,16], index: 4, kind: output, shape index: {}]
  %s5 = sld [smem:[#allocation0]]
  $region49: #{_down_block_pallas.1} parent=0
    _
  %s7 = ssub.s32 1, %s5
  %s8 = scalar_select 0, %s7, %s5
  loop: start=0, step=1, limit=4
  $region2: #{_down_block_pallas.1} parent=0 // loop_pre_header
    _
  $region3: #{_down_block_pallas.1} parent=0 // loop_header
    %s10 = sphi 0, %s14
    %p11 = scmp.ge.s32.totalorder %s10, 4
    %s20 = sphi 0, %s22
    %s23 = sphi 0, %s20
    %s24 = sphi 0, %s23
    %s40 = sphi 0, %s24
    %s44 = sphi 0, %s44
    %s46 = sphi 0, %s44
    %s47 = sphi 0, %s46
    %s61 = sphi 0, %s47
    %s65 = sphi 0, %s65
    %s67 = sphi 0, %s65
    %s68 = sphi 0, %s67
    %s82 = sphi 0, %s68
    %s86 = sphi 0, %s86
    %s88 = sphi 0, %s86
    %s89 = sphi 0, %s88
    %s103 = sphi 0, %s89
    %s109 = sphi 0, %s111
    %s112 = sphi 0, %s109
    %s113 = sphi 0, %s112
    %s129 = sphi 0, %s113
  $region4: #{_down_block_pallas.1} parent=0 // loop_header_branch
    %13 = sbr.rel (%p11) target = $region8
  $region5: #{_down_block_pallas.1} parent=0 // loop_body
    %s15 = ssub.s32 %s10, 1
    %s16 = ssub.s32 %s10, 2
    %s17 = sadd.s32 %s10, 1
    %s18 = ssub.s32 %s10, %s17
    %p19 = scmp.eq.s32.totalorder %s18, 0
    %s21 = sadd.s32 %s20, 1
    %s22 = scalar_select %p19, %s20, %s21
    %p25 = pneg %p19
    %p26 = scmp.eq.s32.totalorder %s10, 1
    %p27 = por %p25, %p26
    %p28 = scmp.ne.s32.totalorder %s20, %s23
    %p29 = scmp.eq.s32.totalorder %s10, 0
    %p30 = por %p28, %p29
    %p31 = scmp.ne.s32.totalorder %s20, %s23
    %p32 = scmp.eq.s32.totalorder %s15, 1
    %p33 = por %p31, %p32
    %p34 = scmp.ne.s32.totalorder %s23, %s24
    %p35 = scmp.eq.s32.totalorder %s15, 0
    %p36 = por %p34, %p35
    %p37 = scmp.ne.s32.totalorder %s23, %s24
    %p38 = scmp.eq.s32.totalorder %s16, 1
    %p39 = por %p37, %p38
    %p41 = scmp.ne.s32.totalorder %s24, %s40
    %p42 = scmp.eq.s32.totalorder %s16, 0
    %p43 = por %p41, %p42
    %s45 = sadd.s32 %s44, 1
    %p48 = scmp.eq.s32.totalorder %s10, 1
    %p49 = scmp.ne.s32.totalorder %s44, %s46
    %p50 = scmp.eq.s32.totalorder %s10, 0
    %p51 = por %p49, %p50
    %p52 = scmp.ne.s32.totalorder %s44, %s46
    %p53 = scmp.eq.s32.totalorder %s15, 1
    %p54 = por %p52, %p53
    %p55 = scmp.ne.s32.totalorder %s46, %s47
    %p56 = scmp.eq.s32.totalorder %s15, 0
    %p57 = por %p55, %p56
    %p58 = scmp.ne.s32.totalorder %s46, %s47
    %p59 = scmp.eq.s32.totalorder %s16, 1
    %p60 = por %p58, %p59
    %p62 = scmp.ne.s32.totalorder %s47, %s61
    %p63 = scmp.eq.s32.totalorder %s16, 0
    %p64 = por %p62, %p63
    %s66 = sadd.s32 %s65, 1
    %p69 = scmp.eq.s32.totalorder %s10, 1
    %p70 = scmp.ne.s32.totalorder %s65, %s67
    %p71 = scmp.eq.s32.totalorder %s10, 0
    %p72 = por %p70, %p71
    %p73 = scmp.ne.s32.totalorder %s65, %s67
    %p74 = scmp.eq.s32.totalorder %s15, 1
    %p75 = por %p73, %p74
    %p76 = scmp.ne.s32.totalorder %s67, %s68
    %p77 = scmp.eq.s32.totalorder %s15, 0
    %p78 = por %p76, %p77
    %p79 = scmp.ne.s32.totalorder %s67, %s68
    %p80 = scmp.eq.s32.totalorder %s16, 1
    %p81 = por %p79, %p80
    %p83 = scmp.ne.s32.totalorder %s68, %s82
    %p84 = scmp.eq.s32.totalorder %s16, 0
    %p85 = por %p83, %p84
    %s87 = sadd.s32 %s86, 1
    %p90 = scmp.eq.s32.totalorder %s10, 1
    %p91 = scmp.ne.s32.totalorder %s86, %s88
    %p92 = scmp.eq.s32.totalorder %s10, 0
    %p93 = por %p91, %p92
    %p94 = scmp.ne.s32.totalorder %s86, %s88
    %p95 = scmp.eq.s32.totalorder %s15, 1
    %p96 = por %p94, %p95
    %p97 = scmp.ne.s32.totalorder %s88, %s89
    %p98 = scmp.eq.s32.totalorder %s15, 0
    %p99 = por %p97, %p98
    %p100 = scmp.ne.s32.totalorder %s88, %s89
    %p101 = scmp.eq.s32.totalorder %s16, 1
    %p102 = por %p100, %p101
    %p104 = scmp.ne.s32.totalorder %s89, %s103
    %p105 = scmp.eq.s32.totalorder %s16, 0
    %p106 = por %p104, %p105
    %s107 = ssub.s32 %s10, %s17
    %p108 = scmp.eq.s32.totalorder %s107, 0
    %s110 = sadd.s32 %s109, 1
    %s111 = scalar_select %p108, %s109, %s110
    %p114 = pneg %p108
    %p115 = scmp.eq.s32.totalorder %s10, 1
    %p116 = por %p114, %p115
    %p117 = scmp.ne.s32.totalorder %s109, %s112
    %p118 = scmp.eq.s32.totalorder %s10, 0
    %p119 = por %p117, %p118
    %p120 = scmp.ne.s32.totalorder %s109, %s112
    %p121 = scmp.eq.s32.totalorder %s15, 1
    %p122 = por %p120, %p121
    %p123 = scmp.ne.s32.totalorder %s112, %s113
    %p124 = scmp.eq.s32.totalorder %s15, 0
    %p125 = por %p123, %p124
    %p126 = scmp.ne.s32.totalorder %s112, %s113
    %p127 = scmp.eq.s32.totalorder %s16, 1
    %p128 = por %p126, %p127
    %p130 = scmp.ne.s32.totalorder %s113, %s129
    %p131 = scmp.eq.s32.totalorder %s16, 0
    %p132 = por %p130, %p131
    %p133 = scmp.le.s32.totalorder 1, %s10
    %p134 = scmp.lt.s32.totalorder %s10, 3
    %p135 = pnand %p133, %p134
    %p136 = pneg %p135
    // Predicated region
    $region9: #{_down_block_pallas.1} parent=5 // pred_check
      _
    $region10: #{_down_block_pallas.1} parent=5 // pred_check_branch
      %138 = sbr.rel (%p135) target = $region12
    $region11: #{_down_block_pallas.1} parent=5 // pred_region
      %s139 = ssub.s32 %s10, 1
      // Predicated region
      $region13: #{_down_block_pallas.1} parent=11 // pred_check
        %p140 = pneg %p57
      $region14: #{_down_block_pallas.1} parent=11 // pred_check_branch
        %142 = sbr.rel (%p140) target = $region16
      $region15: #{_down_block_pallas.1} parent=11 // pred_region
        _
      $region16: #{_down_block_pallas.1} parent=11 // pred_fallthru
        _
      // Predicated region
      $region17: #{_down_block_pallas.1} parent=11 // pred_check
        %p143 = pneg %p78
      $region18: #{_down_block_pallas.1} parent=11 // pred_check_branch
        %145 = sbr.rel (%p143) target = $region20
      $region19: #{_down_block_pallas.1} parent=11 // pred_region
        _
      $region20: #{_down_block_pallas.1} parent=11 // pred_fallthru
        _
      // Predicated region
      $region21: #{_down_block_pallas.1} parent=11 // pred_check
        %p146 = pneg %p99
      $region22: #{_down_block_pallas.1} parent=11 // pred_check_branch
        %148 = sbr.rel (%p146) target = $region24
      $region23: #{_down_block_pallas.1} parent=11 // pred_region
        _
      $region24: #{_down_block_pallas.1} parent=11 // pred_fallthru
        _
    $region12: #{_down_block_pallas.1} parent=5 // pred_fallthru
      _
    %p149 = scmp.lt.s32.totalorder %s10, 2
    // Predicated region
    $region25: #{_down_block_pallas.1} parent=5 // pred_check
      %p150 = pneg %p149
    $region26: #{_down_block_pallas.1} parent=5 // pred_check_branch
      %152 = sbr.rel (%p150) target = $region28
    $region27: #{_down_block_pallas.1} parent=5 // pred_region
      // Predicated region
      $region29: #{_down_block_pallas.1} parent=27 // pred_check
        %p153 = pneg %p30
      $region30: #{_down_block_pallas.1} parent=27 // pred_check_branch
        %155 = sbr.rel (%p153) target = $region32
      $region31: #{_down_block_pallas.1} parent=27 // pred_region
        %p156 = scmp.lt.s32.totalorder %s10, 1
        %s157 = scalar_select %p156, %s10, 1
        %s158 = smul.addr %s157, 36
        %s159 = smul.addr %s158, 4
        %s160 = scalar_lea.vmem %s0, %s159
      $region32: #{_down_block_pallas.1} parent=27 // pred_fallthru
        _
    $region28: #{_down_block_pallas.1} parent=5 // pred_fallthru
      _
    %p161 = scmp.le.s32.totalorder 1, %s10
    %p162 = scmp.lt.s32.totalorder %s10, 3
    %p163 = pnand %p161, %p162
    %p164 = pneg %p163
    // Predicated region
    $region33: #{_down_block_pallas.1} parent=5 // pred_check
      _
    $region34: #{_down_block_pallas.1} parent=5 // pred_check_branch
      %166 = sbr.rel (%p163) target = $region36
    $region35: #{_down_block_pallas.1} parent=5 // pred_region
      %s167 = ssub.s32 %s10, 1
      %p168 = scmp.lt.s32.totalorder %s15, 1
      %s169 = scalar_select %p168, %s15, 1
      %s170 = smul.addr %s169, 36
      %s171 = smul.addr %s170, 4
      %s172 = scalar_lea.vmem %s0, %s171
      %p173 = pneg %p36
      %p174 = pneg %p33
      %p175 = pneg %p57
      %p176 = pneg %p54
      %p177 = pneg %p78
      %p178 = pneg %p75
      %p179 = pneg %p99
      %p180 = pneg %p96
      %p181 = pneg %p125
      %p182 = pneg %p122
      %p183 = scmp.lt.s32.totalorder %s15, 1
      %s184 = scalar_select %p183, %s15, 1
      %s185 = smul.addr %s184, 4
      %s186 = scalar_lea.vmem %s4, %s185
      %p187 = scmp.lt.s32.totalorder %s15, 1
      %s188 = scalar_select %p187, %s15, 1
      %s189 = smul.addr %s188, 36
      %s190 = smul.addr %s189, 4
      %s191 = scalar_lea.vmem %s0, %s190
      %p192 = scmp.lt.s32.totalorder %s15, 1
      %s193 = scalar_select %p192, %s15, 1
      %s194 = smul.addr %s193, 4
      %s195 = scalar_lea.vmem %s4, %s194
      %v196 = vld [vmem:[%s191] sm:$0xf]
      %vm197 = vcmask 60416
      %198 = vst.msk [vmem:[#allocation4] sm:$0xf] %vm197, %v196
      %s199 = scalar_lea.vmem %s191, 4
      %v200 = vld [vmem:[%s199] sm:$0xf]
      %202 = vrot.lane.b32.xlu0 %v200, 8
      %v203 = vpop.permute.xlu0 %202
      %vm205 = vcmask 126016
      %206 = vst.msk [vmem:[#allocation4] sm:$0xf] %vm205, %v203
      %s207 = scalar_lea.vmem %s191, 8
      %v208 = vld [vmem:[%s207] sm:$0xf]
      %210 = vrot.lane.b32.xlu0 %v208, 16
      %v211 = vpop.permute.xlu0 %210
      %vm213 = vcmask 191616
      %214 = vst.msk [vmem:[#allocation4] sm:$0xf] %vm213, %v211
      %s215 = scalar_lea.vmem %s191, 12
      %v216 = vld [vmem:[%s215] sm:$0xf]
      %218 = vrot.lane.b32.xlu0 %v216, 24
      %v219 = vpop.permute.xlu0 %218
      %vm221 = vcmask 257216
      %222 = vst.msk [vmem:[#allocation4] sm:$0xf] %vm221, %v219
      %s223 = scalar_lea.vmem %s191, 16
      %v224 = vld [vmem:[%s223] sm:$0xf]
      %226 = vrot.lane.b32.xlu0 %v224, 32
      %v227 = vpop.permute.xlu0 %226
      %vm229 = vcmask 322816
      %230 = vst.msk [vmem:[#allocation4] sm:$0xf] %vm229, %v227
      %s231 = scalar_lea.vmem %s191, 20
      %v232 = vld [vmem:[%s231] sm:$0xf]
      %234 = vrot.lane.b32.xlu0 %v232, 40
      %v235 = vpop.permute.xlu0 %234
      %vm237 = vcmask 388416
      %238 = vst.msk [vmem:[#allocation4] sm:$0xf] %vm237, %v235
      %s239 = scalar_lea.vmem %s191, 24
      %v240 = vld [vmem:[%s239] sm:$0xf]
      %242 = vrot.lane.b32.xlu0 %v240, 48
      %v243 = vpop.permute.xlu0 %242
      %vm245 = vcmask 454016
      %246 = vst.msk [vmem:[#allocation4] sm:$0xf] %vm245, %v243
      %s247 = scalar_lea.vmem %s191, 28
      %v248 = vld [vmem:[%s247] sm:$0xf]
      %250 = vrot.lane.b32.xlu0 %v248, 56
      %v251 = vpop.permute.xlu0 %250
      %vm253 = vcmask 519616
      %254 = vst.msk [vmem:[#allocation4] sm:$0xf] %vm253, %v251
      %s255 = scalar_lea.vmem %s191, 36
      %v256 = vld [vmem:[%s255] sm:$0xf]
      %257 = vst.msk [vmem:[#allocation4 + $0x4] sm:$0xf] %vm197, %v256
      %s258 = scalar_lea.vmem %s191, 40
      %v259 = vld [vmem:[%s258] sm:$0xf]
      %261 = vrot.lane.b32.xlu0 %v259, 8
      %v262 = vpop.permute.xlu0 %261
      %264 = vst.msk [vmem:[#allocation4 + $0x4] sm:$0xf] %vm205, %v262
      %s265 = scalar_lea.vmem %s191, 44
      %v266 = vld [vmem:[%s265] sm:$0xf]
      %268 = vrot.lane.b32.xlu0 %v266, 16
      %v269 = vpop.permute.xlu0 %268
      %271 = vst.msk [vmem:[#allocation4 + $0x4] sm:$0xf] %vm213, %v269
      %s272 = scalar_lea.vmem %s191, 48
      %v273 = vld [vmem:[%s272] sm:$0xf]
      %275 = vrot.lane.b32.xlu0 %v273, 24
      %v276 = vpop.permute.xlu0 %275
      %278 = vst.msk [vmem:[#allocation4 + $0x4] sm:$0xf] %vm221, %v276
      %s279 = scalar_lea.vmem %s191, 52
      %v280 = vld [vmem:[%s279] sm:$0xf]
      %282 = vrot.lane.b32.xlu0 %v280, 32
      %v283 = vpop.permute.xlu0 %282
      %285 = vst.msk [vmem:[#allocation4 + $0x4] sm:$0xf] %vm229, %v283
      %s286 = scalar_lea.vmem %s191, 56
      %v287 = vld [vmem:[%s286] sm:$0xf]
      %289 = vrot.lane.b32.xlu0 %v287, 40
      %v290 = vpop.permute.xlu0 %289
      %292 = vst.msk [vmem:[#allocation4 + $0x4] sm:$0xf] %vm237, %v290
      %s293 = scalar_lea.vmem %s191, 60
      %v294 = vld [vmem:[%s293] sm:$0xf]
      %296 = vrot.lane.b32.xlu0 %v294, 48
      %v297 = vpop.permute.xlu0 %296
      %299 = vst.msk [vmem:[#allocation4 + $0x4] sm:$0xf] %vm245, %v297
      %s300 = scalar_lea.vmem %s191, 64
      %v301 = vld [vmem:[%s300] sm:$0xf]
      %303 = vrot.lane.b32.xlu0 %v301, 56
      %v304 = vpop.permute.xlu0 %303
      %306 = vst.msk [vmem:[#allocation4 + $0x4] sm:$0xf] %vm253, %v304
      %v307 = vld [vmem:[%s191] sm:$0xf]
      %309 = vrot.lane.b32.xlu0 %v307, 127
      %v310 = vpop.permute.xlu0 %309
      %312 = vst.msk [vmem:[#allocation4 + $0x8] sm:$0xf] %vm197, %v310
      %v313 = vld [vmem:[%s199] sm:$0xf]
      %315 = vrot.lane.b32.xlu0 %v313, 7
      %v316 = vpop.permute.xlu0 %315
      %318 = vst.msk [vmem:[#allocation4 + $0x8] sm:$0xf] %vm205, %v316
      %v319 = vld [vmem:[%s207] sm:$0xf]
      %321 = vrot.lane.b32.xlu0 %v319, 15
      %v322 = vpop.permute.xlu0 %321
      %324 = vst.msk [vmem:[#allocation4 + $0x8] sm:$0xf] %vm213, %v322
      %v325 = vld [vmem:[%s215] sm:$0xf]
      %327 = vrot.lane.b32.xlu0 %v325, 23
      %v328 = vpop.permute.xlu0 %327
      %330 = vst.msk [vmem:[#allocation4 + $0x8] sm:$0xf] %vm221, %v328
      %v331 = vld [vmem:[%s223] sm:$0xf]
      %333 = vrot.lane.b32.xlu0 %v331, 31
      %v334 = vpop.permute.xlu0 %333
      %336 = vst.msk [vmem:[#allocation4 + $0x8] sm:$0xf] %vm229, %v334
      %v337 = vld [vmem:[%s231] sm:$0xf]
      %339 = vrot.lane.b32.xlu0 %v337, 39
      %v340 = vpop.permute.xlu0 %339
      %342 = vst.msk [vmem:[#allocation4 + $0x8] sm:$0xf] %vm237, %v340
      %v343 = vld [vmem:[%s239] sm:$0xf]
      %345 = vrot.lane.b32.xlu0 %v343, 47
      %v346 = vpop.permute.xlu0 %345
      %348 = vst.msk [vmem:[#allocation4 + $0x8] sm:$0xf] %vm245, %v346
      %v349 = vld [vmem:[%s247] sm:$0xf]
      %351 = vrot.lane.b32.xlu0 %v349, 55
      %v352 = vpop.permute.xlu0 %351
      %354 = vst.msk [vmem:[#allocation4 + $0x8] sm:$0xf] %vm253, %v352
      %s355 = scalar_lea.vmem %s191, 72
      %v356 = vld [vmem:[%s355] sm:$0xf]
      %357 = vst.msk [vmem:[#allocation4 + $0xc] sm:$0xf] %vm197, %v356
      %s358 = scalar_lea.vmem %s191, 76
      %v359 = vld [vmem:[%s358] sm:$0xf]
      %361 = vrot.lane.b32.xlu0 %v359, 8
      %v362 = vpop.permute.xlu0 %361
      %364 = vst.msk [vmem:[#allocation4 + $0xc] sm:$0xf] %vm205, %v362
      %s365 = scalar_lea.vmem %s191, 80
      %v366 = vld [vmem:[%s365] sm:$0xf]
      %368 = vrot.lane.b32.xlu0 %v366, 16
      %v369 = vpop.permute.xlu0 %368
      %371 = vst.msk [vmem:[#allocation4 + $0xc] sm:$0xf] %vm213, %v369
      %s372 = scalar_lea.vmem %s191, 84
      %v373 = vld [vmem:[%s372] sm:$0xf]
      %375 = vrot.lane.b32.xlu0 %v373, 24
      %v376 = vpop.permute.xlu0 %375
      %378 = vst.msk [vmem:[#allocation4 + $0xc] sm:$0xf] %vm221, %v376
      %s379 = scalar_lea.vmem %s191, 88
      %v380 = vld [vmem:[%s379] sm:$0xf]
      %382 = vrot.lane.b32.xlu0 %v380, 32
      %v383 = vpop.permute.xlu0 %382
      %385 = vst.msk [vmem:[#allocation4 + $0xc] sm:$0xf] %vm229, %v383
      %s386 = scalar_lea.vmem %s191, 92
      %v387 = vld [vmem:[%s386] sm:$0xf]
      %389 = vrot.lane.b32.xlu0 %v387, 40
      %v390 = vpop.permute.xlu0 %389
      %392 = vst.msk [vmem:[#allocation4 + $0xc] sm:$0xf] %vm237, %v390
      %s393 = scalar_lea.vmem %s191, 96
      %v394 = vld [vmem:[%s393] sm:$0xf]
      %396 = vrot.lane.b32.xlu0 %v394, 48
      %v397 = vpop.permute.xlu0 %396
      %399 = vst.msk [vmem:[#allocation4 + $0xc] sm:$0xf] %vm245, %v397
      %s400 = scalar_lea.vmem %s191, 100
      %v401 = vld [vmem:[%s400] sm:$0xf]
      %403 = vrot.lane.b32.xlu0 %v401, 56
      %v404 = vpop.permute.xlu0 %403
      %406 = vst.msk [vmem:[#allocation4 + $0xc] sm:$0xf] %vm253, %v404
      %s407 = scalar_lea.vmem %s191, 108
      %v408 = vld [vmem:[%s407] sm:$0xf]
      %409 = vst.msk [vmem:[#allocation4 + $0x10] sm:$0xf] %vm197, %v408
      %s410 = scalar_lea.vmem %s191, 112
      %v411 = vld [vmem:[%s410] sm:$0xf]
      %413 = vrot.lane.b32.xlu0 %v411, 8
      %v414 = vpop.permute.xlu0 %413
      %416 = vst.msk [vmem:[#allocation4 + $0x10] sm:$0xf] %vm205, %v414
      %s417 = scalar_lea.vmem %s191, 116
      %v418 = vld [vmem:[%s417] sm:$0xf]
      %420 = vrot.lane.b32.xlu0 %v418, 16
      %v421 = vpop.permute.xlu0 %420
      %423 = vst.msk [vmem:[#allocation4 + $0x10] sm:$0xf] %vm213, %v421
      %s424 = scalar_lea.vmem %s191, 120
      %v425 = vld [vmem:[%s424] sm:$0xf]
      %427 = vrot.lane.b32.xlu0 %v425, 24
      %v428 = vpop.permute.xlu0 %427
      %430 = vst.msk [vmem:[#allocation4 + $0x10] sm:$0xf] %vm221, %v428
      %s431 = scalar_lea.vmem %s191, 124
      %v432 = vld [vmem:[%s431] sm:$0xf]
      %434 = vrot.lane.b32.xlu0 %v432, 32
      %v435 = vpop.permute.xlu0 %434
      %437 = vst.msk [vmem:[#allocation4 + $0x10] sm:$0xf] %vm229, %v435
      %s438 = scalar_lea.vmem %s191, 128
      %v439 = vld [vmem:[%s438] sm:$0xf]
      %441 = vrot.lane.b32.xlu0 %v439, 40
      %v442 = vpop.permute.xlu0 %441
      %444 = vst.msk [vmem:[#allocation4 + $0x10] sm:$0xf] %vm237, %v442
      %s445 = scalar_lea.vmem %s191, 132
      %v446 = vld [vmem:[%s445] sm:$0xf]
      %448 = vrot.lane.b32.xlu0 %v446, 48
      %v449 = vpop.permute.xlu0 %448
      %451 = vst.msk [vmem:[#allocation4 + $0x10] sm:$0xf] %vm245, %v449
      %s452 = scalar_lea.vmem %s191, 136
      %v453 = vld [vmem:[%s452] sm:$0xf]
      %455 = vrot.lane.b32.xlu0 %v453, 56
      %v456 = vpop.permute.xlu0 %455
      %458 = vst.msk [vmem:[#allocation4 + $0x10] sm:$0xf] %vm253, %v456
      %v459 = vld [vmem:[%s355] sm:$0xf]
      %461 = vrot.lane.b32.xlu0 %v459, 127
      %v462 = vpop.permute.xlu0 %461
      %464 = vst.msk [vmem:[#allocation4 + $0x14] sm:$0xf] %vm197, %v462
      %v465 = vld [vmem:[%s358] sm:$0xf]
      %467 = vrot.lane.b32.xlu0 %v465, 7
      %v468 = vpop.permute.xlu0 %467
      %470 = vst.msk [vmem:[#allocation4 + $0x14] sm:$0xf] %vm205, %v468
      %v471 = vld [vmem:[%s365] sm:$0xf]
      %473 = vrot.lane.b32.xlu0 %v471, 15
      %v474 = vpop.permute.xlu0 %473
      %476 = vst.msk [vmem:[#allocation4 + $0x14] sm:$0xf] %vm213, %v474
      %v477 = vld [vmem:[%s372] sm:$0xf]
      %479 = vrot.lane.b32.xlu0 %v477, 23
      %v480 = vpop.permute.xlu0 %479
      %482 = vst.msk [vmem:[#allocation4 + $0x14] sm:$0xf] %vm221, %v480
      %v483 = vld [vmem:[%s379] sm:$0xf]
      %485 = vrot.lane.b32.xlu0 %v483, 31
      %v486 = vpop.permute.xlu0 %485
      %488 = vst.msk [vmem:[#allocation4 + $0x14] sm:$0xf] %vm229, %v486
      %v489 = vld [vmem:[%s386] sm:$0xf]
      %491 = vrot.lane.b32.xlu0 %v489, 39
      %v492 = vpop.permute.xlu0 %491
      %494 = vst.msk [vmem:[#allocation4 + $0x14] sm:$0xf] %vm237, %v492
      %v495 = vld [vmem:[%s393] sm:$0xf]
      %497 = vrot.lane.b32.xlu0 %v495, 47
      %v498 = vpop.permute.xlu0 %497
      %500 = vst.msk [vmem:[#allocation4 + $0x14] sm:$0xf] %vm245, %v498
      %v501 = vld [vmem:[%s400] sm:$0xf]
      %503 = vrot.lane.b32.xlu0 %v501, 55
      %v504 = vpop.permute.xlu0 %503
      %506 = vst.msk [vmem:[#allocation4 + $0x14] sm:$0xf] %vm253, %v504
      %v507 = vld [vmem:[%s199] sm:$0xf]
      %508 = vst.msk [vmem:[#allocation4 + $0x18] sm:$0xf] %vm197, %v507
      %v509 = vld [vmem:[%s207] sm:$0xf]
      %511 = vrot.lane.b32.xlu0 %v509, 8
      %v512 = vpop.permute.xlu0 %511
      %514 = vst.msk [vmem:[#allocation4 + $0x18] sm:$0xf] %vm205, %v512
      %v515 = vld [vmem:[%s215] sm:$0xf]
      %517 = vrot.lane.b32.xlu0 %v515, 16
      %v518 = vpop.permute.xlu0 %517
      %520 = vst.msk [vmem:[#allocation4 + $0x18] sm:$0xf] %vm213, %v518
      %v521 = vld [vmem:[%s223] sm:$0xf]
      %523 = vrot.lane.b32.xlu0 %v521, 24
      %v524 = vpop.permute.xlu0 %523
      %526 = vst.msk [vmem:[#allocation4 + $0x18] sm:$0xf] %vm221, %v524
      %v527 = vld [vmem:[%s231] sm:$0xf]
      %529 = vrot.lane.b32.xlu0 %v527, 32
      %v530 = vpop.permute.xlu0 %529
      %532 = vst.msk [vmem:[#allocation4 + $0x18] sm:$0xf] %vm229, %v530
      %v533 = vld [vmem:[%s239] sm:$0xf]
      %535 = vrot.lane.b32.xlu0 %v533, 40
      %v536 = vpop.permute.xlu0 %535
      %538 = vst.msk [vmem:[#allocation4 + $0x18] sm:$0xf] %vm237, %v536
      %v539 = vld [vmem:[%s247] sm:$0xf]
      %541 = vrot.lane.b32.xlu0 %v539, 48
      %v542 = vpop.permute.xlu0 %541
      %544 = vst.msk [vmem:[#allocation4 + $0x18] sm:$0xf] %vm245, %v542
      %s545 = scalar_lea.vmem %s191, 32
      %v546 = vld [vmem:[%s545] sm:$0xf]
      %548 = vrot.lane.b32.xlu0 %v546, 56
      %v549 = vpop.permute.xlu0 %548
      %551 = vst.msk [vmem:[#allocation4 + $0x18] sm:$0xf] %vm253, %v549
      %v552 = vld [vmem:[%s258] sm:$0xf]
      %553 = vst.msk [vmem:[#allocation4 + $0x1c] sm:$0xf] %vm197, %v552
      %v554 = vld [vmem:[%s265] sm:$0xf]
      %556 = vrot.lane.b32.xlu0 %v554, 8
      %v557 = vpop.permute.xlu0 %556
      %559 = vst.msk [vmem:[#allocation4 + $0x1c] sm:$0xf] %vm205, %v557
      %v560 = vld [vmem:[%s272] sm:$0xf]
      %562 = vrot.lane.b32.xlu0 %v560, 16
      %v563 = vpop.permute.xlu0 %562
      %565 = vst.msk [vmem:[#allocation4 + $0x1c] sm:$0xf] %vm213, %v563
      %v566 = vld [vmem:[%s279] sm:$0xf]
      %568 = vrot.lane.b32.xlu0 %v566, 24
      %v569 = vpop.permute.xlu0 %568
      %571 = vst.msk [vmem:[#allocation4 + $0x1c] sm:$0xf] %vm221, %v569
      %v572 = vld [vmem:[%s286] sm:$0xf]
      %574 = vrot.lane.b32.xlu0 %v572, 32
      %v575 = vpop.permute.xlu0 %574
      %577 = vst.msk [vmem:[#allocation4 + $0x1c] sm:$0xf] %vm229, %v575
      %v578 = vld [vmem:[%s293] sm:$0xf]
      %580 = vrot.lane.b32.xlu0 %v578, 40
      %v581 = vpop.permute.xlu0 %580
      %583 = vst.msk [vmem:[#allocation4 + $0x1c] sm:$0xf] %vm237, %v581
      %v584 = vld [vmem:[%s300] sm:$0xf]
      %586 = vrot.lane.b32.xlu0 %v584, 48
      %v587 = vpop.permute.xlu0 %586
      %589 = vst.msk [vmem:[#allocation4 + $0x1c] sm:$0xf] %vm245, %v587
      %s590 = scalar_lea.vmem %s191, 68
      %v591 = vld [vmem:[%s590] sm:$0xf]
      %593 = vrot.lane.b32.xlu0 %v591, 56
      %v594 = vpop.permute.xlu0 %593
      %596 = vst.msk [vmem:[#allocation4 + $0x1c] sm:$0xf] %vm253, %v594
      %v597 = vld [vmem:[%s199] sm:$0xf]
      %599 = vrot.lane.b32.xlu0 %v597, 127
      %v600 = vpop.permute.xlu0 %599
      %602 = vst.msk [vmem:[#allocation4 + $0x20] sm:$0xf] %vm197, %v600
      %v603 = vld [vmem:[%s207] sm:$0xf]
      %605 = vrot.lane.b32.xlu0 %v603, 7
      %v606 = vpop.permute.xlu0 %605
      %608 = vst.msk [vmem:[#allocation4 + $0x20] sm:$0xf] %vm205, %v606
      %v609 = vld [vmem:[%s215] sm:$0xf]
      %611 = vrot.lane.b32.xlu0 %v609, 15
      %v612 = vpop.permute.xlu0 %611
      %614 = vst.msk [vmem:[#allocation4 + $0x20] sm:$0xf] %vm213, %v612
      %v615 = vld [vmem:[%s223] sm:$0xf]
      %617 = vrot.lane.b32.xlu0 %v615, 23
      %v618 = vpop.permute.xlu0 %617
      %620 = vst.msk [vmem:[#allocation4 + $0x20] sm:$0xf] %vm221, %v618
      %v621 = vld [vmem:[%s231] sm:$0xf]
      %623 = vrot.lane.b32.xlu0 %v621, 31
      %v624 = vpop.permute.xlu0 %623
      %626 = vst.msk [vmem:[#allocation4 + $0x20] sm:$0xf] %vm229, %v624
      %v627 = vld [vmem:[%s239] sm:$0xf]
      %629 = vrot.lane.b32.xlu0 %v627, 39
      %v630 = vpop.permute.xlu0 %629
      %632 = vst.msk [vmem:[#allocation4 + $0x20] sm:$0xf] %vm237, %v630
      %v633 = vld [vmem:[%s247] sm:$0xf]
      %635 = vrot.lane.b32.xlu0 %v633, 47
      %v636 = vpop.permute.xlu0 %635
      %638 = vst.msk [vmem:[#allocation4 + $0x20] sm:$0xf] %vm245, %v636
      %v639 = vld [vmem:[%s545] sm:$0xf]
      %641 = vrot.lane.b32.xlu0 %v639, 55
      %v642 = vpop.permute.xlu0 %641
      %644 = vst.msk [vmem:[#allocation4 + $0x20] sm:$0xf] %vm253, %v642
      %v645 = vld [vmem:[%s1] sm:$0xff]
      %v646 = vld [vmem:[#allocation4] sm:$0xff]
      %v647 = vld [vmem:[#allocation4 + $0x8] sm:$0xff]
      %v648 = vld [vmem:[#allocation4 + $0x10] sm:$0xff]
      %v649 = vld [vmem:[#allocation4 + $0x18] sm:$0xff]
      %v650 = vld [vmem:[#allocation4 + $0x20] sm:$0xf]
      %vm651 = vcmask 293888
      %v653 = vsel %vm651, %v645, 0
      %vm655 = vcmask 1043456
      %v657 = vsel %vm655, %v650, 0
      %659 = vmatprep.subr.mxu0 0.0
      %660 = vmatpush1.msra.mxu0 %v646
      %661 = vmatprep.subr.mxu0 0.0
      %662 = vmatpush1.msra.mxu0 %v647
      %663 = vmatprep.subr.mxu0 0.0
      %664 = vmatpush1.msra.mxu0 %v648
      %665 = vmatprep.subr.mxu0 0.0
      %666 = vmatpush1.msra.mxu0 %v649
      %667 = vmatprep.subr.mxu0 0.0
      %668 = vmatpush1.msra.mxu0 %v657
      %669 = vmatprep.subr.mxu0 0.0
      %670 = vmatpush1.msra.mxu0 0.0
      %671 = vmatprep.subr.mxu0 0.0
      %672 = vmatpush1.msra.mxu0 0.0
      %673 = vmatprep.subr.mxu0 0.0
      %674 = vmatpush1.msra.mxu0 0.0
      %675 = vmatprep.subr.mxu0 0.0
      %676 = vmatpush1.msra.mxu0 0.0
      %677 = vmatprep.subr.mxu0 0.0
      %678 = vmatpush1.msra.mxu0 0.0
      %679 = vmatprep.subr.mxu0 0.0
      %680 = vmatpush1.msra.mxu0 0.0
      %681 = vmatprep.subr.mxu0 0.0
      %682 = vmatpush1.msra.mxu0 0.0
      %683 = vmatprep.subr.mxu0 0.0
      %684 = vmatpush1.msra.mxu0 0.0
      %685 = vmatprep.subr.mxu0 0.0
      %686 = vmatpush1.msra.mxu0 0.0
      %687 = vmatprep.subr.mxu0 0.0
      %688 = vmatpush1.msra.mxu0 0.0
      %689 = vmatprep.subr.mxu0 0.0
      %690 = vmatpush1.msra.mxu0 0.0
      %691 = vmatprep.subr.mxu0 0.0
      %692 = vmatpush1.msra.mxu0 0.0
      %693 = vmatprep.subr.mxu0 0.0
      %694 = vmatpush1.msra.mxu0 0.0
      %695 = vmatprep.subr.mxu0 0.0
      %696 = vmatpush1.msra.mxu0 0.0
      %697 = vmatprep.subr.mxu0 0.0
      %698 = vmatpush1.msra.mxu0 0.0
      %699 = vmatprep.subr.mxu0 0.0
      %700 = vmatpush1.msra.mxu0 0.0
      %701 = vmatprep.subr.mxu0 0.0
      %702 = vmatpush1.msra.mxu0 0.0
      %703 = vmatprep.subr.mxu0 0.0
      %704 = vmatpush1.msra.mxu0 0.0
      %705 = vmatprep.subr.mxu0 0.0
      %706 = vmatpush1.msra.mxu0 0.0
      %707 = vmatprep.subr.mxu0 0.0
      %708 = vmatpush1.msra.mxu0 0.0
      %709 = vmatprep.subr.mxu0 0.0
      %710 = vmatpush1.msra.mxu0 0.0
      %711 = vmatprep.subr.mxu0 0.0
      %712 = vmatpush1.msra.mxu0 0.0
      %713 = vmatprep.subr.mxu0 0.0
      %714 = vmatpush1.msra.mxu0 0.0
      %715 = vmatprep.subr.mxu0 0.0
      %716 = vmatpush1.msra.mxu0 0.0
      %717 = vmatprep.subr.mxu0 0.0
      %718 = vmatpush1.msra.mxu0 0.0
      %719 = vmatprep.subr.mxu0 0.0
      %720 = vmatpush1.msra.mxu0 0.0
      %721 = vmatprep.subr.mxu0 0.0
      %722 = vmatpush1.msra.mxu0 0.0
      %723 = vmatprep.mubr.f32.mxu0 0.0
      %724 = vmatmul.mubr.f32.gmra.mrb[0].mxu0 %v653
      %v725 = vpop.f32.mrb[0].mxu0
      %v726 = vadd.f32 0.0, %v725
      %v727 = vpop.f32.mrb[0].mxu0
      %728 = vdwg.mxu0
      %vm729 = vcmp.ge.f32.partialorder %v726, 0.0
      %v730 = vmul.f32 %v726, 0.01
      %v731 = vsel %vm729, %v726, %v730
      %v732 = vlaneseq
      %v733 = vshrl.u32 %v732, 7
      %v734 = vlaneseq
      %v735 = vand.u32 %v734, 127
      %v736 = vmul.u32 %v735, 2
      %vm737 = vcmp.eq.s32.totalorder %v733, %v736
      %v738 = vsel %vm737, 1, 0
      %v739 = vcvt.s32.f32 %v738
      %v740 = vadd.s32 %v736, 1
      %vm741 = vcmp.eq.s32.totalorder %v733, %v740
      %v742 = vsel %vm741, 1, 0
      %v743 = vcvt.s32.f32 %v742
      %vm744 = vcmask 39936
      %745 = vst.msk [vmem:[#allocation2] sm:$0xff] %vm744, 0.0
      %746 = vst.msk [vmem:[#allocation2 + $0x8] sm:$0xff] %vm744, 0.0
      %747 = vst.msk [vmem:[#allocation2 + $0x10] sm:$0xff] %vm744, 0.0
      %748 = vst.msk [vmem:[#allocation2 + $0x18] sm:$0xff] %vm744, 0.0
      %749 = vst.msk [vmem:[#allocation2 + $0x20] sm:$0xff] %vm744, 0.0
      %750 = vst.msk [vmem:[#allocation2 + $0x28] sm:$0xff] %vm744, 0.0
      %751 = vst.msk [vmem:[#allocation2 + $0x30] sm:$0xff] %vm744, 0.0
      %752 = vst.msk [vmem:[#allocation2 + $0x38] sm:$0xff] %vm744, 0.0
      %753 = vst.msk [vmem:[#allocation2 + $0x40] sm:$0xff] %vm744, 0.0
      %754 = vst.msk [vmem:[#allocation2 + $0x48] sm:$0xff] %vm744, 0.0
      %755 = vst.msk [vmem:[#allocation2 + $0x50] sm:$0xff] %vm744, 0.0
      %756 = vst.msk [vmem:[#allocation2 + $0x58] sm:$0xff] %vm744, 0.0
      %757 = vst.msk [vmem:[#allocation2 + $0x60] sm:$0xff] %vm744, 0.0
      %758 = vst.msk [vmem:[#allocation2 + $0x68] sm:$0xff] %vm744, 0.0
      %759 = vst.msk [vmem:[#allocation2 + $0x70] sm:$0xff] %vm744, 0.0
      %760 = vst.msk [vmem:[#allocation2 + $0x78] sm:$0xff] %vm744, 0.0
      %761 = vst.msk [vmem:[#allocation2 + $0x80] sm:$0xff] %vm744, 0.0
      %762 = vst.msk [vmem:[#allocation2 + $0x88] sm:$0xff] %vm744, 0.0
      %763 = vst.msk [vmem:[#allocation2 + $0x90] sm:$0xff] %vm744, 0.0
      %764 = vst.msk [vmem:[#allocation2 + $0x98] sm:$0xff] %vm744, 0.0
      %vm765 = vcmask 64512
      %v767 = vsel %vm765, %v731, 0
      %769 = vmatprep.subr.mxu0 0.0
      %770 = vmatpush1.msra.mxu0 %v739
      %771 = vmatprep.subr.mxu0 0.0
      %772 = vmatpush1.msra.mxu0 0.0
      %773 = vmatprep.subr.mxu0 0.0
      %774 = vmatpush1.msra.mxu0 0.0
      %775 = vmatprep.subr.mxu0 0.0
      %776 = vmatpush1.msra.mxu0 0.0
      %777 = vmatprep.subr.mxu0 0.0
      %778 = vmatpush1.msra.mxu0 0.0
      %779 = vmatprep.subr.mxu0 0.0
      %780 = vmatpush1.msra.mxu0 0.0
      %781 = vmatprep.subr.mxu0 0.0
      %782 = vmatpush1.msra.mxu0 0.0
      %783 = vmatprep.subr.mxu0 0.0
      %784 = vmatpush1.msra.mxu0 0.0
      %785 = vmatprep.subr.mxu0 0.0
      %786 = vmatpush1.msra.mxu0 0.0
      %787 = vmatprep.subr.mxu0 0.0
      %788 = vmatpush1.msra.mxu0 0.0
      %789 = vmatprep.subr.mxu0 0.0
      %790 = vmatpush1.msra.mxu0 0.0
      %791 = vmatprep.subr.mxu0 0.0
      %792 = vmatpush1.msra.mxu0 0.0
      %793 = vmatprep.subr.mxu0 0.0
      %794 = vmatpush1.msra.mxu0 0.0
      %795 = vmatprep.subr.mxu0 0.0
      %796 = vmatpush1.msra.mxu0 0.0
      %797 = vmatprep.subr.mxu0 0.0
      %798 = vmatpush1.msra.mxu0 0.0
      %799 = vmatprep.subr.mxu0 0.0
      %800 = vmatpush1.msra.mxu0 0.0
      %801 = vmatprep.subr.mxu0 0.0
      %802 = vmatpush1.msra.mxu0 0.0
      %803 = vmatprep.subr.mxu0 0.0
      %804 = vmatpush1.msra.mxu0 0.0
      %805 = vmatprep.subr.mxu0 0.0
      %806 = vmatpush1.msra.mxu0 0.0
      %807 = vmatprep.subr.mxu0 0.0
      %808 = vmatpush1.msra.mxu0 0.0
      %809 = vmatprep.subr.mxu0 0.0
      %810 = vmatpush1.msra.mxu0 0.0
      %811 = vmatprep.subr.mxu0 0.0
      %812 = vmatpush1.msra.mxu0 0.0
      %813 = vmatprep.subr.mxu0 0.0
      %814 = vmatpush1.msra.mxu0 0.0
      %815 = vmatprep.subr.mxu0 0.0
      %816 = vmatpush1.msra.mxu0 0.0
      %817 = vmatprep.subr.mxu0 0.0
      %818 = vmatpush1.msra.mxu0 0.0
      %819 = vmatprep.subr.mxu0 0.0
      %820 = vmatpush1.msra.mxu0 0.0
      %821 = vmatprep.subr.mxu0 0.0
      %822 = vmatpush1.msra.mxu0 0.0
      %823 = vmatprep.subr.mxu0 0.0
      %824 = vmatpush1.msra.mxu0 0.0
      %825 = vmatprep.subr.mxu0 0.0
      %826 = vmatpush1.msra.mxu0 0.0
      %827 = vmatprep.subr.mxu0 0.0
      %828 = vmatpush1.msra.mxu0 0.0
      %829 = vmatprep.subr.mxu0 0.0
      %830 = vmatpush1.msra.mxu0 0.0
      %831 = vmatprep.subr.mxu0 0.0
      %832 = vmatpush1.msra.mxu0 0.0
      %833 = vmatprep.mubr.f32.mxu0 0.0
      %834 = vmatmul.mubr.f32.gmra.mrb[0].mxu0 %v767
      %v835 = vpop.f32.mrb[0].mxu0
      %v836 = vadd.f32 0.0, %v835
      %v837 = vpop.f32.mrb[0].mxu0
      %838 = vdwg.mxu0
      %s839 = scalar_lea.vmem [#allocation2], 120
      %vm840 = vcmask 31744
      %841 = vst.msk [vmem:[%s839] sm:$0xff] %vm840, %v836
      %842 = vmatprep.subr.mxu0 0.0
      %843 = vmatpush1.msra.mxu0 %v743
      %844 = vmatprep.subr.mxu0 0.0
      %845 = vmatpush1.msra.mxu0 0.0
      %846 = vmatprep.subr.mxu0 0.0
      %847 = vmatpush1.msra.mxu0 0.0
      %848 = vmatprep.subr.mxu0 0.0
      %849 = vmatpush1.msra.mxu0 0.0
      %850 = vmatprep.subr.mxu0 0.0
      %851 = vmatpush1.msra.mxu0 0.0
      %852 = vmatprep.subr.mxu0 0.0
      %853 = vmatpush1.msra.mxu0 0.0
      %854 = vmatprep.subr.mxu0 0.0
      %855 = vmatpush1.msra.mxu0 0.0
      %856 = vmatprep.subr.mxu0 0.0
      %857 = vmatpush1.msra.mxu0 0.0
      %858 = vmatprep.subr.mxu0 0.0
      %859 = vmatpush1.msra.mxu0 0.0
      %860 = vmatprep.subr.mxu0 0.0
      %861 = vmatpush1.msra.mxu0 0.0
      %862 = vmatprep.subr.mxu0 0.0
      %863 = vmatpush1.msra.mxu0 0.0
      %864 = vmatprep.subr.mxu0 0.0
      %865 = vmatpush1.msra.mxu0 0.0
      %866 = vmatprep.subr.mxu0 0.0
      %867 = vmatpush1.msra.mxu0 0.0
      %868 = vmatprep.subr.mxu0 0.0
      %869 = vmatpush1.msra.mxu0 0.0
      %870 = vmatprep.subr.mxu0 0.0
      %871 = vmatpush1.msra.mxu0 0.0
      %872 = vmatprep.subr.mxu0 0.0
      %873 = vmatpush1.msra.mxu0 0.0
      %874 = vmatprep.subr.mxu0 0.0
      %875 = vmatpush1.msra.mxu0 0.0
      %876 = vmatprep.subr.mxu0 0.0
      %877 = vmatpush1.msra.mxu0 0.0
      %878 = vmatprep.subr.mxu0 0.0
      %879 = vmatpush1.msra.mxu0 0.0
      %880 = vmatprep.subr.mxu0 0.0
      %881 = vmatpush1.msra.mxu0 0.0
      %882 = vmatprep.subr.mxu0 0.0
      %883 = vmatpush1.msra.mxu0 0.0
      %884 = vmatprep.subr.mxu0 0.0
      %885 = vmatpush1.msra.mxu0 0.0
      %886 = vmatprep.subr.mxu0 0.0
      %887 = vmatpush1.msra.mxu0 0.0
      %888 = vmatprep.subr.mxu0 0.0
      %889 = vmatpush1.msra.mxu0 0.0
      %890 = vmatprep.subr.mxu0 0.0
      %891 = vmatpush1.msra.mxu0 0.0
      %892 = vmatprep.subr.mxu0 0.0
      %893 = vmatpush1.msra.mxu0 0.0
      %894 = vmatprep.subr.mxu0 0.0
      %895 = vmatpush1.msra.mxu0 0.0
      %896 = vmatprep.subr.mxu0 0.0
      %897 = vmatpush1.msra.mxu0 0.0
      %898 = vmatprep.subr.mxu0 0.0
      %899 = vmatpush1.msra.mxu0 0.0
      %900 = vmatprep.subr.mxu0 0.0
      %901 = vmatpush1.msra.mxu0 0.0
      %902 = vmatprep.subr.mxu0 0.0
      %903 = vmatpush1.msra.mxu0 0.0
      %904 = vmatprep.subr.mxu0 0.0
      %905 = vmatpush1.msra.mxu0 0.0
      %906 = vmatprep.mubr.f32.mxu0 0.0
      %907 = vmatmul.mubr.f32.gmra.mrb[0].mxu0 %v767
      %v908 = vpop.f32.mrb[0].mxu0
      %v909 = vadd.f32 0.0, %v908
      %v910 = vpop.f32.mrb[0].mxu0
      %911 = vdwg.mxu0
      %913 = vrot.lane.b32.xlu0 %v909, 1
      %v914 = vpop.permute.xlu0 %913
      %s916 = scalar_lea.vmem [#allocation2], 80
      %vm917 = vcmask 39944
      %918 = vst.msk [vmem:[%s916] sm:$0xff] %vm917, %v914
      %919 = vrot.lane.b32.xlu0 %v731, 120
      %v920 = vpop.permute.xlu0 %919
      %v921 = vsel %vm765, %v920, 0
      %923 = vmatprep.subr.mxu0 0.0
      %924 = vmatpush1.msra.mxu0 %v739
      %925 = vmatprep.subr.mxu0 0.0
      %926 = vmatpush1.msra.mxu0 0.0
      %927 = vmatprep.subr.mxu0 0.0
      %928 = vmatpush1.msra.mxu0 0.0
      %929 = vmatprep.subr.mxu0 0.0
      %930 = vmatpush1.msra.mxu0 0.0
      %931 = vmatprep.subr.mxu0 0.0
      %932 = vmatpush1.msra.mxu0 0.0
      %933 = vmatprep.subr.mxu0 0.0
      %934 = vmatpush1.msra.mxu0 0.0
      %935 = vmatprep.subr.mxu0 0.0
      %936 = vmatpush1.msra.mxu0 0.0
      %937 = vmatprep.subr.mxu0 0.0
      %938 = vmatpush1.msra.mxu0 0.0
      %939 = vmatprep.subr.mxu0 0.0
      %940 = vmatpush1.msra.mxu0 0.0
      %941 = vmatprep.subr.mxu0 0.0
      %942 = vmatpush1.msra.mxu0 0.0
      %943 = vmatprep.subr.mxu0 0.0
      %944 = vmatpush1.msra.mxu0 0.0
      %945 = vmatprep.subr.mxu0 0.0
      %946 = vmatpush1.msra.mxu0 0.0
      %947 = vmatprep.subr.mxu0 0.0
      %948 = vmatpush1.msra.mxu0 0.0
      %949 = vmatprep.subr.mxu0 0.0
      %950 = vmatpush1.msra.mxu0 0.0
      %951 = vmatprep.subr.mxu0 0.0
      %952 = vmatpush1.msra.mxu0 0.0
      %953 = vmatprep.subr.mxu0 0.0
      %954 = vmatpush1.msra.mxu0 0.0
      %955 = vmatprep.subr.mxu0 0.0
      %956 = vmatpush1.msra.mxu0 0.0
      %957 = vmatprep.subr.mxu0 0.0
      %958 = vmatpush1.msra.mxu0 0.0
      %959 = vmatprep.subr.mxu0 0.0
      %960 = vmatpush1.msra.mxu0 0.0
      %961 = vmatprep.subr.mxu0 0.0
      %962 = vmatpush1.msra.mxu0 0.0
      %963 = vmatprep.subr.mxu0 0.0
      %964 = vmatpush1.msra.mxu0 0.0
      %965 = vmatprep.subr.mxu0 0.0
      %966 = vmatpush1.msra.mxu0 0.0
      %967 = vmatprep.subr.mxu0 0.0
      %968 = vmatpush1.msra.mxu0 0.0
      %969 = vmatprep.subr.mxu0 0.0
      %970 = vmatpush1.msra.mxu0 0.0
      %971 = vmatprep.subr.mxu0 0.0
      %972 = vmatpush1.msra.mxu0 0.0
      %973 = vmatprep.subr.mxu0 0.0
      %974 = vmatpush1.msra.mxu0 0.0
      %975 = vmatprep.subr.mxu0 0.0
      %976 = vmatpush1.msra.mxu0 0.0
      %977 = vmatprep.subr.mxu0 0.0
      %978 = vmatpush1.msra.mxu0 0.0
      %979 = vmatprep.subr.mxu0 0.0
      %980 = vmatpush1.msra.mxu0 0.0
      %981 = vmatprep.subr.mxu0 0.0
      %982 = vmatpush1.msra.mxu0 0.0
      %983 = vmatprep.subr.mxu0 0.0
      %984 = vmatpush1.msra.mxu0 0.0
      %985 = vmatprep.subr.mxu0 0.0
      %986 = vmatpush1.msra.mxu0 0.0
      %987 = vmatprep.mubr.f32.mxu0 0.0
      %988 = vmatmul.mubr.f32.gmra.mrb[0].mxu0 %v921
      %v989 = vpop.f32.mrb[0].mxu0
      %v990 = vadd.f32 0.0, %v989
      %v991 = vpop.f32.mrb[0].mxu0
      %992 = vdwg.mxu0
      %s993 = scalar_lea.vmem [#allocation2], 48
      %994 = vst.msk [vmem:[%s993] sm:$0xff] %vm840, %v990
      %995 = vmatprep.subr.mxu0 0.0
      %996 = vmatpush1.msra.mxu0 %v743
      %997 = vmatprep.subr.mxu0 0.0
      %998 = vmatpush1.msra.mxu0 0.0
      %999 = vmatprep.subr.mxu0 0.0
      %1000 = vmatpush1.msra.mxu0 0.0
      %1001 = vmatprep.subr.mxu0 0.0
      %1002 = vmatpush1.msra.mxu0 0.0
      %1003 = vmatprep.subr.mxu0 0.0
      %1004 = vmatpush1.msra.mxu0 0.0
      %1005 = vmatprep.subr.mxu0 0.0
      %1006 = vmatpush1.msra.mxu0 0.0
      %1007 = vmatprep.subr.mxu0 0.0
      %1008 = vmatpush1.msra.mxu0 0.0
      %1009 = vmatprep.subr.mxu0 0.0
      %1010 = vmatpush1.msra.mxu0 0.0
      %1011 = vmatprep.subr.mxu0 0.0
      %1012 = vmatpush1.msra.mxu0 0.0
      %1013 = vmatprep.subr.mxu0 0.0
      %1014 = vmatpush1.msra.mxu0 0.0
      %1015 = vmatprep.subr.mxu0 0.0
      %1016 = vmatpush1.msra.mxu0 0.0
      %1017 = vmatprep.subr.mxu0 0.0
      %1018 = vmatpush1.msra.mxu0 0.0
      %1019 = vmatprep.subr.mxu0 0.0
      %1020 = vmatpush1.msra.mxu0 0.0
      %1021 = vmatprep.subr.mxu0 0.0
      %1022 = vmatpush1.msra.mxu0 0.0
      %1023 = vmatprep.subr.mxu0 0.0
      %1024 = vmatpush1.msra.mxu0 0.0
      %1025 = vmatprep.subr.mxu0 0.0
      %1026 = vmatpush1.msra.mxu0 0.0
      %1027 = vmatprep.subr.mxu0 0.0
      %1028 = vmatpush1.msra.mxu0 0.0
      %1029 = vmatprep.subr.mxu0 0.0
      %1030 = vmatpush1.msra.mxu0 0.0
      %1031 = vmatprep.subr.mxu0 0.0
      %1032 = vmatpush1.msra.mxu0 0.0
      %1033 = vmatprep.subr.mxu0 0.0
      %1034 = vmatpush1.msra.mxu0 0.0
      %1035 = vmatprep.subr.mxu0 0.0
      %1036 = vmatpush1.msra.mxu0 0.0
      %1037 = vmatprep.subr.mxu0 0.0
      %1038 = vmatpush1.msra.mxu0 0.0
      %1039 = vmatprep.subr.mxu0 0.0
      %1040 = vmatpush1.msra.mxu0 0.0
      %1041 = vmatprep.subr.mxu0 0.0
      %1042 = vmatpush1.msra.mxu0 0.0
      %1043 = vmatprep.subr.mxu0 0.0
      %1044 = vmatpush1.msra.mxu0 0.0
      %1045 = vmatprep.subr.mxu0 0.0
      %1046 = vmatpush1.msra.mxu0 0.0
      %1047 = vmatprep.subr.mxu0 0.0
      %1048 = vmatpush1.msra.mxu0 0.0
      %1049 = vmatprep.subr.mxu0 0.0
      %1050 = vmatpush1.msra.mxu0 0.0
      %1051 = vmatprep.subr.mxu0 0.0
      %1052 = vmatpush1.msra.mxu0 0.0
      %1053 = vmatprep.subr.mxu0 0.0
      %1054 = vmatpush1.msra.mxu0 0.0
      %1055 = vmatprep.subr.mxu0 0.0
      %1056 = vmatpush1.msra.mxu0 0.0
      %1057 = vmatprep.subr.mxu0 0.0
      %1058 = vmatpush1.msra.mxu0 0.0
      %1059 = vmatprep.mubr.f32.mxu0 0.0
      %1060 = vmatmul.mubr.f32.gmra.mrb[0].mxu0 %v921
      %v1061 = vpop.f32.mrb[0].mxu0
      %v1062 = vadd.f32 0.0, %v1061
      %v1063 = vpop.f32.mrb[0].mxu0
      %1064 = vdwg.mxu0
      %1066 = vrot.lane.b32.xlu0 %v1062, 1
      %v1067 = vpop.permute.xlu0 %1066
      %s1069 = scalar_lea.vmem [#allocation2], 8
      %1070 = vst.msk [vmem:[%s1069] sm:$0xff] %vm917, %v1067
      %1071 = vrot.lane.b32.xlu0 %v731, 112
      %v1072 = vpop.permute.xlu0 %1071
      %v1073 = vsel %vm765, %v1072, 0
      %1075 = vmatprep.subr.mxu0 0.0
      %1076 = vmatpush1.msra.mxu0 %v739
      %1077 = vmatprep.subr.mxu0 0.0
      %1078 = vmatpush1.msra.mxu0 0.0
      %1079 = vmatprep.subr.mxu0 0.0
      %1080 = vmatpush1.msra.mxu0 0.0
      %1081 = vmatprep.subr.mxu0 0.0
      %1082 = vmatpush1.msra.mxu0 0.0
      %1083 = vmatprep.subr.mxu0 0.0
      %1084 = vmatpush1.msra.mxu0 0.0
      %1085 = vmatprep.subr.mxu0 0.0
      %1086 = vmatpush1.msra.mxu0 0.0
      %1087 = vmatprep.subr.mxu0 0.0
      %1088 = vmatpush1.msra.mxu0 0.0
      %1089 = vmatprep.subr.mxu0 0.0
      %1090 = vmatpush1.msra.mxu0 0.0
      %1091 = vmatprep.subr.mxu0 0.0
      %1092 = vmatpush1.msra.mxu0 0.0
      %1093 = vmatprep.subr.mxu0 0.0
      %1094 = vmatpush1.msra.mxu0 0.0
      %1095 = vmatprep.subr.mxu0 0.0
      %1096 = vmatpush1.msra.mxu0 0.0
      %1097 = vmatprep.subr.mxu0 0.0
      %1098 = vmatpush1.msra.mxu0 0.0
      %1099 = vmatprep.subr.mxu0 0.0
      %1100 = vmatpush1.msra.mxu0 0.0
      %1101 = vmatprep.subr.mxu0 0.0
      %1102 = vmatpush1.msra.mxu0 0.0
      %1103 = vmatprep.subr.mxu0 0.0
      %1104 = vmatpush1.msra.mxu0 0.0
      %1105 = vmatprep.subr.mxu0 0.0
      %1106 = vmatpush1.msra.mxu0 0.0
      %1107 = vmatprep.subr.mxu0 0.0
      %1108 = vmatpush1.msra.mxu0 0.0
      %1109 = vmatprep.subr.mxu0 0.0
      %1110 = vmatpush1.msra.mxu0 0.0
      %1111 = vmatprep.subr.mxu0 0.0
      %1112 = vmatpush1.msra.mxu0 0.0
      %1113 = vmatprep.subr.mxu0 0.0
      %1114 = vmatpush1.msra.mxu0 0.0
      %1115 = vmatprep.subr.mxu0 0.0
      %1116 = vmatpush1.msra.mxu0 0.0
      %1117 = vmatprep.subr.mxu0 0.0
      %1118 = vmatpush1.msra.mxu0 0.0
      %1119 = vmatprep.subr.mxu0 0.0
      %1120 = vmatpush1.msra.mxu0 0.0
      %1121 = vmatprep.subr.mxu0 0.0
      %1122 = vmatpush1.msra.mxu0 0.0
      %1123 = vmatprep.subr.mxu0 0.0
      %1124 = vmatpush1.msra.mxu0 0.0
      %1125 = vmatprep.subr.mxu0 0.0
      %1126 = vmatpush1.msra.mxu0 0.0
      %1127 = vmatprep.subr.mxu0 0.0
      %1128 = vmatpush1.msra.mxu0 0.0
      %1129 = vmatprep.subr.mxu0 0.0
      %1130 = vmatpush1.msra.mxu0 0.0
      %1131 = vmatprep.subr.mxu0 0.0
      %1132 = vmatpush1.msra.mxu0 0.0
      %1133 = vmatprep.subr.mxu0 0.0
      %1134 = vmatpush1.msra.mxu0 0.0
      %1135 = vmatprep.subr.mxu0 0.0
      %1136 = vmatpush1.msra.mxu0 0.0
      %1137 = vmatprep.subr.mxu0 0.0
      %1138 = vmatpush1.msra.mxu0 0.0
      %1139 = vmatprep.mubr.f32.mxu0 0.0
      %1140 = vmatmul.mubr.f32.gmra.mrb[0].mxu0 %v1073
      %v1141 = vpop.f32.mrb[0].mxu0
      %v1142 = vadd.f32 0.0, %v1141
      %v1143 = vpop.f32.mrb[0].mxu0
      %1144 = vdwg.mxu0
      %s1145 = scalar_lea.vmem [#allocation2], 128
      %1146 = vst.msk [vmem:[%s1145] sm:$0xff] %vm840, %v1142
      %1147 = vmatprep.subr.mxu0 0.0
      %1148 = vmatpush1.msra.mxu0 %v743
      %1149 = vmatprep.subr.mxu0 0.0
      %1150 = vmatpush1.msra.mxu0 0.0
      %1151 = vmatprep.subr.mxu0 0.0
      %1152 = vmatpush1.msra.mxu0 0.0
      %1153 = vmatprep.subr.mxu0 0.0
      %1154 = vmatpush1.msra.mxu0 0.0
      %1155 = vmatprep.subr.mxu0 0.0
      %1156 = vmatpush1.msra.mxu0 0.0
      %1157 = vmatprep.subr.mxu0 0.0
      %1158 = vmatpush1.msra.mxu0 0.0
      %1159 = vmatprep.subr.mxu0 0.0
      %1160 = vmatpush1.msra.mxu0 0.0
      %1161 = vmatprep.subr.mxu0 0.0
      %1162 = vmatpush1.msra.mxu0 0.0
      %1163 = vmatprep.subr.mxu0 0.0
      %1164 = vmatpush1.msra.mxu0 0.0
      %1165 = vmatprep.subr.mxu0 0.0
      %1166 = vmatpush1.msra.mxu0 0.0
      %1167 = vmatprep.subr.mxu0 0.0
      %1168 = vmatpush1.msra.mxu0 0.0
      %1169 = vmatprep.subr.mxu0 0.0
      %1170 = vmatpush1.msra.mxu0 0.0
      %1171 = vmatprep.subr.mxu0 0.0
      %1172 = vmatpush1.msra.mxu0 0.0
      %1173 = vmatprep.subr.mxu0 0.0
      %1174 = vmatpush1.msra.mxu0 0.0
      %1175 = vmatprep.subr.mxu0 0.0
      %1176 = vmatpush1.msra.mxu0 0.0
      %1177 = vmatprep.subr.mxu0 0.0
      %1178 = vmatpush1.msra.mxu0 0.0
      %1179 = vmatprep.subr.mxu0 0.0
      %1180 = vmatpush1.msra.mxu0 0.0
      %1181 = vmatprep.subr.mxu0 0.0
      %1182 = vmatpush1.msra.mxu0 0.0
      %1183 = vmatprep.subr.mxu0 0.0
      %1184 = vmatpush1.msra.mxu0 0.0
      %1185 = vmatprep.subr.mxu0 0.0
      %1186 = vmatpush1.msra.mxu0 0.0
      %1187 = vmatprep.subr.mxu0 0.0
      %1188 = vmatpush1.msra.mxu0 0.0
      %1189 = vmatprep.subr.mxu0 0.0
      %1190 = vmatpush1.msra.mxu0 0.0
      %1191 = vmatprep.subr.mxu0 0.0
      %1192 = vmatpush1.msra.mxu0 0.0
      %1193 = vmatprep.subr.mxu0 0.0
      %1194 = vmatpush1.msra.mxu0 0.0
      %1195 = vmatprep.subr.mxu0 0.0
      %1196 = vmatpush1.msra.mxu0 0.0
      %1197 = vmatprep.subr.mxu0 0.0
      %1198 = vmatpush1.msra.mxu0 0.0
      %1199 = vmatprep.subr.mxu0 0.0
      %1200 = vmatpush1.msra.mxu0 0.0
      %1201 = vmatprep.subr.mxu0 0.0
      %1202 = vmatpush1.msra.mxu0 0.0
      %1203 = vmatprep.subr.mxu0 0.0
      %1204 = vmatpush1.msra.mxu0 0.0
      %1205 = vmatprep.subr.mxu0 0.0
      %1206 = vmatpush1.msra.mxu0 0.0
      %1207 = vmatprep.subr.mxu0 0.0
      %1208 = vmatpush1.msra.mxu0 0.0
      %1209 = vmatprep.subr.mxu0 0.0
      %1210 = vmatpush1.msra.mxu0 0.0
      %1211 = vmatprep.mubr.f32.mxu0 0.0
      %1212 = vmatmul.mubr.f32.gmra.mrb[0].mxu0 %v1073
      %v1213 = vpop.f32.mrb[0].mxu0
      %v1214 = vadd.f32 0.0, %v1213
      %v1215 = vpop.f32.mrb[0].mxu0
      %1216 = vdwg.mxu0
      %1218 = vrot.lane.b32.xlu0 %v1214, 1
      %v1219 = vpop.permute.xlu0 %1218
      %s1221 = scalar_lea.vmem [#allocation2], 88
      %1222 = vst.msk [vmem:[%s1221] sm:$0xff] %vm917, %v1219
      %1223 = vrot.lane.b32.xlu0 %v731, 104
      %v1224 = vpop.permute.xlu0 %1223
      %v1225 = vsel %vm765, %v1224, 0
      %1227 = vmatprep.subr.mxu0 0.0
      %1228 = vmatpush1.msra.mxu0 %v739
      %1229 = vmatprep.subr.mxu0 0.0
      %1230 = vmatpush1.msra.mxu0 0.0
      %1231 = vmatprep.subr.mxu0 0.0
      %1232 = vmatpush1.msra.mxu0 0.0
      %1233 = vmatprep.subr.mxu0 0.0
      %1234 = vmatpush1.msra.mxu0 0.0
      %1235 = vmatprep.subr.mxu0 0.0
      %1236 = vmatpush1.msra.mxu0 0.0
      %1237 = vmatprep.subr.mxu0 0.0
      %1238 = vmatpush1.msra.mxu0 0.0
      %1239 = vmatprep.subr.mxu0 0.0
      %1240 = vmatpush1.msra.mxu0 0.0
      %1241 = vmatprep.subr.mxu0 0.0
      %1242 = vmatpush1.msra.mxu0 0.0
      %1243 = vmatprep.subr.mxu0 0.0
      %1244 = vmatpush1.msra.mxu0 0.0
      %1245 = vmatprep.subr.mxu0 0.0
      %1246 = vmatpush1.msra.mxu0 0.0
      %1247 = vmatprep.subr.mxu0 0.0
      %1248 = vmatpush1.msra.mxu0 0.0
      %1249 = vmatprep.subr.mxu0 0.0
      %1250 = vmatpush1.msra.mxu0 0.0
      %1251 = vmatprep.subr.mxu0 0.0
      %1252 = vmatpush1.msra.mxu0 0.0
      %1253 = vmatprep.subr.mxu0 0.0
      %1254 = vmatpush1.msra.mxu0 0.0
      %1255 = vmatprep.subr.mxu0 0.0
      %1256 = vmatpush1.msra.mxu0 0.0
      %1257 = vmatprep.subr.mxu0 0.0
      %1258 = vmatpush1.msra.mxu0 0.0
      %1259 = vmatprep.subr.mxu0 0.0
      %1260 = vmatpush1.msra.mxu0 0.0
      %1261 = vmatprep.subr.mxu0 0.0
      %1262 = vmatpush1.msra.mxu0 0.0
      %1263 = vmatprep.subr.mxu0 0.0
      %1264 = vmatpush1.msra.mxu0 0.0
      %1265 = vmatprep.subr.mxu0 0.0
      %1266 = vmatpush1.msra.mxu0 0.0
      %1267 = vmatprep.subr.mxu0 0.0
      %1268 = vmatpush1.msra.mxu0 0.0
      %1269 = vmatprep.subr.mxu0 0.0
      %1270 = vmatpush1.msra.mxu0 0.0
      %1271 = vmatprep.subr.mxu0 0.0
      %1272 = vmatpush1.msra.mxu0 0.0
      %1273 = vmatprep.subr.mxu0 0.0
      %1274 = vmatpush1.msra.mxu0 0.0
      %1275 = vmatprep.subr.mxu0 0.0
      %1276 = vmatpush1.msra.mxu0 0.0
      %1277 = vmatprep.subr.mxu0 0.0
      %1278 = vmatpush1.msra.mxu0 0.0
      %1279 = vmatprep.subr.mxu0 0.0
      %1280 = vmatpush1.msra.mxu0 0.0
      %1281 = vmatprep.subr.mxu0 0.0
      %1282 = vmatpush1.msra.mxu0 0.0
      %1283 = vmatprep.subr.mxu0 0.0
      %1284 = vmatpush1.msra.mxu0 0.0
      %1285 = vmatprep.subr.mxu0 0.0
      %1286 = vmatpush1.msra.mxu0 0.0
      %1287 = vmatprep.subr.mxu0 0.0
      %1288 = vmatpush1.msra.mxu0 0.0
      %1289 = vmatprep.subr.mxu0 0.0
      %1290 = vmatpush1.msra.mxu0 0.0
      %1291 = vmatprep.mubr.f32.mxu0 0.0
      %1292 = vmatmul.mubr.f32.gmra.mrb[0].mxu0 %v1225
      %v1293 = vpop.f32.mrb[0].mxu0
      %v1294 = vadd.f32 0.0, %v1293
      %v1295 = vpop.f32.mrb[0].mxu0
      %1296 = vdwg.mxu0
      %s1297 = scalar_lea.vmem [#allocation2], 56
      %1298 = vst.msk [vmem:[%s1297] sm:$0xff] %vm840, %v1294
      %1299 = vmatprep.subr.mxu0 0.0
      %1300 = vmatpush1.msra.mxu0 %v743
      %1301 = vmatprep.subr.mxu0 0.0
      %1302 = vmatpush1.msra.mxu0 0.0
      %1303 = vmatprep.subr.mxu0 0.0
      %1304 = vmatpush1.msra.mxu0 0.0
      %1305 = vmatprep.subr.mxu0 0.0
      %1306 = vmatpush1.msra.mxu0 0.0
      %1307 = vmatprep.subr.mxu0 0.0
      %1308 = vmatpush1.msra.mxu0 0.0
      %1309 = vmatprep.subr.mxu0 0.0
      %1310 = vmatpush1.msra.mxu0 0.0
      %1311 = vmatprep.subr.mxu0 0.0
      %1312 = vmatpush1.msra.mxu0 0.0
      %1313 = vmatprep.subr.mxu0 0.0
      %1314 = vmatpush1.msra.mxu0 0.0
      %1315 = vmatprep.subr.mxu0 0.0
      %1316 = vmatpush1.msra.mxu0 0.0
      %1317 = vmatprep.subr.mxu0 0.0
      %1318 = vmatpush1.msra.mxu0 0.0
      %1319 = vmatprep.subr.mxu0 0.0
      %1320 = vmatpush1.msra.mxu0 0.0
      %1321 = vmatprep.subr.mxu0 0.0
      %1322 = vmatpush1.msra.mxu0 0.0
      %1323 = vmatprep.subr.mxu0 0.0
      %1324 = vmatpush1.msra.mxu0 0.0
      %1325 = vmatprep.subr.mxu0 0.0
      %1326 = vmatpush1.msra.mxu0 0.0
      %1327 = vmatprep.subr.mxu0 0.0
      %1328 = vmatpush1.msra.mxu0 0.0
      %1329 = vmatprep.subr.mxu0 0.0
      %1330 = vmatpush1.msra.mxu0 0.0
      %1331 = vmatprep.subr.mxu0 0.0
      %1332 = vmatpush1.msra.mxu0 0.0
      %1333 = vmatprep.subr.mxu0 0.0
      %1334 = vmatpush1.msra.mxu0 0.0
      %1335 = vmatprep.subr.mxu0 0.0
      %1336 = vmatpush1.msra.mxu0 0.0
      %1337 = vmatprep.subr.mxu0 0.0
      %1338 = vmatpush1.msra.mxu0 0.0
      %1339 = vmatprep.subr.mxu0 0.0
      %1340 = vmatpush1.msra.mxu0 0.0
      %1341 = vmatprep.subr.mxu0 0.0
      %1342 = vmatpush1.msra.mxu0 0.0
      %1343 = vmatprep.subr.mxu0 0.0
      %1344 = vmatpush1.msra.mxu0 0.0
      %1345 = vmatprep.subr.mxu0 0.0
      %1346 = vmatpush1.msra.mxu0 0.0
      %1347 = vmatprep.subr.mxu0 0.0
      %1348 = vmatpush1.msra.mxu0 0.0
      %1349 = vmatprep.subr.mxu0 0.0
      %1350 = vmatpush1.msra.mxu0 0.0
      %1351 = vmatprep.subr.mxu0 0.0
      %1352 = vmatpush1.msra.mxu0 0.0
      %1353 = vmatprep.subr.mxu0 0.0
      %1354 = vmatpush1.msra.mxu0 0.0
      %1355 = vmatprep.subr.mxu0 0.0
      %1356 = vmatpush1.msra.mxu0 0.0
      %1357 = vmatprep.subr.mxu0 0.0
      %1358 = vmatpush1.msra.mxu0 0.0
      %1359 = vmatprep.subr.mxu0 0.0
      %1360 = vmatpush1.msra.mxu0 0.0
      %1361 = vmatprep.subr.mxu0 0.0
      %1362 = vmatpush1.msra.mxu0 0.0
      %1363 = vmatprep.mubr.f32.mxu0 0.0
      %1364 = vmatmul.mubr.f32.gmra.mrb[0].mxu0 %v1225
      %v1365 = vpop.f32.mrb[0].mxu0
      %v1366 = vadd.f32 0.0, %v1365
      %v1367 = vpop.f32.mrb[0].mxu0
      %1368 = vdwg.mxu0
      %1370 = vrot.lane.b32.xlu0 %v1366, 1
      %v1371 = vpop.permute.xlu0 %1370
      %s1373 = scalar_lea.vmem [#allocation2], 16
      %1374 = vst.msk [vmem:[%s1373] sm:$0xff] %vm917, %v1371
      %1375 = vrot.lane.b32.xlu0 %v731, 96
      %v1376 = vpop.permute.xlu0 %1375
      %v1377 = vsel %vm765, %v1376, 0
      %1379 = vmatprep.subr.mxu0 0.0
      %1380 = vmatpush1.msra.mxu0 %v739
      %1381 = vmatprep.subr.mxu0 0.0
      %1382 = vmatpush1.msra.mxu0 0.0
      %1383 = vmatprep.subr.mxu0 0.0
      %1384 = vmatpush1.msra.mxu0 0.0
      %1385 = vmatprep.subr.mxu0 0.0
      %1386 = vmatpush1.msra.mxu0 0.0
      %1387 = vmatprep.subr.mxu0 0.0
      %1388 = vmatpush1.msra.mxu0 0.0
      %1389 = vmatprep.subr.mxu0 0.0
      %1390 = vmatpush1.msra.mxu0 0.0
      %1391 = vmatprep.subr.mxu0 0.0
      %1392 = vmatpush1.msra.mxu0 0.0
      %1393 = vmatprep.subr.mxu0 0.0
      %1394 = vmatpush1.msra.mxu0 0.0
      %1395 = vmatprep.subr.mxu0 0.0
      %1396 = vmatpush1.msra.mxu0 0.0
      %1397 = vmatprep.subr.mxu0 0.0
      %1398 = vmatpush1.msra.mxu0 0.0
      %1399 = vmatprep.subr.mxu0 0.0
      %1400 = vmatpush1.msra.mxu0 0.0
      %1401 = vmatprep.subr.mxu0 0.0
      %1402 = vmatpush1.msra.mxu0 0.0
      %1403 = vmatprep.subr.mxu0 0.0
      %1404 = vmatpush1.msra.mxu0 0.0
      %1405 = vmatprep.subr.mxu0 0.0
      %1406 = vmatpush1.msra.mxu0 0.0
      %1407 = vmatprep.subr.mxu0 0.0
      %1408 = vmatpush1.msra.mxu0 0.0
      %1409 = vmatprep.subr.mxu0 0.0
      %1410 = vmatpush1.msra.mxu0 0.0
      %1411 = vmatprep.subr.mxu0 0.0
      %1412 = vmatpush1.msra.mxu0 0.0
      %1413 = vmatprep.subr.mxu0 0.0
      %1414 = vmatpush1.msra.mxu0 0.0
      %1415 = vmatprep.subr.mxu0 0.0
      %1416 = vmatpush1.msra.mxu0 0.0
      %1417 = vmatprep.subr.mxu0 0.0
      %1418 = vmatpush1.msra.mxu0 0.0
      %1419 = vmatprep.subr.mxu0 0.0
      %1420 = vmatpush1.msra.mxu0 0.0
      %1421 = vmatprep.subr.mxu0 0.0
      %1422 = vmatpush1.msra.mxu0 0.0
      %1423 = vmatprep.subr.mxu0 0.0
      %1424 = vmatpush1.msra.mxu0 0.0
      %1425 = vmatprep.subr.mxu0 0.0
      %1426 = vmatpush1.msra.mxu0 0.0
      %1427 = vmatprep.subr.mxu0 0.0
      %1428 = vmatpush1.msra.mxu0 0.0
      %1429 = vmatprep.subr.mxu0 0.0
      %1430 = vmatpush1.msra.mxu0 0.0
      %1431 = vmatprep.subr.mxu0 0.0
      %1432 = vmatpush1.msra.mxu0 0.0
      %1433 = vmatprep.subr.mxu0 0.0
      %1434 = vmatpush1.msra.mxu0 0.0
      %1435 = vmatprep.subr.mxu0 0.0
      %1436 = vmatpush1.msra.mxu0 0.0
      %1437 = vmatprep.subr.mxu0 0.0
      %1438 = vmatpush1.msra.mxu0 0.0
      %1439 = vmatprep.subr.mxu0 0.0
      %1440 = vmatpush1.msra.mxu0 0.0
      %1441 = vmatprep.subr.mxu0 0.0
      %1442 = vmatpush1.msra.mxu0 0.0
      %1443 = vmatprep.mubr.f32.mxu0 0.0
      %1444 = vmatmul.mubr.f32.gmra.mrb[0].mxu0 %v1377
      %v1445 = vpop.f32.mrb[0].mxu0
      %v1446 = vadd.f32 0.0, %v1445
      %v1447 = vpop.f32.mrb[0].mxu0
      %1448 = vdwg.mxu0
      %s1449 = scalar_lea.vmem [#allocation2], 136
      %1450 = vst.msk [vmem:[%s1449] sm:$0xff] %vm840, %v1446
      %1451 = vmatprep.subr.mxu0 0.0
      %1452 = vmatpush1.msra.mxu0 %v743
      %1453 = vmatprep.subr.mxu0 0.0
      %1454 = vmatpush1.msra.mxu0 0.0
      %1455 = vmatprep.subr.mxu0 0.0
      %1456 = vmatpush1.msra.mxu0 0.0
      %1457 = vmatprep.subr.mxu0 0.0
      %1458 = vmatpush1.msra.mxu0 0.0
      %1459 = vmatprep.subr.mxu0 0.0
      %1460 = vmatpush1.msra.mxu0 0.0
      %1461 = vmatprep.subr.mxu0 0.0
      %1462 = vmatpush1.msra.mxu0 0.0
      %1463 = vmatprep.subr.mxu0 0.0
      %1464 = vmatpush1.msra.mxu0 0.0
      %1465 = vmatprep.subr.mxu0 0.0
      %1466 = vmatpush1.msra.mxu0 0.0
      %1467 = vmatprep.subr.mxu0 0.0
      %1468 = vmatpush1.msra.mxu0 0.0
      %1469 = vmatprep.subr.mxu0 0.0
      %1470 = vmatpush1.msra.mxu0 0.0
      %1471 = vmatprep.subr.mxu0 0.0
      %1472 = vmatpush1.msra.mxu0 0.0
      %1473 = vmatprep.subr.mxu0 0.0
      %1474 = vmatpush1.msra.mxu0 0.0
      %1475 = vmatprep.subr.mxu0 0.0
      %1476 = vmatpush1.msra.mxu0 0.0
      %1477 = vmatprep.subr.mxu0 0.0
      %1478 = vmatpush1.msra.mxu0 0.0
      %1479 = vmatprep.subr.mxu0 0.0
      %1480 = vmatpush1.msra.mxu0 0.0
      %1481 = vmatprep.subr.mxu0 0.0
      %1482 = vmatpush1.msra.mxu0 0.0
      %1483 = vmatprep.subr.mxu0 0.0
      %1484 = vmatpush1.msra.mxu0 0.0
      %1485 = vmatprep.subr.mxu0 0.0
      %1486 = vmatpush1.msra.mxu0 0.0
      %1487 = vmatprep.subr.mxu0 0.0
      %1488 = vmatpush1.msra.mxu0 0.0
      %1489 = vmatprep.subr.mxu0 0.0
      %1490 = vmatpush1.msra.mxu0 0.0
      %1491 = vmatprep.subr.mxu0 0.0
      %1492 = vmatpush1.msra.mxu0 0.0
      %1493 = vmatprep.subr.mxu0 0.0
      %1494 = vmatpush1.msra.mxu0 0.0
      %1495 = vmatprep.subr.mxu0 0.0
      %1496 = vmatpush1.msra.mxu0 0.0
      %1497 = vmatprep.subr.mxu0 0.0
      %1498 = vmatpush1.msra.mxu0 0.0
      %1499 = vmatprep.subr.mxu0 0.0
      %1500 = vmatpush1.msra.mxu0 0.0
      %1501 = vmatprep.subr.mxu0 0.0
      %1502 = vmatpush1.msra.mxu0 0.0
      %1503 = vmatprep.subr.mxu0 0.0
      %1504 = vmatpush1.msra.mxu0 0.0
      %1505 = vmatprep.subr.mxu0 0.0
      %1506 = vmatpush1.msra.mxu0 0.0
      %1507 = vmatprep.subr.mxu0 0.0
      %1508 = vmatpush1.msra.mxu0 0.0
      %1509 = vmatprep.subr.mxu0 0.0
      %1510 = vmatpush1.msra.mxu0 0.0
      %1511 = vmatprep.subr.mxu0 0.0
      %1512 = vmatpush1.msra.mxu0 0.0
      %1513 = vmatprep.subr.mxu0 0.0
      %1514 = vmatpush1.msra.mxu0 0.0
      %1515 = vmatprep.mubr.f32.mxu0 0.0
      %1516 = vmatmul.mubr.f32.gmra.mrb[0].mxu0 %v1377
      %v1517 = vpop.f32.mrb[0].mxu0
      %v1518 = vadd.f32 0.0, %v1517
      %v1519 = vpop.f32.mrb[0].mxu0
      %1520 = vdwg.mxu0
      %1522 = vrot.lane.b32.xlu0 %v1518, 1
      %v1523 = vpop.permute.xlu0 %1522
      %s1525 = scalar_lea.vmem [#allocation2], 96
      %1526 = vst.msk [vmem:[%s1525] sm:$0xff] %vm917, %v1523
      %1527 = vrot.lane.b32.xlu0 %v731, 88
      %v1528 = vpop.permute.xlu0 %1527
      %v1529 = vsel %vm765, %v1528, 0
      %1531 = vmatprep.subr.mxu0 0.0
      %1532 = vmatpush1.msra.mxu0 %v739
      %1533 = vmatprep.subr.mxu0 0.0
      %1534 = vmatpush1.msra.mxu0 0.0
      %1535 = vmatprep.subr.mxu0 0.0
      %1536 = vmatpush1.msra.mxu0 0.0
      %1537 = vmatprep.subr.mxu0 0.0
      %1538 = vmatpush1.msra.mxu0 0.0
      %1539 = vmatprep.subr.mxu0 0.0
      %1540 = vmatpush1.msra.mxu0 0.0
      %1541 = vmatprep.subr.mxu0 0.0
      %1542 = vmatpush1.msra.mxu0 0.0
      %1543 = vmatprep.subr.mxu0 0.0
      %1544 = vmatpush1.msra.mxu0 0.0
      %1545 = vmatprep.subr.mxu0 0.0
      %1546 = vmatpush1.msra.mxu0 0.0
      %1547 = vmatprep.subr.mxu0 0.0
      %1548 = vmatpush1.msra.mxu0 0.0
      %1549 = vmatprep.subr.mxu0 0.0
      %1550 = vmatpush1.msra.mxu0 0.0
      %1551 = vmatprep.subr.mxu0 0.0
      %1552 = vmatpush1.msra.mxu0 0.0
      %1553 = vmatprep.subr.mxu0 0.0
      %1554 = vmatpush1.msra.mxu0 0.0
      %1555 = vmatprep.subr.mxu0 0.0
      %1556 = vmatpush1.msra.mxu0 0.0
      %1557 = vmatprep.subr.mxu0 0.0
      %1558 = vmatpush1.msra.mxu0 0.0
      %1559 = vmatprep.subr.mxu0 0.0
      %1560 = vmatpush1.msra.mxu0 0.0
      %1561 = vmatprep.subr.mxu0 0.0
      %1562 = vmatpush1.msra.mxu0 0.0
      %1563 = vmatprep.subr.mxu0 0.0
      %1564 = vmatpush1.msra.mxu0 0.0
      %1565 = vmatprep.subr.mxu0 0.0
      %1566 = vmatpush1.msra.mxu0 0.0
      %1567 = vmatprep.subr.mxu0 0.0
      %1568 = vmatpush1.msra.mxu0 0.0
      %1569 = vmatprep.subr.mxu0 0.0
      %1570 = vmatpush1.msra.mxu0 0.0
      %1571 = vmatprep.subr.mxu0 0.0
      %1572 = vmatpush1.msra.mxu0 0.0
      %1573 = vmatprep.subr.mxu0 0.0
      %1574 = vmatpush1.msra.mxu0 0.0
      %1575 = vmatprep.subr.mxu0 0.0
      %1576 = vmatpush1.msra.mxu0 0.0
      %1577 = vmatprep.subr.mxu0 0.0
      %1578 = vmatpush1.msra.mxu0 0.0
      %1579 = vmatprep.subr.mxu0 0.0
      %1580 = vmatpush1.msra.mxu0 0.0
      %1581 = vmatprep.subr.mxu0 0.0
      %1582 = vmatpush1.msra.mxu0 0.0
      %1583 = vmatprep.subr.mxu0 0.0
      %1584 = vmatpush1.msra.mxu0 0.0
      %1585 = vmatprep.subr.mxu0 0.0
      %1586 = vmatpush1.msra.mxu0 0.0
      %1587 = vmatprep.subr.mxu0 0.0
      %1588 = vmatpush1.msra.mxu0 0.0
      %1589 = vmatprep.subr.mxu0 0.0
      %1590 = vmatpush1.msra.mxu0 0.0
      %1591 = vmatprep.subr.mxu0 0.0
      %1592 = vmatpush1.msra.mxu0 0.0
      %1593 = vmatprep.subr.mxu0 0.0
      %1594 = vmatpush1.msra.mxu0 0.0
      %1595 = vmatprep.mubr.f32.mxu0 0.0
      %1596 = vmatmul.mubr.f32.gmra.mrb[0].mxu0 %v1529
      %v1597 = vpop.f32.mrb[0].mxu0
      %v1598 = vadd.f32 0.0, %v1597
      %v1599 = vpop.f32.mrb[0].mxu0
      %1600 = vdwg.mxu0
      %s1601 = scalar_lea.vmem [#allocation2], 64
      %1602 = vst.msk [vmem:[%s1601] sm:$0xff] %vm840, %v1598
      %1603 = vmatprep.subr.mxu0 0.0
      %1604 = vmatpush1.msra.mxu0 %v743
      %1605 = vmatprep.subr.mxu0 0.0
      %1606 = vmatpush1.msra.mxu0 0.0
      %1607 = vmatprep.subr.mxu0 0.0
      %1608 = vmatpush1.msra.mxu0 0.0
      %1609 = vmatprep.subr.mxu0 0.0
      %1610 = vmatpush1.msra.mxu0 0.0
      %1611 = vmatprep.subr.mxu0 0.0
      %1612 = vmatpush1.msra.mxu0 0.0
      %1613 = vmatprep.subr.mxu0 0.0
      %1614 = vmatpush1.msra.mxu0 0.0
      %1615 = vmatprep.subr.mxu0 0.0
      %1616 = vmatpush1.msra.mxu0 0.0
      %1617 = vmatprep.subr.mxu0 0.0
      %1618 = vmatpush1.msra.mxu0 0.0
      %1619 = vmatprep.subr.mxu0 0.0
      %1620 = vmatpush1.msra.mxu0 0.0
      %1621 = vmatprep.subr.mxu0 0.0
      %1622 = vmatpush1.msra.mxu0 0.0
      %1623 = vmatprep.subr.mxu0 0.0
      %1624 = vmatpush1.msra.mxu0 0.0
      %1625 = vmatprep.subr.mxu0 0.0
      %1626 = vmatpush1.msra.mxu0 0.0
      %1627 = vmatprep.subr.mxu0 0.0
      %1628 = vmatpush1.msra.mxu0 0.0
      %1629 = vmatprep.subr.mxu0 0.0
      %1630 = vmatpush1.msra.mxu0 0.0
      %1631 = vmatprep.subr.mxu0 0.0
      %1632 = vmatpush1.msra.mxu0 0.0
      %1633 = vmatprep.subr.mxu0 0.0
      %1634 = vmatpush1.msra.mxu0 0.0
      %1635 = vmatprep.subr.mxu0 0.0
      %1636 = vmatpush1.msra.mxu0 0.0
      %1637 = vmatprep.subr.mxu0 0.0
      %1638 = vmatpush1.msra.mxu0 0.0
      %1639 = vmatprep.subr.mxu0 0.0
      %1640 = vmatpush1.msra.mxu0 0.0
      %1641 = vmatprep.subr.mxu0 0.0
      %1642 = vmatpush1.msra.mxu0 0.0
      %1643 = vmatprep.subr.mxu0 0.0
      %1644 = vmatpush1.msra.mxu0 0.0
      %1645 = vmatprep.subr.mxu0 0.0
      %1646 = vmatpush1.msra.mxu0 0.0
      %1647 = vmatprep.subr.mxu0 0.0
      %1648 = vmatpush1.msra.mxu0 0.0
      %1649 = vmatprep.subr.mxu0 0.0
      %1650 = vmatpush1.msra.mxu0 0.0
      %1651 = vmatprep.subr.mxu0 0.0
      %1652 = vmatpush1.msra.mxu0 0.0
      %1653 = vmatprep.subr.mxu0 0.0
      %1654 = vmatpush1.msra.mxu0 0.0
      %1655 = vmatprep.subr.mxu0 0.0
      %1656 = vmatpush1.msra.mxu0 0.0
      %1657 = vmatprep.subr.mxu0 0.0
      %1658 = vmatpush1.msra.mxu0 0.0
      %1659 = vmatprep.subr.mxu0 0.0
      %1660 = vmatpush1.msra.mxu0 0.0
      %1661 = vmatprep.subr.mxu0 0.0
      %1662 = vmatpush1.msra.mxu0 0.0
      %1663 = vmatprep.subr.mxu0 0.0
      %1664 = vmatpush1.msra.mxu0 0.0
      %1665 = vmatprep.subr.mxu0 0.0
      %1666 = vmatpush1.msra.mxu0 0.0
      %1667 = vmatprep.mubr.f32.mxu0 0.0
      %1668 = vmatmul.mubr.f32.gmra.mrb[0].mxu0 %v1529
      %v1669 = vpop.f32.mrb[0].mxu0
      %v1670 = vadd.f32 0.0, %v1669
      %v1671 = vpop.f32.mrb[0].mxu0
      %1672 = vdwg.mxu0
      %1674 = vrot.lane.b32.xlu0 %v1670, 1
      %v1675 = vpop.permute.xlu0 %1674
      %s1677 = scalar_lea.vmem [#allocation2], 24
      %1678 = vst.msk [vmem:[%s1677] sm:$0xff] %vm917, %v1675
      %1679 = vrot.lane.b32.xlu0 %v731, 80
      %v1680 = vpop.permute.xlu0 %1679
      %v1681 = vsel %vm765, %v1680, 0
      %1683 = vmatprep.subr.mxu0 0.0
      %1684 = vmatpush1.msra.mxu0 %v739
      %1685 = vmatprep.subr.mxu0 0.0
      %1686 = vmatpush1.msra.mxu0 0.0
      %1687 = vmatprep.subr.mxu0 0.0
      %1688 = vmatpush1.msra.mxu0 0.0
      %1689 = vmatprep.subr.mxu0 0.0
      %1690 = vmatpush1.msra.mxu0 0.0
      %1691 = vmatprep.subr.mxu0 0.0
      %1692 = vmatpush1.msra.mxu0 0.0
      %1693 = vmatprep.subr.mxu0 0.0
      %1694 = vmatpush1.msra.mxu0 0.0
      %1695 = vmatprep.subr.mxu0 0.0
      %1696 = vmatpush1.msra.mxu0 0.0
      %1697 = vmatprep.subr.mxu0 0.0
      %1698 = vmatpush1.msra.mxu0 0.0
      %1699 = vmatprep.subr.mxu0 0.0
      %1700 = vmatpush1.msra.mxu0 0.0
      %1701 = vmatprep.subr.mxu0 0.0
      %1702 = vmatpush1.msra.mxu0 0.0
      %1703 = vmatprep.subr.mxu0 0.0
      %1704 = vmatpush1.msra.mxu0 0.0
      %1705 = vmatprep.subr.mxu0 0.0
      %1706 = vmatpush1.msra.mxu0 0.0
      %1707 = vmatprep.subr.mxu0 0.0
      %1708 = vmatpush1.msra.mxu0 0.0
      %1709 = vmatprep.subr.mxu0 0.0
      %1710 = vmatpush1.msra.mxu0 0.0
      %1711 = vmatprep.subr.mxu0 0.0
      %1712 = vmatpush1.msra.mxu0 0.0
      %1713 = vmatprep.subr.mxu0 0.0
      %1714 = vmatpush1.msra.mxu0 0.0
      %1715 = vmatprep.subr.mxu0 0.0
      %1716 = vmatpush1.msra.mxu0 0.0
      %1717 = vmatprep.subr.mxu0 0.0
      %1718 = vmatpush1.msra.mxu0 0.0
      %1719 = vmatprep.subr.mxu0 0.0
      %1720 = vmatpush1.msra.mxu0 0.0
      %1721 = vmatprep.subr.mxu0 0.0
      %1722 = vmatpush1.msra.mxu0 0.0
      %1723 = vmatprep.subr.mxu0 0.0
      %1724 = vmatpush1.msra.mxu0 0.0
      %1725 = vmatprep.subr.mxu0 0.0
      %1726 = vmatpush1.msra.mxu0 0.0
      %1727 = vmatprep.subr.mxu0 0.0
      %1728 = vmatpush1.msra.mxu0 0.0
      %1729 = vmatprep.subr.mxu0 0.0
      %1730 = vmatpush1.msra.mxu0 0.0
      %1731 = vmatprep.subr.mxu0 0.0
      %1732 = vmatpush1.msra.mxu0 0.0
      %1733 = vmatprep.subr.mxu0 0.0
      %1734 = vmatpush1.msra.mxu0 0.0
      %1735 = vmatprep.subr.mxu0 0.0
      %1736 = vmatpush1.msra.mxu0 0.0
      %1737 = vmatprep.subr.mxu0 0.0
      %1738 = vmatpush1.msra.mxu0 0.0
      %1739 = vmatprep.subr.mxu0 0.0
      %1740 = vmatpush1.msra.mxu0 0.0
      %1741 = vmatprep.subr.mxu0 0.0
      %1742 = vmatpush1.msra.mxu0 0.0
      %1743 = vmatprep.subr.mxu0 0.0
      %1744 = vmatpush1.msra.mxu0 0.0
      %1745 = vmatprep.subr.mxu0 0.0
      %1746 = vmatpush1.msra.mxu0 0.0
      %1747 = vmatprep.mubr.f32.mxu0 0.0
      %1748 = vmatmul.mubr.f32.gmra.mrb[0].mxu0 %v1681
      %v1749 = vpop.f32.mrb[0].mxu0
      %v1750 = vadd.f32 0.0, %v1749
      %v1751 = vpop.f32.mrb[0].mxu0
      %1752 = vdwg.mxu0
      %s1753 = scalar_lea.vmem [#allocation2], 144
      %1754 = vst.msk [vmem:[%s1753] sm:$0xff] %vm840, %v1750
      %1755 = vmatprep.subr.mxu0 0.0
      %1756 = vmatpush1.msra.mxu0 %v743
      %1757 = vmatprep.subr.mxu0 0.0
      %1758 = vmatpush1.msra.mxu0 0.0
      %1759 = vmatprep.subr.mxu0 0.0
      %1760 = vmatpush1.msra.mxu0 0.0
      %1761 = vmatprep.subr.mxu0 0.0
      %1762 = vmatpush1.msra.mxu0 0.0
      %1763 = vmatprep.subr.mxu0 0.0
      %1764 = vmatpush1.msra.mxu0 0.0
      %1765 = vmatprep.subr.mxu0 0.0
      %1766 = vmatpush1.msra.mxu0 0.0
      %1767 = vmatprep.subr.mxu0 0.0
      %1768 = vmatpush1.msra.mxu0 0.0
      %1769 = vmatprep.subr.mxu0 0.0
      %1770 = vmatpush1.msra.mxu0 0.0
      %1771 = vmatprep.subr.mxu0 0.0
      %1772 = vmatpush1.msra.mxu0 0.0
      %1773 = vmatprep.subr.mxu0 0.0
      %1774 = vmatpush1.msra.mxu0 0.0
      %1775 = vmatprep.subr.mxu0 0.0
      %1776 = vmatpush1.msra.mxu0 0.0
      %1777 = vmatprep.subr.mxu0 0.0
      %1778 = vmatpush1.msra.mxu0 0.0
      %1779 = vmatprep.subr.mxu0 0.0
      %1780 = vmatpush1.msra.mxu0 0.0
      %1781 = vmatprep.subr.mxu0 0.0
      %1782 = vmatpush1.msra.mxu0 0.0
      %1783 = vmatprep.subr.mxu0 0.0
      %1784 = vmatpush1.msra.mxu0 0.0
      %1785 = vmatprep.subr.mxu0 0.0
      %1786 = vmatpush1.msra.mxu0 0.0
      %1787 = vmatprep.subr.mxu0 0.0
      %1788 = vmatpush1.msra.mxu0 0.0
      %1789 = vmatprep.subr.mxu0 0.0
      %1790 = vmatpush1.msra.mxu0 0.0
      %1791 = vmatprep.subr.mxu0 0.0
      %1792 = vmatpush1.msra.mxu0 0.0
      %1793 = vmatprep.subr.mxu0 0.0
      %1794 = vmatpush1.msra.mxu0 0.0
      %1795 = vmatprep.subr.mxu0 0.0
      %1796 = vmatpush1.msra.mxu0 0.0
      %1797 = vmatprep.subr.mxu0 0.0
      %1798 = vmatpush1.msra.mxu0 0.0
      %1799 = vmatprep.subr.mxu0 0.0
      %1800 = vmatpush1.msra.mxu0 0.0
      %1801 = vmatprep.subr.mxu0 0.0
      %1802 = vmatpush1.msra.mxu0 0.0
      %1803 = vmatprep.subr.mxu0 0.0
      %1804 = vmatpush1.msra.mxu0 0.0
      %1805 = vmatprep.subr.mxu0 0.0
      %1806 = vmatpush1.msra.mxu0 0.0
      %1807 = vmatprep.subr.mxu0 0.0
      %1808 = vmatpush1.msra.mxu0 0.0
      %1809 = vmatprep.subr.mxu0 0.0
      %1810 = vmatpush1.msra.mxu0 0.0
      %1811 = vmatprep.subr.mxu0 0.0
      %1812 = vmatpush1.msra.mxu0 0.0
      %1813 = vmatprep.subr.mxu0 0.0
      %1814 = vmatpush1.msra.mxu0 0.0
      %1815 = vmatprep.subr.mxu0 0.0
      %1816 = vmatpush1.msra.mxu0 0.0
      %1817 = vmatprep.subr.mxu0 0.0
      %1818 = vmatpush1.msra.mxu0 0.0
      %1819 = vmatprep.mubr.f32.mxu0 0.0
      %1820 = vmatmul.mubr.f32.gmra.mrb[0].mxu0 %v1681
      %v1821 = vpop.f32.mrb[0].mxu0
      %v1822 = vadd.f32 0.0, %v1821
      %v1823 = vpop.f32.mrb[0].mxu0
      %1824 = vdwg.mxu0
      %1826 = vrot.lane.b32.xlu0 %v1822, 1
      %v1827 = vpop.permute.xlu0 %1826
      %s1829 = scalar_lea.vmem [#allocation2], 104
      %1830 = vst.msk [vmem:[%s1829] sm:$0xff] %vm917, %v1827
      %1831 = vrot.lane.b32.xlu0 %v731, 72
      %v1832 = vpop.permute.xlu0 %1831
      %v1833 = vsel %vm765, %v1832, 0
      %1835 = vmatprep.subr.mxu0 0.0
      %1836 = vmatpush1.msra.mxu0 %v739
      %1837 = vmatprep.subr.mxu0 0.0
      %1838 = vmatpush1.msra.mxu0 0.0
      %1839 = vmatprep.subr.mxu0 0.0
      %1840 = vmatpush1.msra.mxu0 0.0
      %1841 = vmatprep.subr.mxu0 0.0
      %1842 = vmatpush1.msra.mxu0 0.0
      %1843 = vmatprep.subr.mxu0 0.0
      %1844 = vmatpush1.msra.mxu0 0.0
      %1845 = vmatprep.subr.mxu0 0.0
      %1846 = vmatpush1.msra.mxu0 0.0
      %1847 = vmatprep.subr.mxu0 0.0
      %1848 = vmatpush1.msra.mxu0 0.0
      %1849 = vmatprep.subr.mxu0 0.0
      %1850 = vmatpush1.msra.mxu0 0.0
      %1851 = vmatprep.subr.mxu0 0.0
      %1852 = vmatpush1.msra.mxu0 0.0
      %1853 = vmatprep.subr.mxu0 0.0
      %1854 = vmatpush1.msra.mxu0 0.0
      %1855 = vmatprep.subr.mxu0 0.0
      %1856 = vmatpush1.msra.mxu0 0.0
      %1857 = vmatprep.subr.mxu0 0.0
      %1858 = vmatpush1.msra.mxu0 0.0
      %1859 = vmatprep.subr.mxu0 0.0
      %1860 = vmatpush1.msra.mxu0 0.0
      %1861 = vmatprep.subr.mxu0 0.0
      %1862 = vmatpush1.msra.mxu0 0.0
      %1863 = vmatprep.subr.mxu0 0.0
      %1864 = vmatpush1.msra.mxu0 0.0
      %1865 = vmatprep.subr.mxu0 0.0
      %1866 = vmatpush1.msra.mxu0 0.0
      %1867 = vmatprep.subr.mxu0 0.0
      %1868 = vmatpush1.msra.mxu0 0.0
      %1869 = vmatprep.subr.mxu0 0.0
      %1870 = vmatpush1.msra.mxu0 0.0
      %1871 = vmatprep.subr.mxu0 0.0
      %1872 = vmatpush1.msra.mxu0 0.0
      %1873 = vmatprep.subr.mxu0 0.0
      %1874 = vmatpush1.msra.mxu0 0.0
      %1875 = vmatprep.subr.mxu0 0.0
      %1876 = vmatpush1.msra.mxu0 0.0
      %1877 = vmatprep.subr.mxu0 0.0
      %1878 = vmatpush1.msra.mxu0 0.0
      %1879 = vmatprep.subr.mxu0 0.0
      %1880 = vmatpush1.msra.mxu0 0.0
      %1881 = vmatprep.subr.mxu0 0.0
      %1882 = vmatpush1.msra.mxu0 0.0
      %1883 = vmatprep.subr.mxu0 0.0
      %1884 = vmatpush1.msra.mxu0 0.0
      %1885 = vmatprep.subr.mxu0 0.0
      %1886 = vmatpush1.msra.mxu0 0.0
      %1887 = vmatprep.subr.mxu0 0.0
      %1888 = vmatpush1.msra.mxu0 0.0
      %1889 = vmatprep.subr.mxu0 0.0
      %1890 = vmatpush1.msra.mxu0 0.0
      %1891 = vmatprep.subr.mxu0 0.0
      %1892 = vmatpush1.msra.mxu0 0.0
      %1893 = vmatprep.subr.mxu0 0.0
      %1894 = vmatpush1.msra.mxu0 0.0
      %1895 = vmatprep.subr.mxu0 0.0
      %1896 = vmatpush1.msra.mxu0 0.0
      %1897 = vmatprep.subr.mxu0 0.0
      %1898 = vmatpush1.msra.mxu0 0.0
      %1899 = vmatprep.mubr.f32.mxu0 0.0
      %1900 = vmatmul.mubr.f32.gmra.mrb[0].mxu0 %v1833
      %v1901 = vpop.f32.mrb[0].mxu0
      %v1902 = vadd.f32 0.0, %v1901
      %v1903 = vpop.f32.mrb[0].mxu0
      %1904 = vdwg.mxu0
      %s1905 = scalar_lea.vmem [#allocation2], 72
      %1906 = vst.msk [vmem:[%s1905] sm:$0xff] %vm840, %v1902
      %1907 = vmatprep.subr.mxu0 0.0
      %1908 = vmatpush1.msra.mxu0 %v743
      %1909 = vmatprep.subr.mxu0 0.0
      %1910 = vmatpush1.msra.mxu0 0.0
      %1911 = vmatprep.subr.mxu0 0.0
      %1912 = vmatpush1.msra.mxu0 0.0
      %1913 = vmatprep.subr.mxu0 0.0
      %1914 = vmatpush1.msra.mxu0 0.0
      %1915 = vmatprep.subr.mxu0 0.0
      %1916 = vmatpush1.msra.mxu0 0.0
      %1917 = vmatprep.subr.mxu0 0.0
      %1918 = vmatpush1.msra.mxu0 0.0
      %1919 = vmatprep.subr.mxu0 0.0
      %1920 = vmatpush1.msra.mxu0 0.0
      %1921 = vmatprep.subr.mxu0 0.0
      %1922 = vmatpush1.msra.mxu0 0.0
      %1923 = vmatprep.subr.mxu0 0.0
      %1924 = vmatpush1.msra.mxu0 0.0
      %1925 = vmatprep.subr.mxu0 0.0
      %1926 = vmatpush1.msra.mxu0 0.0
      %1927 = vmatprep.subr.mxu0 0.0
      %1928 = vmatpush1.msra.mxu0 0.0
      %1929 = vmatprep.subr.mxu0 0.0
      %1930 = vmatpush1.msra.mxu0 0.0
      %1931 = vmatprep.subr.mxu0 0.0
      %1932 = vmatpush1.msra.mxu0 0.0
      %1933 = vmatprep.subr.mxu0 0.0
      %1934 = vmatpush1.msra.mxu0 0.0
      %1935 = vmatprep.subr.mxu0 0.0
      %1936 = vmatpush1.msra.mxu0 0.0
      %1937 = vmatprep.subr.mxu0 0.0
      %1938 = vmatpush1.msra.mxu0 0.0
      %1939 = vmatprep.subr.mxu0 0.0
      %1940 = vmatpush1.msra.mxu0 0.0
      %1941 = vmatprep.subr.mxu0 0.0
      %1942 = vmatpush1.msra.mxu0 0.0
      %1943 = vmatprep.subr.mxu0 0.0
      %1944 = vmatpush1.msra.mxu0 0.0
      %1945 = vmatprep.subr.mxu0 0.0
      %1946 = vmatpush1.msra.mxu0 0.0
      %1947 = vmatprep.subr.mxu0 0.0
      %1948 = vmatpush1.msra.mxu0 0.0
      %1949 = vmatprep.subr.mxu0 0.0
      %1950 = vmatpush1.msra.mxu0 0.0
      %1951 = vmatprep.subr.mxu0 0.0
      %1952 = vmatpush1.msra.mxu0 0.0
      %1953 = vmatprep.subr.mxu0 0.0
      %1954 = vmatpush1.msra.mxu0 0.0
      %1955 = vmatprep.subr.mxu0 0.0
      %1956 = vmatpush1.msra.mxu0 0.0
      %1957 = vmatprep.subr.mxu0 0.0
      %1958 = vmatpush1.msra.mxu0 0.0
      %1959 = vmatprep.subr.mxu0 0.0
      %1960 = vmatpush1.msra.mxu0 0.0
      %1961 = vmatprep.subr.mxu0 0.0
      %1962 = vmatpush1.msra.mxu0 0.0
      %1963 = vmatprep.subr.mxu0 0.0
      %1964 = vmatpush1.msra.mxu0 0.0
      %1965 = vmatprep.subr.mxu0 0.0
      %1966 = vmatpush1.msra.mxu0 0.0
      %1967 = vmatprep.subr.mxu0 0.0
      %1968 = vmatpush1.msra.mxu0 0.0
      %1969 = vmatprep.subr.mxu0 0.0
      %1970 = vmatpush1.msra.mxu0 0.0
      %1971 = vmatprep.mubr.f32.mxu0 0.0
      %1972 = vmatmul.mubr.f32.gmra.mrb[0].mxu0 %v1833
      %v1973 = vpop.f32.mrb[0].mxu0
      %v1974 = vadd.f32 0.0, %v1973
      %v1975 = vpop.f32.mrb[0].mxu0
      %1976 = vdwg.mxu0
      %1978 = vrot.lane.b32.xlu0 %v1974, 1
      %v1979 = vpop.permute.xlu0 %1978
      %s1981 = scalar_lea.vmem [#allocation2], 32
      %1982 = vst.msk [vmem:[%s1981] sm:$0xff] %vm917, %v1979
      %v1983 = vld [vmem:[#allocation2] sm:$0xff]
      %1984 = vst.msk [vmem:[#allocation5] sm:$0xff] %vm840, %v1983
      %v1985 = vld [vmem:[%s1069] sm:$0xff]
      %1987 = vrot.lane.b32.xlu0 %v1985, 4
      %v1988 = vpop.permute.xlu0 %1987
      %vm1990 = vcmask 64544
      %1991 = vst.msk [vmem:[#allocation5] sm:$0xff] %vm1990, %v1988
      %v1992 = vld [vmem:[%s1373] sm:$0xff]
      %1994 = vrot.lane.b32.xlu0 %v1992, 8
      %v1995 = vpop.permute.xlu0 %1994
      %vm1997 = vcmask 97344
      %1998 = vst.msk [vmem:[#allocation5] sm:$0xff] %vm1997, %v1995
      %v1999 = vld [vmem:[%s1677] sm:$0xff]
      %2001 = vrot.lane.b32.xlu0 %v1999, 12
      %v2002 = vpop.permute.xlu0 %2001
      %vm2004 = vcmask 130144
      %2005 = vst.msk [vmem:[#allocation5] sm:$0xff] %vm2004, %v2002
      %s2006 = scalar_lea.vmem [#allocation2], 40
      %v2007 = vld [vmem:[%s2006] sm:$0xff]
      %2008 = vst.msk [vmem:[#allocation5 + $0x8] sm:$0xff] %vm840, %v2007
      %v2009 = vld [vmem:[%s993] sm:$0xff]
      %2011 = vrot.lane.b32.xlu0 %v2009, 4
      %v2012 = vpop.permute.xlu0 %2011
      %2014 = vst.msk [vmem:[#allocation5 + $0x8] sm:$0xff] %vm1990, %v2012
      %v2015 = vld [vmem:[%s1297] sm:$0xff]
      %2017 = vrot.lane.b32.xlu0 %v2015, 8
      %v2018 = vpop.permute.xlu0 %2017
      %2020 = vst.msk [vmem:[#allocation5 + $0x8] sm:$0xff] %vm1997, %v2018
      %v2021 = vld [vmem:[%s1601] sm:$0xff]
      %2023 = vrot.lane.b32.xlu0 %v2021, 12
      %v2024 = vpop.permute.xlu0 %2023
      %2026 = vst.msk [vmem:[#allocation5 + $0x8] sm:$0xff] %vm2004, %v2024
      %v2027 = vld [vmem:[#allocation2] sm:$0xff]
      %2029 = vrot.lane.b32.xlu0 %v2027, 127
      %v2030 = vpop.permute.xlu0 %2029
      %2032 = vst.msk [vmem:[#allocation5 + $0x10] sm:$0xff] %vm840, %v2030
      %v2033 = vld [vmem:[%s1069] sm:$0xff]
      %2035 = vrot.lane.b32.xlu0 %v2033, 3
      %v2036 = vpop.permute.xlu0 %2035
      %2038 = vst.msk [vmem:[#allocation5 + $0x10] sm:$0xff] %vm1990, %v2036
      %v2039 = vld [vmem:[%s1373] sm:$0xff]
      %2041 = vrot.lane.b32.xlu0 %v2039, 7
      %v2042 = vpop.permute.xlu0 %2041
      %2044 = vst.msk [vmem:[#allocation5 + $0x10] sm:$0xff] %vm1997, %v2042
      %v2045 = vld [vmem:[%s1677] sm:$0xff]
      %2047 = vrot.lane.b32.xlu0 %v2045, 11
      %v2048 = vpop.permute.xlu0 %2047
      %2050 = vst.msk [vmem:[#allocation5 + $0x10] sm:$0xff] %vm2004, %v2048
      %v2051 = vld [vmem:[%s916] sm:$0xff]
      %2052 = vst.msk [vmem:[#allocation5 + $0x18] sm:$0xff] %vm840, %v2051
      %v2053 = vld [vmem:[%s1221] sm:$0xff]
      %2055 = vrot.lane.b32.xlu0 %v2053, 4
      %v2056 = vpop.permute.xlu0 %2055
      %2058 = vst.msk [vmem:[#allocation5 + $0x18] sm:$0xff] %vm1990, %v2056
      %v2059 = vld [vmem:[%s1525] sm:$0xff]
      %2061 = vrot.lane.b32.xlu0 %v2059, 8
      %v2062 = vpop.permute.xlu0 %2061
      %2064 = vst.msk [vmem:[#allocation5 + $0x18] sm:$0xff] %vm1997, %v2062
      %v2065 = vld [vmem:[%s1829] sm:$0xff]
      %2067 = vrot.lane.b32.xlu0 %v2065, 12
      %v2068 = vpop.permute.xlu0 %2067
      %2070 = vst.msk [vmem:[#allocation5 + $0x18] sm:$0xff] %vm2004, %v2068
      %v2071 = vld [vmem:[%s839] sm:$0xff]
      %2072 = vst.msk [vmem:[#allocation5 + $0x20] sm:$0xff] %vm840, %v2071
      %v2073 = vld [vmem:[%s1145] sm:$0xff]
      %2075 = vrot.lane.b32.xlu0 %v2073, 4
      %v2076 = vpop.permute.xlu0 %2075
      %2078 = vst.msk [vmem:[#allocation5 + $0x20] sm:$0xff] %vm1990, %v2076
      %v2079 = vld [vmem:[%s1449] sm:$0xff]
      %2081 = vrot.lane.b32.xlu0 %v2079, 8
      %v2082 = vpop.permute.xlu0 %2081
      %2084 = vst.msk [vmem:[#allocation5 + $0x20] sm:$0xff] %vm1997, %v2082
      %v2085 = vld [vmem:[%s1753] sm:$0xff]
      %2087 = vrot.lane.b32.xlu0 %v2085, 12
      %v2088 = vpop.permute.xlu0 %2087
      %2090 = vst.msk [vmem:[#allocation5 + $0x20] sm:$0xff] %vm2004, %v2088
      %v2091 = vld [vmem:[%s916] sm:$0xff]
      %2093 = vrot.lane.b32.xlu0 %v2091, 127
      %v2094 = vpop.permute.xlu0 %2093
      %2096 = vst.msk [vmem:[#allocation5 + $0x28] sm:$0xff] %vm840, %v2094
      %v2097 = vld [vmem:[%s1221] sm:$0xff]
      %2099 = vrot.lane.b32.xlu0 %v2097, 3
      %v2100 = vpop.permute.xlu0 %2099
      %2102 = vst.msk [vmem:[#allocation5 + $0x28] sm:$0xff] %vm1990, %v2100
      %v2103 = vld [vmem:[%s1525] sm:$0xff]
      %2105 = vrot.lane.b32.xlu0 %v2103, 7
      %v2106 = vpop.permute.xlu0 %2105
      %2108 = vst.msk [vmem:[#allocation5 + $0x28] sm:$0xff] %vm1997, %v2106
      %v2109 = vld [vmem:[%s1829] sm:$0xff]
      %2111 = vrot.lane.b32.xlu0 %v2109, 11
      %v2112 = vpop.permute.xlu0 %2111
      %2114 = vst.msk [vmem:[#allocation5 + $0x28] sm:$0xff] %vm2004, %v2112
      %v2115 = vld [vmem:[%s1069] sm:$0xff]
      %2116 = vst.msk [vmem:[#allocation5 + $0x30] sm:$0xff] %vm840, %v2115
      %v2117 = vld [vmem:[%s1373] sm:$0xff]
      %2119 = vrot.lane.b32.xlu0 %v2117, 4
      %v2120 = vpop.permute.xlu0 %2119
      %2122 = vst.msk [vmem:[#allocation5 + $0x30] sm:$0xff] %vm1990, %v2120
      %v2123 = vld [vmem:[%s1677] sm:$0xff]
      %2125 = vrot.lane.b32.xlu0 %v2123, 8
      %v2126 = vpop.permute.xlu0 %2125
      %2128 = vst.msk [vmem:[#allocation5 + $0x30] sm:$0xff] %vm1997, %v2126
      %v2129 = vld [vmem:[%s1981] sm:$0xff]
      %2131 = vrot.lane.b32.xlu0 %v2129, 12
      %v2132 = vpop.permute.xlu0 %2131
      %2134 = vst.msk [vmem:[#allocation5 + $0x30] sm:$0xff] %vm2004, %v2132
      %v2135 = vld [vmem:[%s993] sm:$0xff]
      %2136 = vst.msk [vmem:[#allocation5 + $0x38] sm:$0xff] %vm840, %v2135
      %v2137 = vld [vmem:[%s1297] sm:$0xff]
      %2139 = vrot.lane.b32.xlu0 %v2137, 4
      %v2140 = vpop.permute.xlu0 %2139
      %2142 = vst.msk [vmem:[#allocation5 + $0x38] sm:$0xff] %vm1990, %v2140
      %v2143 = vld [vmem:[%s1601] sm:$0xff]
      %2145 = vrot.lane.b32.xlu0 %v2143, 8
      %v2146 = vpop.permute.xlu0 %2145
      %2148 = vst.msk [vmem:[#allocation5 + $0x38] sm:$0xff] %vm1997, %v2146
      %v2149 = vld [vmem:[%s1905] sm:$0xff]
      %2151 = vrot.lane.b32.xlu0 %v2149, 12
      %v2152 = vpop.permute.xlu0 %2151
      %2154 = vst.msk [vmem:[#allocation5 + $0x38] sm:$0xff] %vm2004, %v2152
      %v2155 = vld [vmem:[%s1069] sm:$0xff]
      %2157 = vrot.lane.b32.xlu0 %v2155, 127
      %v2158 = vpop.permute.xlu0 %2157
      %2160 = vst.msk [vmem:[#allocation5 + $0x40] sm:$0xff] %vm840, %v2158
      %v2161 = vld [vmem:[%s1373] sm:$0xff]
      %2163 = vrot.lane.b32.xlu0 %v2161, 3
      %v2164 = vpop.permute.xlu0 %2163
      %2166 = vst.msk [vmem:[#allocation5 + $0x40] sm:$0xff] %vm1990, %v2164
      %v2167 = vld [vmem:[%s1677] sm:$0xff]
      %2169 = vrot.lane.b32.xlu0 %v2167, 7
      %v2170 = vpop.permute.xlu0 %2169
      %2172 = vst.msk [vmem:[#allocation5 + $0x40] sm:$0xff] %vm1997, %v2170
      %v2173 = vld [vmem:[%s1981] sm:$0xff]
      %2175 = vrot.lane.b32.xlu0 %v2173, 11
      %v2176 = vpop.permute.xlu0 %2175
      %2178 = vst.msk [vmem:[#allocation5 + $0x40] sm:$0xff] %vm2004, %v2176
      %v2179 = vld [vmem:[%s2] sm:$0xff]
      %v2180 = vld [vmem:[#allocation5] sm:$0xff]
      %v2181 = vld [vmem:[#allocation5 + $0x8] sm:$0xff]
      %v2182 = vld [vmem:[#allocation5 + $0x10] sm:$0xff]
      %v2183 = vld [vmem:[#allocation5 + $0x18] sm:$0xff]
      %v2184 = vld [vmem:[#allocation5 + $0x20] sm:$0xff]
      %v2185 = vld [vmem:[#allocation5 + $0x28] sm:$0xff]
      %v2186 = vld [vmem:[#allocation5 + $0x30] sm:$0xff]
      %v2187 = vld [vmem:[#allocation5 + $0x38] sm:$0xff]
      %v2188 = vld [vmem:[#allocation5 + $0x40] sm:$0xff]
      %vm2189 = vcmask 588800
      %v2191 = vsel %vm2189, %v2179, 0
      %2193 = vmatprep.subr.mxu0 0.0
      %2194 = vmatpush1.msra.mxu0 %v2180
      %2195 = vmatprep.subr.mxu0 0.0
      %2196 = vmatpush1.msra.mxu0 %v2181
      %2197 = vmatprep.subr.mxu0 0.0
      %2198 = vmatpush1.msra.mxu0 %v2182
      %2199 = vmatprep.subr.mxu0 0.0
      %2200 = vmatpush1.msra.mxu0 %v2183
      %2201 = vmatprep.subr.mxu0 0.0
      %2202 = vmatpush1.msra.mxu0 %v2184
      %2203 = vmatprep.subr.mxu0 0.0
      %2204 = vmatpush1.msra.mxu0 %v2185
      %2205 = vmatprep.subr.mxu0 0.0
      %2206 = vmatpush1.msra.mxu0 %v2186
      %2207 = vmatprep.subr.mxu0 0.0
      %2208 = vmatpush1.msra.mxu0 %v2187
      %2209 = vmatprep.subr.mxu0 0.0
      %2210 = vmatpush1.msra.mxu0 %v2188
      %2211 = vmatprep.subr.mxu0 0.0
      %2212 = vmatpush1.msra.mxu0 0.0
      %2213 = vmatprep.subr.mxu0 0.0
      %2214 = vmatpush1.msra.mxu0 0.0
      %2215 = vmatprep.subr.mxu0 0.0
      %2216 = vmatpush1.msra.mxu0 0.0
      %2217 = vmatprep.subr.mxu0 0.0
      %2218 = vmatpush1.msra.mxu0 0.0
      %2219 = vmatprep.subr.mxu0 0.0
      %2220 = vmatpush1.msra.mxu0 0.0
      %2221 = vmatprep.subr.mxu0 0.0
      %2222 = vmatpush1.msra.mxu0 0.0
      %2223 = vmatprep.subr.mxu0 0.0
      %2224 = vmatpush1.msra.mxu0 0.0
      %2225 = vmatprep.subr.mxu0 0.0
      %2226 = vmatpush1.msra.mxu0 0.0
      %2227 = vmatprep.subr.mxu0 0.0
      %2228 = vmatpush1.msra.mxu0 0.0
      %2229 = vmatprep.subr.mxu0 0.0
      %2230 = vmatpush1.msra.mxu0 0.0
      %2231 = vmatprep.subr.mxu0 0.0
      %2232 = vmatpush1.msra.mxu0 0.0
      %2233 = vmatprep.subr.mxu0 0.0
      %2234 = vmatpush1.msra.mxu0 0.0
      %2235 = vmatprep.subr.mxu0 0.0
      %2236 = vmatpush1.msra.mxu0 0.0
      %2237 = vmatprep.subr.mxu0 0.0
      %2238 = vmatpush1.msra.mxu0 0.0
      %2239 = vmatprep.subr.mxu0 0.0
      %2240 = vmatpush1.msra.mxu0 0.0
      %2241 = vmatprep.subr.mxu0 0.0
      %2242 = vmatpush1.msra.mxu0 0.0
      %2243 = vmatprep.subr.mxu0 0.0
      %2244 = vmatpush1.msra.mxu0 0.0
      %2245 = vmatprep.subr.mxu0 0.0
      %2246 = vmatpush1.msra.mxu0 0.0
      %2247 = vmatprep.subr.mxu0 0.0
      %2248 = vmatpush1.msra.mxu0 0.0
      %2249 = vmatprep.subr.mxu0 0.0
      %2250 = vmatpush1.msra.mxu0 0.0
      %2251 = vmatprep.subr.mxu0 0.0
      %2252 = vmatpush1.msra.mxu0 0.0
      %2253 = vmatprep.subr.mxu0 0.0
      %2254 = vmatpush1.msra.mxu0 0.0
      %2255 = vmatprep.subr.mxu0 0.0
      %2256 = vmatpush1.msra.mxu0 0.0
      %2257 = vmatprep.mubr.f32.mxu0 0.0
      %2258 = vmatmul.mubr.f32.gmra.mrb[0].mxu0 %v2191
      %v2259 = vpop.f32.mrb[0].mxu0
      %v2260 = vadd.f32 0.0, %v2259
      %v2261 = vpop.f32.mrb[0].mxu0
      %2262 = vdwg.mxu0
      %vm2263 = vcmp.ge.f32.partialorder %v2260, 0.0
      %v2264 = vmul.f32 %v2260, 0.01
      %v2265 = vsel %vm2263, %v2260, %v2264
      %vm2266 = vcmask 48128
      %2267 = vst.msk [vmem:[#allocation3] sm:$0xff] %vm2266, 0.0
      %2268 = vst.msk [vmem:[#allocation3 + $0x8] sm:$0xff] %vm2266, 0.0
      %2269 = vst.msk [vmem:[#allocation3 + $0x10] sm:$0xff] %vm2266, 0.0
      %2270 = vst.msk [vmem:[#allocation3 + $0x18] sm:$0xff] %vm2266, 0.0
      %2271 = vst.msk [vmem:[#allocation3 + $0x20] sm:$0xff] %vm2266, 0.0
      %2272 = vst.msk [vmem:[#allocation3 + $0x28] sm:$0xff] %vm2266, 0.0
      %2274 = vrot.lane.b32.xlu0 %v2265, 1
      %v2275 = vpop.permute.xlu0 %2274
      %s2277 = scalar_lea.vmem [#allocation3], 8
      %2278 = vst.msk [vmem:[%s2277] sm:$0xff] %vm917, %v2275
      %2279 = vrot.lane.b32.xlu0 %v2265, 125
      %v2280 = vpop.permute.xlu0 %2279
      %s2282 = scalar_lea.vmem [#allocation3], 16
      %2283 = vst.msk [vmem:[%s2282] sm:$0xff] %vm917, %v2280
      %2284 = vrot.lane.b32.xlu0 %v2265, 121
      %v2285 = vpop.permute.xlu0 %2284
      %s2287 = scalar_lea.vmem [#allocation3], 24
      %2288 = vst.msk [vmem:[%s2287] sm:$0xff] %vm917, %v2285
      %2289 = vrot.lane.b32.xlu0 %v2265, 117
      %v2290 = vpop.permute.xlu0 %2289
      %s2292 = scalar_lea.vmem [#allocation3], 32
      %2293 = vst.msk [vmem:[%s2292] sm:$0xff] %vm917, %v2290
      %v2294 = vld [vmem:[#allocation3] sm:$0xff]
      %2295 = vst.msk [vmem:[#allocation6] sm:$0xff] %vm840, %v2294
      %v2296 = vld [vmem:[%s2277] sm:$0xff]
      %2298 = vrot.lane.b32.xlu0 %v2296, 4
      %v2299 = vpop.permute.xlu0 %2298
      %2301 = vst.msk [vmem:[#allocation6] sm:$0xff] %vm1990, %v2299
      %v2302 = vld [vmem:[%s2282] sm:$0xff]
      %2304 = vrot.lane.b32.xlu0 %v2302, 8
      %v2305 = vpop.permute.xlu0 %2304
      %2307 = vst.msk [vmem:[#allocation6] sm:$0xff] %vm1997, %v2305
      %v2308 = vld [vmem:[%s2287] sm:$0xff]
      %2310 = vrot.lane.b32.xlu0 %v2308, 12
      %v2311 = vpop.permute.xlu0 %2310
      %2313 = vst.msk [vmem:[#allocation6] sm:$0xff] %vm2004, %v2311
      %v2314 = vld [vmem:[#allocation3] sm:$0xff]
      %2316 = vrot.lane.b32.xlu0 %v2314, 127
      %v2317 = vpop.permute.xlu0 %2316
      %2319 = vst.msk [vmem:[#allocation6 + $0x8] sm:$0xff] %vm840, %v2317
      %v2320 = vld [vmem:[%s2277] sm:$0xff]
      %2322 = vrot.lane.b32.xlu0 %v2320, 3
      %v2323 = vpop.permute.xlu0 %2322
      %2325 = vst.msk [vmem:[#allocation6 + $0x8] sm:$0xff] %vm1990, %v2323
      %v2326 = vld [vmem:[%s2282] sm:$0xff]
      %2328 = vrot.lane.b32.xlu0 %v2326, 7
      %v2329 = vpop.permute.xlu0 %2328
      %2331 = vst.msk [vmem:[#allocation6 + $0x8] sm:$0xff] %vm1997, %v2329
      %v2332 = vld [vmem:[%s2287] sm:$0xff]
      %2334 = vrot.lane.b32.xlu0 %v2332, 11
      %v2335 = vpop.permute.xlu0 %2334
      %2337 = vst.msk [vmem:[#allocation6 + $0x8] sm:$0xff] %vm2004, %v2335
      %v2338 = vld [vmem:[#allocation3] sm:$0xff]
      %2340 = vrot.lane.b32.xlu0 %v2338, 126
      %v2341 = vpop.permute.xlu0 %2340
      %2343 = vst.msk [vmem:[#allocation6 + $0x10] sm:$0xff] %vm840, %v2341
      %v2344 = vld [vmem:[%s2277] sm:$0xff]
      %2346 = vrot.lane.b32.xlu0 %v2344, 2
      %v2347 = vpop.permute.xlu0 %2346
      %2349 = vst.msk [vmem:[#allocation6 + $0x10] sm:$0xff] %vm1990, %v2347
      %v2350 = vld [vmem:[%s2282] sm:$0xff]
      %2352 = vrot.lane.b32.xlu0 %v2350, 6
      %v2353 = vpop.permute.xlu0 %2352
      %2355 = vst.msk [vmem:[#allocation6 + $0x10] sm:$0xff] %vm1997, %v2353
      %v2356 = vld [vmem:[%s2287] sm:$0xff]
      %2358 = vrot.lane.b32.xlu0 %v2356, 10
      %v2359 = vpop.permute.xlu0 %2358
      %2361 = vst.msk [vmem:[#allocation6 + $0x10] sm:$0xff] %vm2004, %v2359
      %v2362 = vld [vmem:[%s2277] sm:$0xff]
      %2363 = vst.msk [vmem:[#allocation6 + $0x18] sm:$0xff] %vm840, %v2362
      %v2364 = vld [vmem:[%s2282] sm:$0xff]
      %2366 = vrot.lane.b32.xlu0 %v2364, 4
      %v2367 = vpop.permute.xlu0 %2366
      %2369 = vst.msk [vmem:[#allocation6 + $0x18] sm:$0xff] %vm1990, %v2367
      %v2370 = vld [vmem:[%s2287] sm:$0xff]
      %2372 = vrot.lane.b32.xlu0 %v2370, 8
      %v2373 = vpop.permute.xlu0 %2372
      %2375 = vst.msk [vmem:[#allocation6 + $0x18] sm:$0xff] %vm1997, %v2373
      %v2376 = vld [vmem:[%s2292] sm:$0xff]
      %2378 = vrot.lane.b32.xlu0 %v2376, 12
      %v2379 = vpop.permute.xlu0 %2378
      %2381 = vst.msk [vmem:[#allocation6 + $0x18] sm:$0xff] %vm2004, %v2379
      %v2382 = vld [vmem:[%s2277] sm:$0xff]
      %2384 = vrot.lane.b32.xlu0 %v2382, 127
      %v2385 = vpop.permute.xlu0 %2384
      %2387 = vst.msk [vmem:[#allocation6 + $0x20] sm:$0xff] %vm840, %v2385
      %v2388 = vld [vmem:[%s2282] sm:$0xff]
      %2390 = vrot.lane.b32.xlu0 %v2388, 3
      %v2391 = vpop.permute.xlu0 %2390
      %2393 = vst.msk [vmem:[#allocation6 + $0x20] sm:$0xff] %vm1990, %v2391
      %v2394 = vld [vmem:[%s2287] sm:$0xff]
      %2396 = vrot.lane.b32.xlu0 %v2394, 7
      %v2397 = vpop.permute.xlu0 %2396
      %2399 = vst.msk [vmem:[#allocation6 + $0x20] sm:$0xff] %vm1997, %v2397
      %v2400 = vld [vmem:[%s2292] sm:$0xff]
      %2402 = vrot.lane.b32.xlu0 %v2400, 11
      %v2403 = vpop.permute.xlu0 %2402
      %2405 = vst.msk [vmem:[#allocation6 + $0x20] sm:$0xff] %vm2004, %v2403
      %v2406 = vld [vmem:[%s2277] sm:$0xff]
      %2408 = vrot.lane.b32.xlu0 %v2406, 126
      %v2409 = vpop.permute.xlu0 %2408
      %2411 = vst.msk [vmem:[#allocation6 + $0x28] sm:$0xff] %vm840, %v2409
      %v2412 = vld [vmem:[%s2282] sm:$0xff]
      %2414 = vrot.lane.b32.xlu0 %v2412, 2
      %v2415 = vpop.permute.xlu0 %2414
      %2417 = vst.msk [vmem:[#allocation6 + $0x28] sm:$0xff] %vm1990, %v2415
      %v2418 = vld [vmem:[%s2287] sm:$0xff]
      %2420 = vrot.lane.b32.xlu0 %v2418, 6
      %v2421 = vpop.permute.xlu0 %2420
      %2423 = vst.msk [vmem:[#allocation6 + $0x28] sm:$0xff] %vm1997, %v2421
      %v2424 = vld [vmem:[%s2292] sm:$0xff]
      %2426 = vrot.lane.b32.xlu0 %v2424, 10
      %v2427 = vpop.permute.xlu0 %2426
      %2429 = vst.msk [vmem:[#allocation6 + $0x28] sm:$0xff] %vm2004, %v2427
      %v2430 = vld [vmem:[%s2282] sm:$0xff]
      %2431 = vst.msk [vmem:[#allocation6 + $0x30] sm:$0xff] %vm840, %v2430
      %v2432 = vld [vmem:[%s2287] sm:$0xff]
      %2434 = vrot.lane.b32.xlu0 %v2432, 4
      %v2435 = vpop.permute.xlu0 %2434
      %2437 = vst.msk [vmem:[#allocation6 + $0x30] sm:$0xff] %vm1990, %v2435
      %v2438 = vld [vmem:[%s2292] sm:$0xff]
      %2440 = vrot.lane.b32.xlu0 %v2438, 8
      %v2441 = vpop.permute.xlu0 %2440
      %2443 = vst.msk [vmem:[#allocation6 + $0x30] sm:$0xff] %vm1997, %v2441
      %s2444 = scalar_lea.vmem [#allocation3], 40
      %v2445 = vld [vmem:[%s2444] sm:$0xff]
      %2447 = vrot.lane.b32.xlu0 %v2445, 12
      %v2448 = vpop.permute.xlu0 %2447
      %2450 = vst.msk [vmem:[#allocation6 + $0x30] sm:$0xff] %vm2004, %v2448
      %v2451 = vld [vmem:[%s2282] sm:$0xff]
      %2453 = vrot.lane.b32.xlu0 %v2451, 127
      %v2454 = vpop.permute.xlu0 %2453
      %2456 = vst.msk [vmem:[#allocation6 + $0x38] sm:$0xff] %vm840, %v2454
      %v2457 = vld [vmem:[%s2287] sm:$0xff]
      %2459 = vrot.lane.b32.xlu0 %v2457, 3
      %v2460 = vpop.permute.xlu0 %2459
      %2462 = vst.msk [vmem:[#allocation6 + $0x38] sm:$0xff] %vm1990, %v2460
      %v2463 = vld [vmem:[%s2292] sm:$0xff]
      %2465 = vrot.lane.b32.xlu0 %v2463, 7
      %v2466 = vpop.permute.xlu0 %2465
      %2468 = vst.msk [vmem:[#allocation6 + $0x38] sm:$0xff] %vm1997, %v2466
      %v2469 = vld [vmem:[%s2444] sm:$0xff]
      %2471 = vrot.lane.b32.xlu0 %v2469, 11
      %v2472 = vpop.permute.xlu0 %2471
      %2474 = vst.msk [vmem:[#allocation6 + $0x38] sm:$0xff] %vm2004, %v2472
      %v2475 = vld [vmem:[%s2282] sm:$0xff]
      %2477 = vrot.lane.b32.xlu0 %v2475, 126
      %v2478 = vpop.permute.xlu0 %2477
      %2480 = vst.msk [vmem:[#allocation6 + $0x40] sm:$0xff] %vm840, %v2478
      %v2481 = vld [vmem:[%s2287] sm:$0xff]
      %2483 = vrot.lane.b32.xlu0 %v2481, 2
      %v2484 = vpop.permute.xlu0 %2483
      %2486 = vst.msk [vmem:[#allocation6 + $0x40] sm:$0xff] %vm1990, %v2484
      %v2487 = vld [vmem:[%s2292] sm:$0xff]
      %2489 = vrot.lane.b32.xlu0 %v2487, 6
      %v2490 = vpop.permute.xlu0 %2489
      %2492 = vst.msk [vmem:[#allocation6 + $0x40] sm:$0xff] %vm1997, %v2490
      %v2493 = vld [vmem:[%s2444] sm:$0xff]
      %2495 = vrot.lane.b32.xlu0 %v2493, 10
      %v2496 = vpop.permute.xlu0 %2495
      %2498 = vst.msk [vmem:[#allocation6 + $0x40] sm:$0xff] %vm2004, %v2496
      %v2499 = vld [vmem:[%s3] sm:$0xf]
      %v2500 = vld [vmem:[#allocation6] sm:$0xff]
      %v2501 = vld [vmem:[#allocation6 + $0x8] sm:$0xff]
      %v2502 = vld [vmem:[#allocation6 + $0x10] sm:$0xff]
      %v2503 = vld [vmem:[#allocation6 + $0x18] sm:$0xff]
      %v2504 = vld [vmem:[#allocation6 + $0x20] sm:$0xff]
      %v2505 = vld [vmem:[#allocation6 + $0x28] sm:$0xff]
      %v2506 = vld [vmem:[#allocation6 + $0x30] sm:$0xff]
      %v2507 = vld [vmem:[#allocation6 + $0x38] sm:$0xff]
      %v2508 = vld [vmem:[#allocation6 + $0x40] sm:$0xff]
      %v2510 = vsel %vm2189, %v2499, 0
      %2512 = vmatprep.subr.mxu0 0.0
      %2513 = vmatpush1.msra.mxu0 %v2500
      %2514 = vmatprep.subr.mxu0 0.0
      %2515 = vmatpush1.msra.mxu0 %v2501
      %2516 = vmatprep.subr.mxu0 0.0
      %2517 = vmatpush1.msra.mxu0 %v2502
      %2518 = vmatprep.subr.mxu0 0.0
      %2519 = vmatpush1.msra.mxu0 %v2503
      %2520 = vmatprep.subr.mxu0 0.0
      %2521 = vmatpush1.msra.mxu0 %v2504
      %2522 = vmatprep.subr.mxu0 0.0
      %2523 = vmatpush1.msra.mxu0 %v2505
      %2524 = vmatprep.subr.mxu0 0.0
      %2525 = vmatpush1.msra.mxu0 %v2506
      %2526 = vmatprep.subr.mxu0 0.0
      %2527 = vmatpush1.msra.mxu0 %v2507
      %2528 = vmatprep.subr.mxu0 0.0
      %2529 = vmatpush1.msra.mxu0 %v2508
      %2530 = vmatprep.subr.mxu0 0.0
      %2531 = vmatpush1.msra.mxu0 0.0
      %2532 = vmatprep.subr.mxu0 0.0
      %2533 = vmatpush1.msra.mxu0 0.0
      %2534 = vmatprep.subr.mxu0 0.0
      %2535 = vmatpush1.msra.mxu0 0.0
      %2536 = vmatprep.subr.mxu0 0.0
      %2537 = vmatpush1.msra.mxu0 0.0
      %2538 = vmatprep.subr.mxu0 0.0
      %2539 = vmatpush1.msra.mxu0 0.0
      %2540 = vmatprep.subr.mxu0 0.0
      %2541 = vmatpush1.msra.mxu0 0.0
      %2542 = vmatprep.subr.mxu0 0.0
      %2543 = vmatpush1.msra.mxu0 0.0
      %2544 = vmatprep.subr.mxu0 0.0
      %2545 = vmatpush1.msra.mxu0 0.0
      %2546 = vmatprep.subr.mxu0 0.0
      %2547 = vmatpush1.msra.mxu0 0.0
      %2548 = vmatprep.subr.mxu0 0.0
      %2549 = vmatpush1.msra.mxu0 0.0
      %2550 = vmatprep.subr.mxu0 0.0
      %2551 = vmatpush1.msra.mxu0 0.0
      %2552 = vmatprep.subr.mxu0 0.0
      %2553 = vmatpush1.msra.mxu0 0.0
      %2554 = vmatprep.subr.mxu0 0.0
      %2555 = vmatpush1.msra.mxu0 0.0
      %2556 = vmatprep.subr.mxu0 0.0
      %2557 = vmatpush1.msra.mxu0 0.0
      %2558 = vmatprep.subr.mxu0 0.0
      %2559 = vmatpush1.msra.mxu0 0.0
      %2560 = vmatprep.subr.mxu0 0.0
      %2561 = vmatpush1.msra.mxu0 0.0
      %2562 = vmatprep.subr.mxu0 0.0
      %2563 = vmatpush1.msra.mxu0 0.0
      %2564 = vmatprep.subr.mxu0 0.0
      %2565 = vmatpush1.msra.mxu0 0.0
      %2566 = vmatprep.subr.mxu0 0.0
      %2567 = vmatpush1.msra.mxu0 0.0
      %2568 = vmatprep.subr.mxu0 0.0
      %2569 = vmatpush1.msra.mxu0 0.0
      %2570 = vmatprep.subr.mxu0 0.0
      %2571 = vmatpush1.msra.mxu0 0.0
      %2572 = vmatprep.subr.mxu0 0.0
      %2573 = vmatpush1.msra.mxu0 0.0
      %2574 = vmatprep.subr.mxu0 0.0
      %2575 = vmatpush1.msra.mxu0 0.0
      %2576 = vmatprep.mubr.f32.mxu0 0.0
      %2577 = vmatmul.mubr.f32.gmra.mrb[0].mxu0 %v2510
      %v2578 = vpop.f32.mrb[0].mxu0
      %v2579 = vadd.f32 0.0, %v2578
      %v2580 = vpop.f32.mrb[0].mxu0
      %2581 = vdwg.mxu0
      %vm2582 = vcmask 125952
      %2583 = vst.msk [vmem:[%s195] sm:$0xf] %vm2582, %v2579
      %p2584 = scmp.lt.s32.totalorder %s15, 1
      %s2585 = scalar_select %p2584, %s15, 1
      %s2586 = smul.addr %s2585, 4
      %s2587 = scalar_lea.vmem %s4, %s2586
      // Predicated region
      $region37: #{_down_block_pallas.1} parent=35 // pred_check
        %p2588 = pneg %p122
      $region38: #{_down_block_pallas.1} parent=35 // pred_check_branch
        %2590 = sbr.rel (%p2588) target = $region40
      $region39: #{_down_block_pallas.1} parent=35 // pred_region
        _
      $region40: #{_down_block_pallas.1} parent=35 // pred_fallthru
        _
    $region36: #{_down_block_pallas.1} parent=5 // pred_fallthru
      _
    %p2591 = scmp.le.s32.totalorder 2, %s10
    // Predicated region
    $region41: #{_down_block_pallas.1} parent=5 // pred_check
      %p2592 = pneg %p2591
    $region42: #{_down_block_pallas.1} parent=5 // pred_check_branch
      %2594 = sbr.rel (%p2592) target = $region44
    $region43: #{_down_block_pallas.1} parent=5 // pred_region
      %s2595 = ssub.s32 %s10, 2
      // Predicated region
      $region45: #{_down_block_pallas.1} parent=43 // pred_check
        %p2596 = pneg %p128
      $region46: #{_down_block_pallas.1} parent=43 // pred_check_branch
        %2598 = sbr.rel (%p2596) target = $region48
      $region47: #{_down_block_pallas.1} parent=43 // pred_region
        %p2599 = scmp.lt.s32.totalorder %s16, 1
        %s2600 = scalar_select %p2599, %s16, 1
        %s2601 = smul.addr %s2600, 4
        %s2602 = scalar_lea.vmem %s4, %s2601
      $region48: #{_down_block_pallas.1} parent=43 // pred_fallthru
        _
    $region44: #{_down_block_pallas.1} parent=5 // pred_fallthru
      _
  $region6: #{_down_block_pallas.1} parent=0 // loop_footer
    %s14 = sadd.s32 1, %s10
  $region7: #{_down_block_pallas.1} parent=0 // loop_footer_branch
    %9 = sbr.rel target = $region3
  $region8: #{_down_block_pallas.1} parent=0 // loop_exit
    _

</llo_original>
